<compile_context>
chip_gen: v6e
topology: v6e:2x2x1
jax: 0.10.0
libtpu: 0.0.40
codegen_flags: <defaults>
</compile_context>

<pallas_src>
import functools
import math

import jax
import jax.numpy as jnp
from jax.experimental import pallas as pl
from jax.experimental.pallas import tpu as pltpu

LN_EPS = 1e-5  # torch nn.LayerNorm default


def _gelu_tanh(x):
    # tanh-approx GELU used inside kernels (tanh rides the EUP slot instead of a
    # long erf VPU polynomial).
    # TODO(synk): torch nn.GELU() default is the exact erf form; max |diff| ~1e-3,
    # inside the test tolerance — switch back if bit-parity with torch is required.
    c = math.sqrt(2.0 / math.pi)
    return 0.5 * x * (1.0 + jnp.tanh(c * (x + 0.044715 * x * x * x)))


def _gelu_exact(x):
    # exact (erf) GELU — used only in the pure-JAX reference.
    return 0.5 * x * (1.0 + jax.scipy.special.erf(x * (1.0 / math.sqrt(2.0))))


def _layernorm(x, g, b):
    mu = jnp.mean(x, axis=-1, keepdims=True)
    var = jnp.mean((x - mu) ** 2, axis=-1, keepdims=True)
    return (x - mu) * jax.lax.rsqrt(var + LN_EPS) * g + b


def _round_up(n, m):
    return ((n + m - 1) // m) * m


def _pick_seq_tile(S, max_tile=512, quantum=128):
    # Largest tile <= max_tile that divides S and is a multiple of 128 (the tile is
    # the lane dim of the hr_feat / bias input blocks).
    best = None
    t = quantum
    while t <= min(max_tile, S):
        if S % t == 0:
            best = t
        t += quantum
    return best if best is not None else S


def _vmem_limit_bytes():
    # ~3/4 of physical VMEM: ~96 MiB on v5e/v6e (128 MiB parts), ~48 MiB on v7x.
    cap = 64 * 1024 * 1024
    try:
        cap = int(pltpu.get_tpu_info().vmem_capacity_bytes)
    except Exception:
        pass
    return max(32 * 1024 * 1024, min((cap * 3) // 4, 100 * 1024 * 1024))


def _cparams(*sem):
    return pltpu.CompilerParams(dimension_semantics=sem,
                                vmem_limit_bytes=_vmem_limit_bytes())


def _const_spec(shape, index_map):
    # Grid-invariant operand: single-buffer it (Pallas double-buffers every input by
    # default, so weights would otherwise count twice against VMEM).
    try:
        return pl.BlockSpec(shape, index_map, pipeline_mode=pl.Buffered(1))
    except Exception:  # older jax without per-BlockSpec pipeline_mode
        return pl.BlockSpec(shape, index_map)


# --------------------------------------------------------------------------
# Fused kernel: src_embed MLP + src_norm + K|V projection + single-head
# MultiheadAttention (online softmax over S tiles) + residual + attn_norm +
# token_embed.  One grid step per (batch, S-tile); tokens written on last tile.
# --------------------------------------------------------------------------
def src_attn_kernel(hr_ref, mt_ref, bias_ref,
                    w1_ref, b1_ref, w2_ref, b2_ref, gsn_ref, bsn_ref,
                    wkv_ref, bkv_ref, wq_ref, bq_ref, wo_ref, bo_ref,
                    gan_ref, ban_ref, wte_ref, bte_ref,
                    tok_ref, q_sc, m_sc, l_sc, acc_sc):
    i = pl.program_id(1)
    E = wq_ref.shape[0]

    @pl.when(i == 0)
    def _():
        # q projection is S-independent: compute once per batch.
        mt = mt_ref[0]                                            # (L, E) f32
        q_sc[...] = jnp.dot(mt.astype(jnp.bfloat16), wq_ref[...],
                            preferred_element_type=jnp.float32) + bq_ref[...]
        m_sc[...] = jnp.full_like(m_sc, -jnp.inf)
        l_sc[...] = jnp.zeros_like(l_sc)
        acc_sc[...] = jnp.zeros_like(acc_sc)

    # --- src_embed MLP + src_norm + fused K|V projection on this S tile ---
    x = jnp.transpose(hr_ref[0]).astype(jnp.bfloat16)             # (TR, E)
    h = jnp.dot(x, w1_ref[...], preferred_element_type=jnp.float32) + b1_ref[...]
    h = _gelu_tanh(h)
    y = jnp.dot(h.astype(jnp.bfloat16), w2_ref[...],
                preferred_element_type=jnp.float32) + b2_ref[...]
    sn = _layernorm(y, gsn_ref[...], bsn_ref[...])                # f32 (TR, E)
    snb = sn.astype(jnp.bfloat16)
    kv = jnp.dot(snb, wkv_ref[...], preferred_element_type=jnp.float32) + bkv_ref[...]
    kk = kv[:, :E].astype(jnp.bfloat16)                           # (TR, E)
    vv = kv[:, E:].astype(jnp.bfloat16)                           # (TR, E)

    # --- online-softmax attention accumulation (num_heads=1, head_dim=E) ---
    scale = 1.0 / math.sqrt(E)
    q_bf = q_sc[...].astype(jnp.bfloat16)                         # (L, E)
    s = jnp.einsum("le,se->ls", q_bf, kk,
                   preferred_element_type=jnp.float32)            # (L, TR)
    s = s * scale + bias_ref[0]                                   # -1e30 where masked-out

    m_prev = m_sc[...]
    m_new = jnp.maximum(m_prev, jnp.max(s, axis=-1, keepdims=True))
    alpha = jnp.exp(m_prev - m_new)
    p = jnp.exp(s - m_new)
    l_sc[...] = alpha * l_sc[...] + jnp.sum(p, axis=-1, keepdims=True)
    acc_sc[...] = alpha * acc_sc[...] + jnp.dot(p.astype(jnp.bfloat16), vv,
                                                preferred_element_type=jnp.float32)
    m_sc[...] = m_new

    @pl.when(i == pl.num_programs(1) - 1)
    def _():
        # out_proj + residual + attn_norm + token_embed, once per batch.
        o = acc_sc[...] * pl.reciprocal(l_sc[...], approx=True)   # (L, E)
        o = jnp.dot(o.astype(jnp.bfloat16), wo_ref[...],
                    preferred_element_type=jnp.float32) + bo_ref[...]
        res = _layernorm(o + mt_ref[0], gan_ref[...], ban_ref[...])
        tok_ref[0] = jnp.dot(res.astype(jnp.bfloat16), wte_ref[...],
                             preferred_element_type=jnp.float32) + bte_ref[...]


def src_attn_fused(hr, mask_token, attn_bias, p, *, max_tile=512):
    """hr: (bs, E, S) f32 (NCHW-flattened).  Returns tokens (bs, L, Hd) f32."""
    bs, E, S = hr.shape
    L = mask_token.shape[1]
    Hm = p["src_w1"].shape[1]
    Hd = p["tok_w"].shape[1]
    TR = _pick_seq_tile(S, max_tile)
    wkv = jnp.concatenate([p["wk"], p["wv"]], axis=1)             # (E, 2E) bf16
    bkv = jnp.concatenate([p["bk"], p["bv"]], axis=1)             # (1, 2E) f32
    cst = lambda b, i: (0, 0)
    w = lambda shape: _const_spec(shape, cst)
    # TODO(synk): for bs==1 on v7x, additionally split the S loop across cores with
    # a cross-core combine; the bs-parallel + S-arbitrary grid is kept for clarity.
    return pl.pallas_call(
        src_attn_kernel,
        out_shape=jax.ShapeDtypeStruct((bs, L, Hd), jnp.float32),
        grid_spec=pltpu.PrefetchScalarGridSpec(
            num_scalar_prefetch=0,
            grid=(bs, S // TR),
            in_specs=[
                pl.BlockSpec((1, E, TR), lambda b, i: (b, 0, i)),   # hr tile (f32)
                pl.BlockSpec((1, L, E), lambda b, i: (b, 0, 0)),    # mask_token
                pl.BlockSpec((1, L, TR), lambda b, i: (b, 0, i)),   # attn bias
                w((E, Hm)), w((1, Hm)),                             # src_embed lin1
                w((Hm, E)), w((1, E)),                              # src_embed lin2
                w((1, E)), w((1, E)),                               # src_norm
                w((E, 2 * E)), w((1, 2 * E)),                       # K|V projection
                w((E, E)), w((1, E)),                               # q projection
                w((E, E)), w((1, E)),                               # attn out_proj
                w((1, E)), w((1, E)),                               # attn_norm
                w((E, Hd)), w((1, Hd)),                             # token_embed
            ],
            out_specs=pl.BlockSpec((1, L, Hd), lambda b, i: (b, 0, 0)),
            scratch_shapes=[pltpu.VMEM((L, E), jnp.float32),        # q
                            pltpu.VMEM((L, 1), jnp.float32),        # m (running max)
                            pltpu.VMEM((L, 1), jnp.float32),        # l (running denom)
                            pltpu.VMEM((L, E), jnp.float32)],       # acc
        ),
        compiler_params=_cparams("parallel", "arbitrary"),
    )(hr, mask_token, attn_bias,
      p["src_w1"], p["src_b1"], p["src_w2"], p["src_b2"],
      p["src_norm_g"], p["src_norm_b"],
      wkv, bkv, p["wq"], p["bq"], p["wo"], p["bo"],
      p["attn_norm_g"], p["attn_norm_b"], p["tok_w"], p["tok_b"])


# --------------------------------------------------------------------------
# Mask-branch kernel (tiled over rows):
#   mask_conv((masks*2-1)) + mask_embed folded into ONE matmul (weights pre-folded
#   in glue) -> + tokens -> hidden_norm LayerNorm -> out_embed MLP.
# --------------------------------------------------------------------------
def mask_branch_kernel(pat_ref, tok_ref, wf_ref, bf_ref, ghn_ref, bhn_ref,
                       w1_ref, b1_ref, w2_ref, b2_ref, out_ref):
    me = jnp.dot(pat_ref[...], wf_ref[...],
                 preferred_element_type=jnp.float32) + bf_ref[...]
    nt = tok_ref[...] + me                           # new_tokens = tokens + mask_embeds
    hn = _layernorm(nt, ghn_ref[...], bhn_ref[...])  # hidden_norm
    h1 = _gelu_tanh(jnp.dot(hn.astype(jnp.bfloat16), w1_ref[...],
                            preferred_element_type=jnp.float32) + b1_ref[...])
    out_ref[...] = jnp.dot(h1.astype(jnp.bfloat16), w2_ref[...],
                           preferred_element_type=jnp.float32) + b2_ref[...]


def mask_branch(patches2d, tokens2d, w_fold, b_fold, p, *, max_tile=512):
    R, KP = patches2d.shape
    Hd = tokens2d.shape[1]
    O = p["out_w2"].shape[1]
    budget = 8 * 1024 * 1024                         # bytes of one patch tile in VMEM
    tr = min(max_tile, max(8, budget // (KP * patches2d.dtype.itemsize)))
    tr = max(8, (tr // 8) * 8)
    tr = min(tr, _round_up(R, 8))
    R_pad = _round_up(R, tr)
    if R_pad != R:                                   # cdiv-style padding, no asserts
        patches2d = jnp.pad(patches2d, ((0, R_pad - R), (0, 0)))
        tokens2d = jnp.pad(tokens2d, ((0, R_pad - R), (0, 0)))
    cst = lambda i: (0, 0)
    w = lambda shape: _const_spec(shape, cst)
    out = pl.pallas_call(
        mask_branch_kernel,
        out_shape=jax.ShapeDtypeStruct((R_pad, O), jnp.float32),
        grid_spec=pltpu.PrefetchScalarGridSpec(
            num_scalar_prefetch=0,
            grid=(R_pad // tr,),
            in_specs=[
                pl.BlockSpec((tr, KP), lambda i: (i, 0)),           # patches (bf16)
                pl.BlockSpec((tr, Hd), lambda i: (i, 0)),           # tokens (f32)
                w((KP, Hd)), w((1, Hd)),                            # folded conv+mask_embed
                w((1, Hd)), w((1, Hd)),                             # hidden_norm
                w((Hd, Hd)), w((1, Hd)),                            # out_embed lin1
                w((Hd, O)), w((1, O)),                              # out_embed lin2
            ],
            out_specs=pl.BlockSpec((tr, O), lambda i: (i, 0)),
        ),
        compiler_params=_cparams("parallel"),
    )(patches2d, tokens2d, w_fold, b_fold,
      p["hn_g"], p["hn_b"], p["out_w1"], p["out_b1"], p["out_w2"], p["out_b2"])
    return out[:R]


# --------------------------------------------------------------------------
# Full forward (glue: reshapes / im2col / mask-bias / weight folding only)
# --------------------------------------------------------------------------
def mask_embedder_forward(masks, hr_feat, mask_token, p, *, mask_size):
    bs, n_masks, mh, mw = masks.shape
    _, E, fh, fw = hr_feat.shape
    S = fh * fw
    assert mh * mw == S, "attn_mask key length must match hr_feat spatial size"
    k = mask_size // 32
    KK, NP = k * k, 32 * 32

    # src = hr_feat.flatten(-2): a free contiguous reshape; the transpose(1,2) and
    # bf16 cast happen per-tile inside the fused kernel (no HBM relayout passes).
    hr = hr_feat.astype(jnp.float32).reshape(bs, E, S)

    # get_attn_mask semantics: True = do NOT attend; fully-masked rows reset to attend-all.
    mf = masks.reshape(bs, n_masks, S)
    attendable = mf != 0
    row_used = jnp.any(attendable, axis=-1, keepdims=True)
    attn_bias = jnp.where(row_used & ~attendable, -1e30, 0.0).astype(jnp.float32)

    tokens = src_attn_fused(hr, mask_token.astype(jnp.float32), attn_bias, p)

    # Mask branch: im2col of the raw 0/1 mask (exactly representable in bf16); the
    # (masks*2-1) affine, mask_conv weights and mask_embed Linear are folded into a
    # single (KK*NP, Hd) matmul weight so the conv rides the MXU.
    R = bs * n_masks
    x = masks.reshape(R, 32, k, 32, k)
    patches = jnp.transpose(x, (0, 2, 4, 1, 3)).reshape(R, KK * NP).astype(jnp.bfloat16)
    cw_eff = 2.0 * p["conv_w"].reshape(KK).astype(jnp.float32)              # (KK,)
    cb_eff = (p["conv_b"].reshape(()).astype(jnp.float32)
              - jnp.sum(p["conv_w"].astype(jnp.float32)))                   # scalar
    me_w = p["me_w"].astype(jnp.float32)                                    # (NP, Hd)
    w_fold = (cw_eff[:, None, None] * me_w[None]).reshape(KK * NP, -1)
    w_fold = w_fold.astype(jnp.bfloat16)                                    # (KK*NP, Hd)
    b_fold = (p["me_b"] + cb_eff * jnp.sum(me_w, axis=0, keepdims=True)
              ).astype(jnp.float32)                                         # (1, Hd)

    Hd = tokens.shape[-1]
    out = mask_branch(patches, tokens.reshape(R, Hd), w_fold, b_fold, p)
    return out.reshape(bs, n_masks, -1), tokens

# TODO(synk): add_rgb (PatchEmbed) / add_downsample (DownsampleConv) / use_attn=False /
# extract=False branches are default-off flags of the module and not implemented here.


# --------------------------------------------------------------------------
# Pure-JAX f32 reference (same math, exact erf GELU) for a sanity check
# --------------------------------------------------------------------------
def reference_forward(masks, hr_feat, mask_token, p, *, mask_size):
    f32 = lambda a: a.astype(jnp.float32)
    bs, n_masks, mh, mw = masks.shape
    _, E, fh, fw = hr_feat.shape
    S = fh * fw
    src = jnp.transpose(hr_feat.reshape(bs, E, S), (0, 2, 1))
    h = _gelu_exact(src @ f32(p["src_w1"]) + p["src_b1"])
    src = _layernorm(h @ f32(p["src_w2"]) + p["src_b2"], p["src_norm_g"], p["src_norm_b"])
    scale = 1.0 / math.sqrt(E)
    q = (mask_token @ f32(p["wq"]) + p["bq"]) * scale
    kk = src @ f32(p["wk"]) + p["bk"]
    v = src @ f32(p["wv"]) + p["bv"]
    scores = jnp.einsum("ble,bse->bls", q, kk)
    mf = masks.reshape(bs, n_masks, mh * mw)
    attendable = mf != 0
    row_used = jnp.any(attendable, axis=-1, keepdims=True)
    neg = jnp.where(row_used & ~attendable, -1e30, 0.0)
    probs = jax.nn.softmax(scores + neg, axis=-1)
    o = jnp.einsum("bls,bse->ble", probs, v) @ f32(p["wo"]) + p["bo"]
    tokens = _layernorm(o + mask_token, p["attn_norm_g"], p["attn_norm_b"])
    tokens = tokens @ f32(p["tok_w"]) + p["tok_b"]
    k = mask_size // 32
    m = masks.astype(jnp.float32) * 2 - 1
    x = m.reshape(bs * n_masks, 32, k, 32, k)
    patches = jnp.transpose(x, (0, 2, 4, 1, 3)).reshape(bs * n_masks, k * k, 1024)
    conv = jnp.einsum("rkp,k->rp", patches, p["conv_w"][:, 0]) + p["conv_b"][0, 0]
    me = conv @ f32(p["me_w"]) + p["me_b"]
    nt = tokens.reshape(bs * n_masks, -1) + me
    hn = _layernorm(nt, p["hn_g"], p["hn_b"])
    out = _gelu_exact(hn @ f32(p["out_w1"]) + p["out_b1"]) @ f32(p["out_w2"]) + p["out_b2"]
    return out.reshape(bs, n_masks, -1), tokens


# --------------------------------------------------------------------------
# Deterministic parameter init (shapes follow the module's __init__)
# --------------------------------------------------------------------------
def init_params(key, E, Hd, O, KK, NP):
    keys = jax.random.split(key, 14)
    bf = jnp.bfloat16
    nrm = lambda k_, shape, s=0.05: jax.random.normal(k_, shape, jnp.float32) * s
    ones = lambda n: jnp.ones((1, n), jnp.float32)
    zeros = lambda n: jnp.zeros((1, n), jnp.float32)
    return {
        # NOTE: matmul weights stored transposed vs torch (in, out), bf16 MXU operands.
        "src_w1": nrm(keys[0], (E, Hd)).astype(bf), "src_b1": zeros(Hd),   # src_embed lin1
        "src_w2": nrm(keys[1], (Hd, E)).astype(bf), "src_b2": zeros(E),    # src_embed lin2
        "src_norm_g": ones(E), "src_norm_b": zeros(E),                     # src_norm
        "wq": nrm(keys[2], (E, E)).astype(bf), "bq": nrm(keys[3], (1, E), 0.01),
        "wk": nrm(keys[4], (E, E)).astype(bf), "bk": nrm(keys[5], (1, E), 0.01),
        "wv": nrm(keys[6], (E, E)).astype(bf), "bv": nrm(keys[7], (1, E), 0.01),
        "wo": nrm(keys[8], (E, E)).astype(bf), "bo": zeros(E),             # out_proj
        "attn_norm_g": ones(E), "attn_norm_b": zeros(E),                   # attn_norm
        "tok_w": nrm(keys[9], (E, Hd)).astype(bf), "tok_b": zeros(Hd),     # token_embed
        "conv_w": nrm(keys[10], (KK, 1), 0.1),                             # mask_conv weight
        "conv_b": jnp.full((1, 1), 0.02, jnp.float32),                     # mask_conv bias
        "me_w": nrm(keys[11], (NP, Hd), 0.02).astype(bf), "me_b": zeros(Hd),  # mask_embed
        "hn_g": ones(Hd), "hn_b": zeros(Hd),                               # hidden_norm
        "out_w1": nrm(keys[12], (Hd, Hd)).astype(bf), "out_b1": zeros(Hd), # out_embed lin1
        "out_w2": nrm(keys[13], (Hd, O)).astype(bf), "out_b2": zeros(O),   # out_embed lin2
    }


if __name__ == "__main__":
    bs, n_masks = 2, 8
    E, Hd, O = 128, 128, 128        # in_dim, hidden_dim, out_dim (lane-aligned test dims)
    mask_size = 32                  # kernel_size = mask_size // 32 = 1
    fh = fw = 32                    # hr_feat spatial (H*W must equal mask h*w = 1024)
    KK = (mask_size // 32) ** 2
    NP = 32 * 32                    # mask_embed input size (fixed at 1024)

    key = jax.random.PRNGKey(0)
    k1, k2, k3, kp = jax.random.split(key, 4)
    masks = (jax.random.uniform(k1, (bs, n_masks, mask_size, mask_size)) > 0.5
             ).astype(jnp.float32)
    hr_feat = jax.random.normal(k2, (bs, E, fh, fw), jnp.float32)     # NCHW
    mask_token = jax.random.normal(k3, (bs, n_masks, E), jnp.float32)
    params = init_params(kp, E, Hd, O, KK, NP)

    fwd = jax.jit(functools.partial(mask_embedder_forward, mask_size=mask_size))
    out, tokens = fwd(masks, hr_feat, mask_token, params)
    jax.block_until_ready((out, tokens))

    ref_out, ref_tok = reference_forward(masks, hr_feat, mask_token, params,
                                         mask_size=mask_size)
    assert out.shape == (bs, n_masks, O) and tokens.shape == (bs, n_masks, Hd)
    assert jnp.allclose(tokens, ref_tok, atol=5e-2, rtol=5e-2), \
        float(jnp.max(jnp.abs(tokens - ref_tok)))
    assert jnp.allclose(out, ref_out, atol=5e-2, rtol=5e-2), \
        float(jnp.max(jnp.abs(out - ref_out)))
    print("KERNEL_OK")
</pallas_src>

<mosaic_0001>
module attributes {stable_mosaic.version = 11 : i64} {
  func.func @src_attn_kernel(%arg0: i32, %arg1: i32, %arg2: memref<1x128x512xf32, #tpu.memory_space<vmem>>, %arg3: memref<1x8x128xf32, #tpu.memory_space<vmem>>, %arg4: memref<1x8x512xf32, #tpu.memory_space<vmem>>, %arg5: memref<128x128xbf16, #tpu.memory_space<vmem>>, %arg6: memref<1x128xf32, #tpu.memory_space<vmem>>, %arg7: memref<128x128xbf16, #tpu.memory_space<vmem>>, %arg8: memref<1x128xf32, #tpu.memory_space<vmem>>, %arg9: memref<1x128xf32, #tpu.memory_space<vmem>>, %arg10: memref<1x128xf32, #tpu.memory_space<vmem>>, %arg11: memref<128x256xbf16, #tpu.memory_space<vmem>>, %arg12: memref<1x256xf32, #tpu.memory_space<vmem>>, %arg13: memref<128x128xbf16, #tpu.memory_space<vmem>>, %arg14: memref<1x128xf32, #tpu.memory_space<vmem>>, %arg15: memref<128x128xbf16, #tpu.memory_space<vmem>>, %arg16: memref<1x128xf32, #tpu.memory_space<vmem>>, %arg17: memref<1x128xf32, #tpu.memory_space<vmem>>, %arg18: memref<1x128xf32, #tpu.memory_space<vmem>>, %arg19: memref<128x128xbf16, #tpu.memory_space<vmem>>, %arg20: memref<1x128xf32, #tpu.memory_space<vmem>>, %arg21: memref<1x8x128xf32, #tpu.memory_space<vmem>>, %arg22: memref<8x128xf32, #tpu.memory_space<vmem>>, %arg23: memref<8x1xf32, #tpu.memory_space<vmem>>, %arg24: memref<8x1xf32, #tpu.memory_space<vmem>>, %arg25: memref<8x128xf32, #tpu.memory_space<vmem>>) attributes {dimension_semantics = [#tpu.dimension_semantics<parallel>, #tpu.dimension_semantics<arbitrary>], iteration_bounds = array<i64: 2, 2>, scalar_prefetch = 0 : i64, scratch_operands = 4 : i64, tpu.core_type = #tpu.core_type<tc>, window_params = [{transform_indices = @transform_0, window_bounds = array<i64: 1, 128, 512>}, {transform_indices = @transform_1, window_bounds = array<i64: 1, 8, 128>}, {transform_indices = @transform_2, window_bounds = array<i64: 1, 8, 512>}, {pipeline_mode = #tpu.pipeline_mode<synchronous>, transform_indices = @transform_3, window_bounds = array<i64: 128, 128>}, {pipeline_mode = #tpu.pipeline_mode<synchronous>, transform_indices = @transform_4, window_bounds = array<i64: 1, 128>}, {pipeline_mode = #tpu.pipeline_mode<synchronous>, transform_indices = @transform_5, window_bounds = array<i64: 128, 128>}, {pipeline_mode = #tpu.pipeline_mode<synchronous>, transform_indices = @transform_6, window_bounds = array<i64: 1, 128>}, {pipeline_mode = #tpu.pipeline_mode<synchronous>, transform_indices = @transform_7, window_bounds = array<i64: 1, 128>}, {pipeline_mode = #tpu.pipeline_mode<synchronous>, transform_indices = @transform_8, window_bounds = array<i64: 1, 128>}, {pipeline_mode = #tpu.pipeline_mode<synchronous>, transform_indices = @transform_9, window_bounds = array<i64: 128, 256>}, {pipeline_mode = #tpu.pipeline_mode<synchronous>, transform_indices = @transform_10, window_bounds = array<i64: 1, 256>}, {pipeline_mode = #tpu.pipeline_mode<synchronous>, transform_indices = @transform_11, window_bounds = array<i64: 128, 128>}, {pipeline_mode = #tpu.pipeline_mode<synchronous>, transform_indices = @transform_12, window_bounds = array<i64: 1, 128>}, {pipeline_mode = #tpu.pipeline_mode<synchronous>, transform_indices = @transform_13, window_bounds = array<i64: 128, 128>}, {pipeline_mode = #tpu.pipeline_mode<synchronous>, transform_indices = @transform_14, window_bounds = array<i64: 1, 128>}, {pipeline_mode = #tpu.pipeline_mode<synchronous>, transform_indices = @transform_15, window_bounds = array<i64: 1, 128>}, {pipeline_mode = #tpu.pipeline_mode<synchronous>, transform_indices = @transform_16, window_bounds = array<i64: 1, 128>}, {pipeline_mode = #tpu.pipeline_mode<synchronous>, transform_indices = @transform_17, window_bounds = array<i64: 128, 128>}, {pipeline_mode = #tpu.pipeline_mode<synchronous>, transform_indices = @transform_18, window_bounds = array<i64: 1, 128>}, {transform_indices = @transform_19, window_bounds = array<i64: 1, 8, 128>}]} {
    %c0_i32 = arith.constant 0 : i32
    %0 = arith.cmpi eq, %arg1, %c0_i32 : i32
    %1 = arith.extui %0 : i1 to i32
    %c0_i32_0 = arith.constant 0 : i32
    %2 = arith.cmpi ne, %1, %c0_i32_0 : i32
    scf.if %2 {
      %c0_53 = arith.constant 0 : index
      %c0_54 = arith.constant 0 : index
      %c0_55 = arith.constant 0 : index
      %99 = vector.load %arg3[%c0_53, %c0_54, %c0_55] : memref<1x8x128xf32, #tpu.memory_space<vmem>>, vector<1x8x128xf32>
      %100 = vector.shape_cast %99 : vector<1x8x128xf32> to vector<8x128xf32>
      %101 = arith.truncf %100 : vector<8x128xf32> to vector<8x128xbf16>
      %c0_56 = arith.constant 0 : index
      %c0_57 = arith.constant 0 : index
      %102 = vector.load %arg13[%c0_56, %c0_57] : memref<128x128xbf16, #tpu.memory_space<vmem>>, vector<128x128xbf16>
      %cst_58 = arith.constant dense<0.000000e+00> : vector<8x128xf32>
      %103 = tpu.matmul %101, %102, %cst_58 {dimension_numbers = #tpu.dot_dimension_numbers<[1], [0], [0], [1], [0, 0, 1, 1], [], []>} : vector<8x128xbf16>, vector<128x128xbf16>, vector<8x128xf32> -> vector<8x128xf32>
      %c0_59 = arith.constant 0 : index
      %c0_60 = arith.constant 0 : index
      %104 = vector.load %arg14[%c0_59, %c0_60] : memref<1x128xf32, #tpu.memory_space<vmem>>, vector<1x128xf32>
      %105 = vector.broadcast %104 : vector<1x128xf32> to vector<8x128xf32>
      %106 = arith.addf %103, %105 : vector<8x128xf32>
      %c0_61 = arith.constant 0 : index
      %c0_62 = arith.constant 0 : index
      %107 = vector.load %arg22[%c0_61, %c0_62] : memref<8x128xf32, #tpu.memory_space<vmem>>, vector<8x128xf32>
      tpu.vector_store %arg22[%c0_61, %c0_62], %106 {strides = array<i32>} : memref<8x128xf32, #tpu.memory_space<vmem>>, vector<8x128xf32>,
      %cst_63 = arith.constant 0xFF800000 : f32
      %108 = vector.broadcast %cst_63 : f32 to vector<8x1xf32>
      %c0_64 = arith.constant 0 : index
      %c0_65 = arith.constant 0 : index
      %109 = vector.load %arg23[%c0_64, %c0_65] : memref<8x1xf32, #tpu.memory_space<vmem>>, vector<8x1xf32>
      tpu.vector_store %arg23[%c0_64, %c0_65], %108 {strides = array<i32>} : memref<8x1xf32, #tpu.memory_space<vmem>>, vector<8x1xf32>,
      %cst_66 = arith.constant 0.000000e+00 : f32
      %110 = vector.broadcast %cst_66 : f32 to vector<8x1xf32>
      %c0_67 = arith.constant 0 : index
      %c0_68 = arith.constant 0 : index
      %111 = vector.load %arg24[%c0_67, %c0_68] : memref<8x1xf32, #tpu.memory_space<vmem>>, vector<8x1xf32>
      tpu.vector_store %arg24[%c0_67, %c0_68], %110 {strides = array<i32>} : memref<8x1xf32, #tpu.memory_space<vmem>>, vector<8x1xf32>,
      %cst_69 = arith.constant 0.000000e+00 : f32
      %112 = vector.broadcast %cst_69 : f32 to vector<8x128xf32>
      %c0_70 = arith.constant 0 : index
      %c0_71 = arith.constant 0 : index
      %113 = vector.load %arg25[%c0_70, %c0_71] : memref<8x128xf32, #tpu.memory_space<vmem>>, vector<8x128xf32>
      tpu.vector_store %arg25[%c0_70, %c0_71], %112 {strides = array<i32>} : memref<8x128xf32, #tpu.memory_space<vmem>>, vector<8x128xf32>,
    } else {
    }
    %c0 = arith.constant 0 : index
    %c0_1 = arith.constant 0 : index
    %c0_2 = arith.constant 0 : index
    %3 = vector.load %arg2[%c0, %c0_1, %c0_2] : memref<1x128x512xf32, #tpu.memory_space<vmem>>, vector<1x128x512xf32>
    %4 = vector.shape_cast %3 : vector<1x128x512xf32> to vector<128x512xf32>
    %5 = tpu.transpose %4, [1, 0] : vector<128x512xf32> -> vector<512x128xf32>
    %6 = arith.truncf %5 : vector<512x128xf32> to vector<512x128xbf16>
    %c0_3 = arith.constant 0 : index
    %c0_4 = arith.constant 0 : index
    %7 = vector.load %arg5[%c0_3, %c0_4] : memref<128x128xbf16, #tpu.memory_space<vmem>>, vector<128x128xbf16>
    %cst = arith.constant dense<0.000000e+00> : vector<512x128xf32>
    %8 = tpu.matmul %6, %7, %cst {dimension_numbers = #tpu.dot_dimension_numbers<[1], [0], [0], [1], [0, 0, 1, 1], [], []>} : vector<512x128xbf16>, vector<128x128xbf16>, vector<512x128xf32> -> vector<512x128xf32>
    %c0_5 = arith.constant 0 : index
    %c0_6 = arith.constant 0 : index
    %9 = vector.load %arg6[%c0_5, %c0_6] : memref<1x128xf32, #tpu.memory_space<vmem>>, vector<1x128xf32>
    %10 = vector.broadcast %9 : vector<1x128xf32> to vector<512x128xf32>
    %11 = arith.addf %8, %10 : vector<512x128xf32>
    %cst_7 = arith.constant 5.000000e-01 : f32
    %12 = vector.broadcast %cst_7 : f32 to vector<512x128xf32>
    %13 = arith.mulf %12, %11 : vector<512x128xf32>
    %cst_8 = arith.constant 4.471500e-02 : f32
    %14 = vector.broadcast %cst_8 : f32 to vector<512x128xf32>
    %15 = arith.mulf %14, %11 : vector<512x128xf32>
    %16 = arith.mulf %15, %11 : vector<512x128xf32>
    %17 = arith.mulf %16, %11 : vector<512x128xf32>
    %18 = arith.addf %11, %17 : vector<512x128xf32>
    %cst_9 = arith.constant 0.797884583 : f32
    %19 = vector.broadcast %cst_9 : f32 to vector<512x128xf32>
    %20 = arith.mulf %19, %18 : vector<512x128xf32>
    %21 = math.tanh %20 : vector<512x128xf32>
    %cst_10 = arith.constant 1.000000e+00 : f32
    %22 = vector.broadcast %cst_10 : f32 to vector<512x128xf32>
    %23 = arith.addf %22, %21 : vector<512x128xf32>
    %24 = arith.mulf %13, %23 : vector<512x128xf32>
    %25 = arith.truncf %24 : vector<512x128xf32> to vector<512x128xbf16>
    %c0_11 = arith.constant 0 : index
    %c0_12 = arith.constant 0 : index
    %26 = vector.load %arg7[%c0_11, %c0_12] : memref<128x128xbf16, #tpu.memory_space<vmem>>, vector<128x128xbf16>
    %cst_13 = arith.constant dense<0.000000e+00> : vector<512x128xf32>
    %27 = tpu.matmul %25, %26, %cst_13 {dimension_numbers = #tpu.dot_dimension_numbers<[1], [0], [0], [1], [0, 0, 1, 1], [], []>} : vector<512x128xbf16>, vector<128x128xbf16>, vector<512x128xf32> -> vector<512x128xf32>
    %c0_14 = arith.constant 0 : index
    %c0_15 = arith.constant 0 : index
    %28 = vector.load %arg8[%c0_14, %c0_15] : memref<1x128xf32, #tpu.memory_space<vmem>>, vector<1x128xf32>
    %29 = vector.broadcast %28 : vector<1x128xf32> to vector<512x128xf32>
    %30 = arith.addf %27, %29 : vector<512x128xf32>
    %c0_16 = arith.constant 0 : index
    %c0_17 = arith.constant 0 : index
    %31 = vector.load %arg9[%c0_16, %c0_17] : memref<1x128xf32, #tpu.memory_space<vmem>>, vector<1x128xf32>
    %c0_18 = arith.constant 0 : index
    %c0_19 = arith.constant 0 : index
    %32 = vector.load %arg10[%c0_18, %c0_19] : memref<1x128xf32, #tpu.memory_space<vmem>>, vector<1x128xf32>
    %cst_20 = arith.constant dense<0.000000e+00> : vector<512xf32>
    %33 = vector.multi_reduction <add>, %30, %cst_20 [1] : vector<512x128xf32> to vector<512xf32>
    %34 = vector.shape_cast %33 : vector<512xf32> to vector<512x1xf32>
    %cst_21 = arith.constant 1.280000e+02 : f32
    %35 = vector.broadcast %cst_21 : f32 to vector<512x1xf32>
    %36 = arith.divf %34, %35 : vector<512x1xf32>
    %37 = vector.broadcast %36 : vector<512x1xf32> to vector<512x128xf32>
    %38 = arith.subf %30, %37 : vector<512x128xf32>
    %39 = arith.mulf %38, %38 : vector<512x128xf32>
    %cst_22 = arith.constant dense<0.000000e+00> : vector<512xf32>
    %40 = vector.multi_reduction <add>, %39, %cst_22 [1] : vector<512x128xf32> to vector<512xf32>
    %41 = vector.shape_cast %40 : vector<512xf32> to vector<512x1xf32>
    %cst_23 = arith.constant 1.280000e+02 : f32
    %42 = vector.broadcast %cst_23 : f32 to vector<512x1xf32>
    %43 = arith.divf %41, %42 : vector<512x1xf32>
    %44 = vector.broadcast %36 : vector<512x1xf32> to vector<512x128xf32>
    %45 = arith.subf %30, %44 : vector<512x128xf32>
    %cst_24 = arith.constant 9.99999974E-6 : f32
    %46 = vector.broadcast %cst_24 : f32 to vector<512x1xf32>
    %47 = arith.addf %43, %46 : vector<512x1xf32>
    %48 = math.rsqrt %47 : vector<512x1xf32>
    %49 = vector.broadcast %48 : vector<512x1xf32> to vector<512x128xf32>
    %50 = arith.mulf %45, %49 : vector<512x128xf32>
    %51 = vector.broadcast %31 : vector<1x128xf32> to vector<512x128xf32>
    %52 = arith.mulf %50, %51 : vector<512x128xf32>
    %53 = vector.broadcast %32 : vector<1x128xf32> to vector<512x128xf32>
    %54 = arith.addf %52, %53 : vector<512x128xf32>
    %55 = arith.truncf %54 : vector<512x128xf32> to vector<512x128xbf16>
    %c0_25 = arith.constant 0 : index
    %c0_26 = arith.constant 0 : index
    %56 = vector.load %arg11[%c0_25, %c0_26] : memref<128x256xbf16, #tpu.memory_space<vmem>>, vector<128x256xbf16>
    %cst_27 = arith.constant dense<0.000000e+00> : vector<512x256xf32>
    %57 = tpu.matmul %55, %56, %cst_27 {dimension_numbers = #tpu.dot_dimension_numbers<[1], [0], [0], [1], [0, 0, 1, 1], [], []>} : vector<512x128xbf16>, vector<128x256xbf16>, vector<512x256xf32> -> vector<512x256xf32>
    %c0_28 = arith.constant 0 : index
    %c0_29 = arith.constant 0 : index
    %58 = vector.load %arg12[%c0_28, %c0_29] : memref<1x256xf32, #tpu.memory_space<vmem>>, vector<1x256xf32>
    %59 = vector.broadcast %58 : vector<1x256xf32> to vector<512x256xf32>
    %60 = arith.addf %57, %59 : vector<512x256xf32>
    %61 = vector.extract_strided_slice %60 {offsets = [0, 0], sizes = [512, 128], strides = [1, 1]} : vector<512x256xf32> to vector<512x128xf32>
    %62 = arith.truncf %61 : vector<512x128xf32> to vector<512x128xbf16>
    %63 = vector.extract_strided_slice %60 {offsets = [0, 128], sizes = [512, 128], strides = [1, 1]} : vector<512x256xf32> to vector<512x128xf32>
    %64 = arith.truncf %63 : vector<512x128xf32> to vector<512x128xbf16>
    %c0_30 = arith.constant 0 : index
    %c0_31 = arith.constant 0 : index
    %65 = vector.load %arg22[%c0_30, %c0_31] : memref<8x128xf32, #tpu.memory_space<vmem>>, vector<8x128xf32>
    %66 = arith.truncf %65 : vector<8x128xf32> to vector<8x128xbf16>
    "tpu.trace_start"() <{level = 10 : i32, message = "le,se->ls"}> : () -> ()
    %cst_32 = arith.constant dense<0.000000e+00> : vector<8x512xf32>
    %67 = tpu.matmul %66, %62, %cst_32 {dimension_numbers = #tpu.dot_dimension_numbers<[1], [1], [0], [0], [0, 0, 1, 0], [], []>} : vector<8x128xbf16>, vector<512x128xbf16>, vector<8x512xf32> -> vector<8x512xf32>
    "tpu.trace_stop"() : () -> ()
    %cst_33 = arith.constant 0.0883883461 : f32
    %68 = vector.broadcast %cst_33 : f32 to vector<8x512xf32>
    %69 = arith.mulf %67, %68 : vector<8x512xf32>
    %c0_34 = arith.constant 0 : index
    %c0_35 = arith.constant 0 : index
    %c0_36 = arith.constant 0 : index
    %70 = vector.load %arg4[%c0_34, %c0_35, %c0_36] : memref<1x8x512xf32, #tpu.memory_space<vmem>>, vector<1x8x512xf32>
    %71 = vector.shape_cast %70 : vector<1x8x512xf32> to vector<8x512xf32>
    %72 = arith.addf %69, %71 : vector<8x512xf32>
    %c0_37 = arith.constant 0 : index
    %c0_38 = arith.constant 0 : index
    %73 = vector.load %arg23[%c0_37, %c0_38] : memref<8x1xf32, #tpu.memory_space<vmem>>, vector<8x1xf32>
    %cst_39 = arith.constant dense<0xFF800000> : vector<8xf32>
    %74 = vector.multi_reduction <maximumf>, %72, %cst_39 [1] : vector<8x512xf32> to vector<8xf32>
    %75 = vector.shape_cast %74 : vector<8xf32> to vector<8x1xf32>
    %76 = arith.maximumf %73, %75 : vector<8x1xf32>
    %77 = arith.subf %73, %76 : vector<8x1xf32>
    %78 = math.exp %77 : vector<8x1xf32>
    %79 = vector.broadcast %76 : vector<8x1xf32> to vector<8x512xf32>
    %80 = arith.subf %72, %79 : vector<8x512xf32>
    %81 = math.exp %80 : vector<8x512xf32>
    %c0_40 = arith.constant 0 : index
    %c0_41 = arith.constant 0 : index
    %82 = vector.load %arg24[%c0_40, %c0_41] : memref<8x1xf32, #tpu.memory_space<vmem>>, vector<8x1xf32>
    %83 = arith.mulf %78, %82 : vector<8x1xf32>
    %cst_42 = arith.constant dense<0.000000e+00> : vector<8xf32>
    %84 = vector.multi_reduction <add>, %81, %cst_42 [1] : vector<8x512xf32> to vector<8xf32>
    %85 = vector.shape_cast %84 : vector<8xf32> to vector<8x1xf32>
    %86 = arith.addf %83, %85 : vector<8x1xf32>
    %c0_43 = arith.constant 0 : index
    %c0_44 = arith.constant 0 : index
    %87 = vector.load %arg24[%c0_43, %c0_44] : memref<8x1xf32, #tpu.memory_space<vmem>>, vector<8x1xf32>
    tpu.vector_store %arg24[%c0_43, %c0_44], %86 {strides = array<i32>} : memref<8x1xf32, #tpu.memory_space<vmem>>, vector<8x1xf32>,
    %c0_45 = arith.constant 0 : index
    %c0_46 = arith.constant 0 : index
    %88 = vector.load %arg25[%c0_45, %c0_46] : memref<8x128xf32, #tpu.memory_space<vmem>>, vector<8x128xf32>
    %89 = vector.broadcast %78 : vector<8x1xf32> to vector<8x128xf32>
    %90 = arith.mulf %89, %88 : vector<8x128xf32>
    %91 = arith.truncf %81 : vector<8x512xf32> to vector<8x512xbf16>
    %cst_47 = arith.constant dense<0.000000e+00> : vector<8x128xf32>
    %92 = tpu.matmul %91, %64, %cst_47 {dimension_numbers = #tpu.dot_dimension_numbers<[1], [0], [0], [1], [0, 0, 1, 1], [], []>} : vector<8x512xbf16>, vector<512x128xbf16>, vector<8x128xf32> -> vector<8x128xf32>
    %93 = arith.addf %90, %92 : vector<8x128xf32>
    %c0_48 = arith.constant 0 : index
    %c0_49 = arith.constant 0 : index
    %94 = vector.load %arg25[%c0_48, %c0_49] : memref<8x128xf32, #tpu.memory_space<vmem>>, vector<8x128xf32>
    tpu.vector_store %arg25[%c0_48, %c0_49], %93 {strides = array<i32>} : memref<8x128xf32, #tpu.memory_space<vmem>>, vector<8x128xf32>,
    %c0_50 = arith.constant 0 : index
    %c0_51 = arith.constant 0 : index
    %95 = vector.load %arg23[%c0_50, %c0_51] : memref<8x1xf32, #tpu.memory_space<vmem>>, vector<8x1xf32>
    tpu.vector_store %arg23[%c0_50, %c0_51], %76 {strides = array<i32>} : memref<8x1xf32, #tpu.memory_space<vmem>>, vector<8x1xf32>,
    %c1_i32 = arith.constant 1 : i32
    %96 = arith.cmpi eq, %arg1, %c1_i32 : i32
    %97 = arith.extui %96 : i1 to i32
    %c0_i32_52 = arith.constant 0 : i32
    %98 = arith.cmpi ne, %97, %c0_i32_52 : i32
    scf.if %98 {
      %c0_53 = arith.constant 0 : index
      %c0_54 = arith.constant 0 : index
      %99 = vector.load %arg25[%c0_53, %c0_54] : memref<8x128xf32, #tpu.memory_space<vmem>>, vector<8x128xf32>
      %c0_55 = arith.constant 0 : index
      %c0_56 = arith.constant 0 : index
      %100 = vector.load %arg24[%c0_55, %c0_56] : memref<8x1xf32, #tpu.memory_space<vmem>>, vector<8x1xf32>
      %101 = tpu.reciprocal %100 {approx = true} : vector<8x1xf32> -> vector<8x1xf32>
      %102 = vector.broadcast %101 : vector<8x1xf32> to vector<8x128xf32>
      %103 = arith.mulf %99, %102 : vector<8x128xf32>
      %104 = arith.truncf %103 : vector<8x128xf32> to vector<8x128xbf16>
      %c0_57 = arith.constant 0 : index
      %c0_58 = arith.constant 0 : index
      %105 = vector.load %arg15[%c0_57, %c0_58] : memref<128x128xbf16, #tpu.memory_space<vmem>>, vector<128x128xbf16>
      %cst_59 = arith.constant dense<0.000000e+00> : vector<8x128xf32>
      %106 = tpu.matmul %104, %105, %cst_59 {dimension_numbers = #tpu.dot_dimension_numbers<[1], [0], [0], [1], [0, 0, 1, 1], [], []>} : vector<8x128xbf16>, vector<128x128xbf16>, vector<8x128xf32> -> vector<8x128xf32>
      %c0_60 = arith.constant 0 : index
      %c0_61 = arith.constant 0 : index
      %107 = vector.load %arg16[%c0_60, %c0_61] : memref<1x128xf32, #tpu.memory_space<vmem>>, vector<1x128xf32>
      %108 = vector.broadcast %107 : vector<1x128xf32> to vector<8x128xf32>
      %109 = arith.addf %106, %108 : vector<8x128xf32>
      %c0_62 = arith.constant 0 : index
      %c0_63 = arith.constant 0 : index
      %c0_64 = arith.constant 0 : index
      %110 = vector.load %arg3[%c0_62, %c0_63, %c0_64] : memref<1x8x128xf32, #tpu.memory_space<vmem>>, vector<1x8x128xf32>
      %111 = vector.shape_cast %110 : vector<1x8x128xf32> to vector<8x128xf32>
      %112 = arith.addf %109, %111 : vector<8x128xf32>
      %c0_65 = arith.constant 0 : index
      %c0_66 = arith.constant 0 : index
      %113 = vector.load %arg17[%c0_65, %c0_66] : memref<1x128xf32, #tpu.memory_space<vmem>>, vector<1x128xf32>
      %c0_67 = arith.constant 0 : index
      %c0_68 = arith.constant 0 : index
      %114 = vector.load %arg18[%c0_67, %c0_68] : memref<1x128xf32, #tpu.memory_space<vmem>>, vector<1x128xf32>
      %cst_69 = arith.constant dense<0.000000e+00> : vector<8xf32>
      %115 = vector.multi_reduction <add>, %112, %cst_69 [1] : vector<8x128xf32> to vector<8xf32>
      %116 = vector.shape_cast %115 : vector<8xf32> to vector<8x1xf32>
      %cst_70 = arith.constant 1.280000e+02 : f32
      %117 = vector.broadcast %cst_70 : f32 to vector<8x1xf32>
      %118 = arith.divf %116, %117 : vector<8x1xf32>
      %119 = vector.broadcast %118 : vector<8x1xf32> to vector<8x128xf32>
      %120 = arith.subf %112, %119 : vector<8x128xf32>
      %121 = arith.mulf %120, %120 : vector<8x128xf32>
      %cst_71 = arith.constant dense<0.000000e+00> : vector<8xf32>
      %122 = vector.multi_reduction <add>, %121, %cst_71 [1] : vector<8x128xf32> to vector<8xf32>
      %123 = vector.shape_cast %122 : vector<8xf32> to vector<8x1xf32>
      %cst_72 = arith.constant 1.280000e+02 : f32
      %124 = vector.broadcast %cst_72 : f32 to vector<8x1xf32>
      %125 = arith.divf %123, %124 : vector<8x1xf32>
      %126 = vector.broadcast %118 : vector<8x1xf32> to vector<8x128xf32>
      %127 = arith.subf %112, %126 : vector<8x128xf32>
      %cst_73 = arith.constant 9.99999974E-6 : f32
      %128 = vector.broadcast %cst_73 : f32 to vector<8x1xf32>
      %129 = arith.addf %125, %128 : vector<8x1xf32>
      %130 = math.rsqrt %129 : vector<8x1xf32>
      %131 = vector.broadcast %130 : vector<8x1xf32> to vector<8x128xf32>
      %132 = arith.mulf %127, %131 : vector<8x128xf32>
      %133 = vector.broadcast %113 : vector<1x128xf32> to vector<8x128xf32>
      %134 = arith.mulf %132, %133 : vector<8x128xf32>
      %135 = vector.broadcast %114 : vector<1x128xf32> to vector<8x128xf32>
      %136 = arith.addf %134, %135 : vector<8x128xf32>
      %137 = arith.truncf %136 : vector<8x128xf32> to vector<8x128xbf16>
      %c0_74 = arith.constant 0 : index
      %c0_75 = arith.constant 0 : index
      %138 = vector.load %arg19[%c0_74, %c0_75] : memref<128x128xbf16, #tpu.memory_space<vmem>>, vector<128x128xbf16>
      %cst_76 = arith.constant dense<0.000000e+00> : vector<8x128xf32>
      %139 = tpu.matmul %137, %138, %cst_76 {dimension_numbers = #tpu.dot_dimension_numbers<[1], [0], [0], [1], [0, 0, 1, 1], [], []>} : vector<8x128xbf16>, vector<128x128xbf16>, vector<8x128xf32> -> vector<8x128xf32>
      %c0_77 = arith.constant 0 : index
      %c0_78 = arith.constant 0 : index
      %140 = vector.load %arg20[%c0_77, %c0_78] : memref<1x128xf32, #tpu.memory_space<vmem>>, vector<1x128xf32>
      %141 = vector.broadcast %140 : vector<1x128xf32> to vector<8x128xf32>
      %142 = arith.addf %139, %141 : vector<8x128xf32>
      %c0_79 = arith.constant 0 : index
      %c0_80 = arith.constant 0 : index
      %c0_81 = arith.constant 0 : index
      %143 = vector.load %arg21[%c0_79, %c0_80, %c0_81] : memref<1x8x128xf32, #tpu.memory_space<vmem>>, vector<1x8x128xf32>
      %144 = vector.shape_cast %143 : vector<1x8x128xf32> to vector<8x128xf32>
      %145 = vector.shape_cast %142 : vector<8x128xf32> to vector<1x8x128xf32>
      tpu.vector_store %arg21[%c0_79, %c0_80, %c0_81], %145 {strides = array<i32>} : memref<1x8x128xf32, #tpu.memory_space<vmem>>, vector<1x8x128xf32>,
    } else {
    }
    return
  }
  func.func @transform_0(%arg0: i32, %arg1: i32) -> (i32, i32, i32) {
    %c0_i32 = arith.constant 0 : i32
    %c0_i32_0 = arith.constant 0 : i32
    return %arg0, %c0_i32, %arg1 : i32, i32, i32
  }
  func.func @transform_1(%arg0: i32, %arg1: i32) -> (i32, i32, i32) {
    %c0_i32 = arith.constant 0 : i32
    %c0_i32_0 = arith.constant 0 : i32
    %c0_i32_1 = arith.constant 0 : i32
    return %arg0, %c0_i32, %c0_i32_0 : i32, i32, i32
  }
  func.func @transform_2(%arg0: i32, %arg1: i32) -> (i32, i32, i32) {
    %c0_i32 = arith.constant 0 : i32
    %c0_i32_0 = arith.constant 0 : i32
    return %arg0, %c0_i32, %arg1 : i32, i32, i32
  }
  func.func @transform_3(%arg0: i32, %arg1: i32) -> (i32, i32) {
    %c0_i32 = arith.constant 0 : i32
    %c0_i32_0 = arith.constant 0 : i32
    %c0_i32_1 = arith.constant 0 : i32
    return %c0_i32, %c0_i32_0 : i32, i32
  }
  func.func @transform_4(%arg0: i32, %arg1: i32) -> (i32, i32) {
    %c0_i32 = arith.constant 0 : i32
    %c0_i32_0 = arith.constant 0 : i32
    %c0_i32_1 = arith.constant 0 : i32
    return %c0_i32, %c0_i32_0 : i32, i32
  }
  func.func @transform_5(%arg0: i32, %arg1: i32) -> (i32, i32) {
    %c0_i32 = arith.constant 0 : i32
    %c0_i32_0 = arith.constant 0 : i32
    %c0_i32_1 = arith.constant 0 : i32
    return %c0_i32, %c0_i32_0 : i32, i32
  }
  func.func @transform_6(%arg0: i32, %arg1: i32) -> (i32, i32) {
    %c0_i32 = arith.constant 0 : i32
    %c0_i32_0 = arith.constant 0 : i32
    %c0_i32_1 = arith.constant 0 : i32
    return %c0_i32, %c0_i32_0 : i32, i32
  }
  func.func @transform_7(%arg0: i32, %arg1: i32) -> (i32, i32) {
    %c0_i32 = arith.constant 0 : i32
    %c0_i32_0 = arith.constant 0 : i32
    %c0_i32_1 = arith.constant 0 : i32
    return %c0_i32, %c0_i32_0 : i32, i32
  }
  func.func @transform_8(%arg0: i32, %arg1: i32) -> (i32, i32) {
    %c0_i32 = arith.constant 0 : i32
    %c0_i32_0 = arith.constant 0 : i32
    %c0_i32_1 = arith.constant 0 : i32
    return %c0_i32, %c0_i32_0 : i32, i32
  }
  func.func @transform_9(%arg0: i32, %arg1: i32) -> (i32, i32) {
    %c0_i32 = arith.constant 0 : i32
    %c0_i32_0 = arith.constant 0 : i32
    %c0_i32_1 = arith.constant 0 : i32
    return %c0_i32, %c0_i32_0 : i32, i32
  }
  func.func @transform_10(%arg0: i32, %arg1: i32) -> (i32, i32) {
    %c0_i32 = arith.constant 0 : i32
    %c0_i32_0 = arith.constant 0 : i32
    %c0_i32_1 = arith.constant 0 : i32
    return %c0_i32, %c0_i32_0 : i32, i32
  }
  func.func @transform_11(%arg0: i32, %arg1: i32) -> (i32, i32) {
    %c0_i32 = arith.constant 0 : i32
    %c0_i32_0 = arith.constant 0 : i32
    %c0_i32_1 = arith.constant 0 : i32
    return %c0_i32, %c0_i32_0 : i32, i32
  }
  func.func @transform_12(%arg0: i32, %arg1: i32) -> (i32, i32) {
    %c0_i32 = arith.constant 0 : i32
    %c0_i32_0 = arith.constant 0 : i32
    %c0_i32_1 = arith.constant 0 : i32
    return %c0_i32, %c0_i32_0 : i32, i32
  }
  func.func @transform_13(%arg0: i32, %arg1: i32) -> (i32, i32) {
    %c0_i32 = arith.constant 0 : i32
    %c0_i32_0 = arith.constant 0 : i32
    %c0_i32_1 = arith.constant 0 : i32
    return %c0_i32, %c0_i32_0 : i32, i32
  }
  func.func @transform_14(%arg0: i32, %arg1: i32) -> (i32, i32) {
    %c0_i32 = arith.constant 0 : i32
    %c0_i32_0 = arith.constant 0 : i32
    %c0_i32_1 = arith.constant 0 : i32
    return %c0_i32, %c0_i32_0 : i32, i32
  }
  func.func @transform_15(%arg0: i32, %arg1: i32) -> (i32, i32) {
    %c0_i32 = arith.constant 0 : i32
    %c0_i32_0 = arith.constant 0 : i32
    %c0_i32_1 = arith.constant 0 : i32
    return %c0_i32, %c0_i32_0 : i32, i32
  }
  func.func @transform_16(%arg0: i32, %arg1: i32) -> (i32, i32) {
    %c0_i32 = arith.constant 0 : i32
    %c0_i32_0 = arith.constant 0 : i32
    %c0_i32_1 = arith.constant 0 : i32
    return %c0_i32, %c0_i32_0 : i32, i32
  }
  func.func @transform_17(%arg0: i32, %arg1: i32) -> (i32, i32) {
    %c0_i32 = arith.constant 0 : i32
    %c0_i32_0 = arith.constant 0 : i32
    %c0_i32_1 = arith.constant 0 : i32
    return %c0_i32, %c0_i32_0 : i32, i32
  }
  func.func @transform_18(%arg0: i32, %arg1: i32) -> (i32, i32) {
    %c0_i32 = arith.constant 0 : i32
    %c0_i32_0 = arith.constant 0 : i32
    %c0_i32_1 = arith.constant 0 : i32
    return %c0_i32, %c0_i32_0 : i32, i32
  }
  func.func @transform_19(%arg0: i32, %arg1: i32) -> (i32, i32, i32) {
    %c0_i32 = arith.constant 0 : i32
    %c0_i32_0 = arith.constant 0 : i32
    %c0_i32_1 = arith.constant 0 : i32
    return %arg0, %c0_i32, %c0_i32_0 : i32, i32, i32
  }
}

module attributes {stable_mosaic.version = 11 : i64} {
  func.func @mask_branch_kernel(%arg0: i32, %arg1: memref<16x1024xbf16, #tpu.memory_space<vmem>>, %arg2: memref<16x128xf32, #tpu.memory_space<vmem>>, %arg3: memref<1024x128xbf16, #tpu.memory_space<vmem>>, %arg4: memref<1x128xf32, #tpu.memory_space<vmem>>, %arg5: memref<1x128xf32, #tpu.memory_space<vmem>>, %arg6: memref<1x128xf32, #tpu.memory_space<vmem>>, %arg7: memref<128x128xbf16, #tpu.memory_space<vmem>>, %arg8: memref<1x128xf32, #tpu.memory_space<vmem>>, %arg9: memref<128x128xbf16, #tpu.memory_space<vmem>>, %arg10: memref<1x128xf32, #tpu.memory_space<vmem>>, %arg11: memref<16x128xf32, #tpu.memory_space<vmem>>) attributes {dimension_semantics = [#tpu.dimension_semantics<parallel>], iteration_bounds = array<i64: 1>, scalar_prefetch = 0 : i64, scratch_operands = 0 : i64, tpu.core_type = #tpu.core_type<tc>, window_params = [{transform_indices = @transform_0, window_bounds = array<i64: 16, 1024>}, {transform_indices = @transform_1, window_bounds = array<i64: 16, 128>}, {pipeline_mode = #tpu.pipeline_mode<synchronous>, transform_indices = @transform_2, window_bounds = array<i64: 1024, 128>}, {pipeline_mode = #tpu.pipeline_mode<synchronous>, transform_indices = @transform_3, window_bounds = array<i64: 1, 128>}, {pipeline_mode = #tpu.pipeline_mode<synchronous>, transform_indices = @transform_4, window_bounds = array<i64: 1, 128>}, {pipeline_mode = #tpu.pipeline_mode<synchronous>, transform_indices = @transform_5, window_bounds = array<i64: 1, 128>}, {pipeline_mode = #tpu.pipeline_mode<synchronous>, transform_indices = @transform_6, window_bounds = array<i64: 128, 128>}, {pipeline_mode = #tpu.pipeline_mode<synchronous>, transform_indices = @transform_7, window_bounds = array<i64: 1, 128>}, {pipeline_mode = #tpu.pipeline_mode<synchronous>, transform_indices = @transform_8, window_bounds = array<i64: 128, 128>}, {pipeline_mode = #tpu.pipeline_mode<synchronous>, transform_indices = @transform_9, window_bounds = array<i64: 1, 128>}, {transform_indices = @transform_10, window_bounds = array<i64: 16, 128>}]} {
    %c0 = arith.constant 0 : index
    %c0_0 = arith.constant 0 : index
    %0 = vector.load %arg1[%c0, %c0_0] : memref<16x1024xbf16, #tpu.memory_space<vmem>>, vector<16x1024xbf16>
    %c0_1 = arith.constant 0 : index
    %c0_2 = arith.constant 0 : index
    %1 = vector.load %arg3[%c0_1, %c0_2] : memref<1024x128xbf16, #tpu.memory_space<vmem>>, vector<1024x128xbf16>
    %cst = arith.constant dense<0.000000e+00> : vector<16x128xf32>
    %2 = tpu.matmul %0, %1, %cst {dimension_numbers = #tpu.dot_dimension_numbers<[1], [0], [0], [1], [0, 0, 1, 1], [], []>} : vector<16x1024xbf16>, vector<1024x128xbf16>, vector<16x128xf32> -> vector<16x128xf32>
    %c0_3 = arith.constant 0 : index
    %c0_4 = arith.constant 0 : index
    %3 = vector.load %arg4[%c0_3, %c0_4] : memref<1x128xf32, #tpu.memory_space<vmem>>, vector<1x128xf32>
    %4 = vector.broadcast %3 : vector<1x128xf32> to vector<16x128xf32>
    %5 = arith.addf %2, %4 : vector<16x128xf32>
    %c0_5 = arith.constant 0 : index
    %c0_6 = arith.constant 0 : index
    %6 = vector.load %arg2[%c0_5, %c0_6] : memref<16x128xf32, #tpu.memory_space<vmem>>, vector<16x128xf32>
    %7 = arith.addf %6, %5 : vector<16x128xf32>
    %c0_7 = arith.constant 0 : index
    %c0_8 = arith.constant 0 : index
    %8 = vector.load %arg5[%c0_7, %c0_8] : memref<1x128xf32, #tpu.memory_space<vmem>>, vector<1x128xf32>
    %c0_9 = arith.constant 0 : index
    %c0_10 = arith.constant 0 : index
    %9 = vector.load %arg6[%c0_9, %c0_10] : memref<1x128xf32, #tpu.memory_space<vmem>>, vector<1x128xf32>
    %cst_11 = arith.constant dense<0.000000e+00> : vector<16xf32>
    %10 = vector.multi_reduction <add>, %7, %cst_11 [1] : vector<16x128xf32> to vector<16xf32>
    %11 = vector.shape_cast %10 : vector<16xf32> to vector<16x1xf32>
    %cst_12 = arith.constant 1.280000e+02 : f32
    %12 = vector.broadcast %cst_12 : f32 to vector<16x1xf32>
    %13 = arith.divf %11, %12 : vector<16x1xf32>
    %14 = vector.broadcast %13 : vector<16x1xf32> to vector<16x128xf32>
    %15 = arith.subf %7, %14 : vector<16x128xf32>
    %16 = arith.mulf %15, %15 : vector<16x128xf32>
    %cst_13 = arith.constant dense<0.000000e+00> : vector<16xf32>
    %17 = vector.multi_reduction <add>, %16, %cst_13 [1] : vector<16x128xf32> to vector<16xf32>
    %18 = vector.shape_cast %17 : vector<16xf32> to vector<16x1xf32>
    %cst_14 = arith.constant 1.280000e+02 : f32
    %19 = vector.broadcast %cst_14 : f32 to vector<16x1xf32>
    %20 = arith.divf %18, %19 : vector<16x1xf32>
    %21 = vector.broadcast %13 : vector<16x1xf32> to vector<16x128xf32>
    %22 = arith.subf %7, %21 : vector<16x128xf32>
    %cst_15 = arith.constant 9.99999974E-6 : f32
    %23 = vector.broadcast %cst_15 : f32 to vector<16x1xf32>
    %24 = arith.addf %20, %23 : vector<16x1xf32>
    %25 = math.rsqrt %24 : vector<16x1xf32>
    %26 = vector.broadcast %25 : vector<16x1xf32> to vector<16x128xf32>
    %27 = arith.mulf %22, %26 : vector<16x128xf32>
    %28 = vector.broadcast %8 : vector<1x128xf32> to vector<16x128xf32>
    %29 = arith.mulf %27, %28 : vector<16x128xf32>
    %30 = vector.broadcast %9 : vector<1x128xf32> to vector<16x128xf32>
    %31 = arith.addf %29, %30 : vector<16x128xf32>
    %32 = arith.truncf %31 : vector<16x128xf32> to vector<16x128xbf16>
    %c0_16 = arith.constant 0 : index
    %c0_17 = arith.constant 0 : index
    %33 = vector.load %arg7[%c0_16, %c0_17] : memref<128x128xbf16, #tpu.memory_space<vmem>>, vector<128x128xbf16>
    %cst_18 = arith.constant dense<0.000000e+00> : vector<16x128xf32>
    %34 = tpu.matmul %32, %33, %cst_18 {dimension_numbers = #tpu.dot_dimension_numbers<[1], [0], [0], [1], [0, 0, 1, 1], [], []>} : vector<16x128xbf16>, vector<128x128xbf16>, vector<16x128xf32> -> vector<16x128xf32>
    %c0_19 = arith.constant 0 : index
    %c0_20 = arith.constant 0 : index
    %35 = vector.load %arg8[%c0_19, %c0_20] : memref<1x128xf32, #tpu.memory_space<vmem>>, vector<1x128xf32>
    %36 = vector.broadcast %35 : vector<1x128xf32> to vector<16x128xf32>
    %37 = arith.addf %34, %36 : vector<16x128xf32>
    %cst_21 = arith.constant 5.000000e-01 : f32
    %38 = vector.broadcast %cst_21 : f32 to vector<16x128xf32>
    %39 = arith.mulf %38, %37 : vector<16x128xf32>
    %cst_22 = arith.constant 4.471500e-02 : f32
    %40 = vector.broadcast %cst_22 : f32 to vector<16x128xf32>
    %41 = arith.mulf %40, %37 : vector<16x128xf32>
    %42 = arith.mulf %41, %37 : vector<16x128xf32>
    %43 = arith.mulf %42, %37 : vector<16x128xf32>
    %44 = arith.addf %37, %43 : vector<16x128xf32>
    %cst_23 = arith.constant 0.797884583 : f32
    %45 = vector.broadcast %cst_23 : f32 to vector<16x128xf32>
    %46 = arith.mulf %45, %44 : vector<16x128xf32>
    %47 = math.tanh %46 : vector<16x128xf32>
    %cst_24 = arith.constant 1.000000e+00 : f32
    %48 = vector.broadcast %cst_24 : f32 to vector<16x128xf32>
    %49 = arith.addf %48, %47 : vector<16x128xf32>
    %50 = arith.mulf %39, %49 : vector<16x128xf32>
    %51 = arith.truncf %50 : vector<16x128xf32> to vector<16x128xbf16>
    %c0_25 = arith.constant 0 : index
    %c0_26 = arith.constant 0 : index
    %52 = vector.load %arg9[%c0_25, %c0_26] : memref<128x128xbf16, #tpu.memory_space<vmem>>, vector<128x128xbf16>
    %cst_27 = arith.constant dense<0.000000e+00> : vector<16x128xf32>
    %53 = tpu.matmul %51, %52, %cst_27 {dimension_numbers = #tpu.dot_dimension_numbers<[1], [0], [0], [1], [0, 0, 1, 1], [], []>} : vector<16x128xbf16>, vector<128x128xbf16>, vector<16x128xf32> -> vector<16x128xf32>
    %c0_28 = arith.constant 0 : index
    %c0_29 = arith.constant 0 : index
    %54 = vector.load %arg10[%c0_28, %c0_29] : memref<1x128xf32, #tpu.memory_space<vmem>>, vector<1x128xf32>
    %55 = vector.broadcast %54 : vector<1x128xf32> to vector<16x128xf32>
    %56 = arith.addf %53, %55 : vector<16x128xf32>
    %c0_30 = arith.constant 0 : index
    %c0_31 = arith.constant 0 : index
    %57 = vector.load %arg11[%c0_30, %c0_31] : memref<16x128xf32, #tpu.memory_space<vmem>>, vector<16x128xf32>
    tpu.vector_store %arg11[%c0_30, %c0_31], %56 {strides = array<i32>} : memref<16x128xf32, #tpu.memory_space<vmem>>, vector<16x128xf32>,
    return
  }
  func.func @transform_0(%arg0: i32) -> (i32, i32) {
    %c0_i32 = arith.constant 0 : i32
    %c0_i32_0 = arith.constant 0 : i32
    return %arg0, %c0_i32 : i32, i32
  }
  func.func @transform_1(%arg0: i32) -> (i32, i32) {
    %c0_i32 = arith.constant 0 : i32
    %c0_i32_0 = arith.constant 0 : i32
    return %arg0, %c0_i32 : i32, i32
  }
  func.func @transform_2(%arg0: i32) -> (i32, i32) {
    %c0_i32 = arith.constant 0 : i32
    %c0_i32_0 = arith.constant 0 : i32
    %c0_i32_1 = arith.constant 0 : i32
    return %c0_i32, %c0_i32_0 : i32, i32
  }
  func.func @transform_3(%arg0: i32) -> (i32, i32) {
    %c0_i32 = arith.constant 0 : i32
    %c0_i32_0 = arith.constant 0 : i32
    %c0_i32_1 = arith.constant 0 : i32
    return %c0_i32, %c0_i32_0 : i32, i32
  }
  func.func @transform_4(%arg0: i32) -> (i32, i32) {
    %c0_i32 = arith.constant 0 : i32
    %c0_i32_0 = arith.constant 0 : i32
    %c0_i32_1 = arith.constant 0 : i32
    return %c0_i32, %c0_i32_0 : i32, i32
  }
  func.func @transform_5(%arg0: i32) -> (i32, i32) {
    %c0_i32 = arith.constant 0 : i32
    %c0_i32_0 = arith.constant 0 : i32
    %c0_i32_1 = arith.constant 0 : i32
    return %c0_i32, %c0_i32_0 : i32, i32
  }
  func.func @transform_6(%arg0: i32) -> (i32, i32) {
    %c0_i32 = arith.constant 0 : i32
    %c0_i32_0 = arith.constant 0 : i32
    %c0_i32_1 = arith.constant 0 : i32
    return %c0_i32, %c0_i32_0 : i32, i32
  }
  func.func @transform_7(%arg0: i32) -> (i32, i32) {
    %c0_i32 = arith.constant 0 : i32
    %c0_i32_0 = arith.constant 0 : i32
    %c0_i32_1 = arith.constant 0 : i32
    return %c0_i32, %c0_i32_0 : i32, i32
  }
  func.func @transform_8(%arg0: i32) -> (i32, i32) {
    %c0_i32 = arith.constant 0 : i32
    %c0_i32_0 = arith.constant 0 : i32
    %c0_i32_1 = arith.constant 0 : i32
    return %c0_i32, %c0_i32_0 : i32, i32
  }
  func.func @transform_9(%arg0: i32) -> (i32, i32) {
    %c0_i32 = arith.constant 0 : i32
    %c0_i32_0 = arith.constant 0 : i32
    %c0_i32_1 = arith.constant 0 : i32
    return %c0_i32, %c0_i32_0 : i32, i32
  }
  func.func @transform_10(%arg0: i32) -> (i32, i32) {
    %c0_i32 = arith.constant 0 : i32
    %c0_i32_0 = arith.constant 0 : i32
    return %arg0, %c0_i32 : i32, i32
  }
}

</mosaic_0001>

<llo_original>
// kernel: mask_embedder_forward.3
$region0: #{mask_embedder_forward.3}
  #allocation0 [shape = 'u32[]', space=smem, size = 0x4, offset = 0x4, fixed_abs, tag = 'smem constant byte address 0x4 - core index']
  #allocation1 [shape = 'u32[144,128]{1,0:T(1,128)}', space=vmem, size = 0x12000, scoped, tag = 'internal scratch']
  %s0 = inlined_call_operand.vmem [shape: bf16[16,1024], index: 0, kind: input, shape index: {}]
  %s1 = inlined_call_operand.vmem [shape: f32[16,128], index: 1, kind: input, shape index: {}]
  %s2 = inlined_call_operand.vmem [shape: bf16[1024,128], index: 2, kind: input, shape index: {}]
  %s3 = inlined_call_operand.vmem [shape: f32[1,128], index: 3, kind: input, shape index: {}]
  %s4 = inlined_call_operand.vmem [shape: f32[1,128], index: 4, kind: input, shape index: {}]
  %s5 = inlined_call_operand.vmem [shape: f32[1,128], index: 5, kind: input, shape index: {}]
  %s6 = inlined_call_operand.vmem [shape: bf16[128,128], index: 6, kind: input, shape index: {}]
  %s7 = inlined_call_operand.vmem [shape: f32[1,128], index: 7, kind: input, shape index: {}]
  %s8 = inlined_call_operand.vmem [shape: bf16[128,128], index: 8, kind: input, shape index: {}]
  %s9 = inlined_call_operand.vmem [shape: f32[1,128], index: 9, kind: input, shape index: {}]
  %s10 = inlined_call_operand.hbm [shape: f32[16,128], index: 10, kind: output, shape index: {}]
  %s11 = sld [smem:[#allocation0]]
  $region50: #{mask_embedder_forward.3} parent=0
    _
  %s13 = ssub.s32 1, %s11
  %s14 = scalar_select 0, %s13, %s11
  $region1: #{mask_embedder_forward.3} parent=0
    #allocation2 [shape = 'u8[8192]{0}', space=vmem, size = 0x2000, scoped, tag = 'output window, operand 0, single buffered']
    #allocation3 [shape = 's32[1]{0}', space=sflag, size = 0x4, scoped, tag = 'scoped memory for mask_embedder_forward.3']
    %15 = vsyncpa [#allocation3], 0
    // Predicated region
    $region2: #{mask_embedder_forward.3} parent=1 // pred_check
      _
    $region3: #{mask_embedder_forward.3} parent=1 // pred_check_branch
      %17 = sbr.rel (0) target = $region5
    $region4: #{mask_embedder_forward.3} parent=1 // pred_region
      _
    $region5: #{mask_embedder_forward.3} parent=1 // pred_fallthru
      _
    // Predicated region
    $region6: #{mask_embedder_forward.3} parent=1 // pred_check
      _
    $region7: #{mask_embedder_forward.3} parent=1 // pred_check_branch
      %19 = sbr.rel (0) target = $region9
    $region8: #{mask_embedder_forward.3} parent=1 // pred_region
      _
    $region9: #{mask_embedder_forward.3} parent=1 // pred_fallthru
      _
    // Predicated region
    $region10: #{mask_embedder_forward.3} parent=1 // pred_check
      _
    $region11: #{mask_embedder_forward.3} parent=1 // pred_check_branch
      %21 = sbr.rel (0) target = $region13
    $region12: #{mask_embedder_forward.3} parent=1 // pred_region
      _
    $region13: #{mask_embedder_forward.3} parent=1 // pred_fallthru
      _
    // Predicated region
    $region14: #{mask_embedder_forward.3} parent=1 // pred_check
      _
    $region15: #{mask_embedder_forward.3} parent=1 // pred_check_branch
      %23 = sbr.rel (0) target = $region17
    $region16: #{mask_embedder_forward.3} parent=1 // pred_region
      _
    $region17: #{mask_embedder_forward.3} parent=1 // pred_fallthru
      _
    // Predicated region
    $region18: #{mask_embedder_forward.3} parent=1 // pred_check
      _
    $region19: #{mask_embedder_forward.3} parent=1 // pred_check_branch
      %25 = sbr.rel (0) target = $region21
    $region20: #{mask_embedder_forward.3} parent=1 // pred_region
      _
    $region21: #{mask_embedder_forward.3} parent=1 // pred_fallthru
      _
    // Predicated region
    $region22: #{mask_embedder_forward.3} parent=1 // pred_check
      _
    $region23: #{mask_embedder_forward.3} parent=1 // pred_check_branch
      %27 = sbr.rel (0) target = $region25
    $region24: #{mask_embedder_forward.3} parent=1 // pred_region
      _
    $region25: #{mask_embedder_forward.3} parent=1 // pred_fallthru
      _
    // Predicated region
    $region26: #{mask_embedder_forward.3} parent=1 // pred_check
      _
    $region27: #{mask_embedder_forward.3} parent=1 // pred_check_branch
      %29 = sbr.rel (0) target = $region29
    $region28: #{mask_embedder_forward.3} parent=1 // pred_region
      _
    $region29: #{mask_embedder_forward.3} parent=1 // pred_fallthru
      _
    // Predicated region
    $region30: #{mask_embedder_forward.3} parent=1 // pred_check
      _
    $region31: #{mask_embedder_forward.3} parent=1 // pred_check_branch
      %31 = sbr.rel (0) target = $region33
    $region32: #{mask_embedder_forward.3} parent=1 // pred_region
      _
    $region33: #{mask_embedder_forward.3} parent=1 // pred_fallthru
      _
    // Predicated region
    $region34: #{mask_embedder_forward.3} parent=1 // pred_check
      _
    $region35: #{mask_embedder_forward.3} parent=1 // pred_check_branch
      %33 = sbr.rel (0) target = $region37
    $region36: #{mask_embedder_forward.3} parent=1 // pred_region
      _
    $region37: #{mask_embedder_forward.3} parent=1 // pred_fallthru
      _
    // Predicated region
    $region38: #{mask_embedder_forward.3} parent=1 // pred_check
      _
    $region39: #{mask_embedder_forward.3} parent=1 // pred_check_branch
      %35 = sbr.rel (0) target = $region41
    $region40: #{mask_embedder_forward.3} parent=1 // pred_region
      _
    $region41: #{mask_embedder_forward.3} parent=1 // pred_fallthru
      _
    %v37 = vld [vmem:[%s0] sm:$0xff]
    %v38 = vld [vmem:[%s0 + $0x8] sm:$0xff]
    %v39 = vld [vmem:[%s0 + $0x10] sm:$0xff]
    %v40 = vld [vmem:[%s0 + $0x18] sm:$0xff]
    %v41 = vld [vmem:[%s0 + $0x20] sm:$0xff]
    %v42 = vld [vmem:[%s0 + $0x28] sm:$0xff]
    %v43 = vld [vmem:[%s0 + $0x30] sm:$0xff]
    %v44 = vld [vmem:[%s0 + $0x38] sm:$0xff]
    %v45 = vld [vmem:[%s2] sm:$0xf]
    %v46 = vld [vmem:[%s2 + $0x4] sm:$0xf]
    %v47 = vld [vmem:[%s2 + $0x8] sm:$0xf]
    %v48 = vld [vmem:[%s2 + $0xc] sm:$0xf]
    %v49 = vld [vmem:[%s2 + $0x10] sm:$0xf]
    %v50 = vld [vmem:[%s2 + $0x14] sm:$0xf]
    %v51 = vld [vmem:[%s2 + $0x18] sm:$0xf]
    %v52 = vld [vmem:[%s2 + $0x1c] sm:$0xf]
    %v53 = vld [vmem:[%s2 + $0x20] sm:$0xf]
    %v54 = vld [vmem:[%s2 + $0x24] sm:$0xf]
    %v55 = vld [vmem:[%s2 + $0x28] sm:$0xf]
    %v56 = vld [vmem:[%s2 + $0x2c] sm:$0xf]
    %v57 = vld [vmem:[%s2 + $0x30] sm:$0xf]
    %v58 = vld [vmem:[%s2 + $0x34] sm:$0xf]
    %v59 = vld [vmem:[%s2 + $0x38] sm:$0xf]
    %v60 = vld [vmem:[%s2 + $0x3c] sm:$0xf]
    %v61 = vld [vmem:[%s2 + $0x40] sm:$0xf]
    %v62 = vld [vmem:[%s2 + $0x44] sm:$0xf]
    %v63 = vld [vmem:[%s2 + $0x48] sm:$0xf]
    %v64 = vld [vmem:[%s2 + $0x4c] sm:$0xf]
    %v65 = vld [vmem:[%s2 + $0x50] sm:$0xf]
    %v66 = vld [vmem:[%s2 + $0x54] sm:$0xf]
    %v67 = vld [vmem:[%s2 + $0x58] sm:$0xf]
    %v68 = vld [vmem:[%s2 + $0x5c] sm:$0xf]
    %v69 = vld [vmem:[%s2 + $0x60] sm:$0xf]
    %v70 = vld [vmem:[%s2 + $0x64] sm:$0xf]
    %v71 = vld [vmem:[%s2 + $0x68] sm:$0xf]
    %v72 = vld [vmem:[%s2 + $0x6c] sm:$0xf]
    %v73 = vld [vmem:[%s2 + $0x70] sm:$0xf]
    %v74 = vld [vmem:[%s2 + $0x74] sm:$0xf]
    %v75 = vld [vmem:[%s2 + $0x78] sm:$0xf]
    %v76 = vld [vmem:[%s2 + $0x7c] sm:$0xf]
    %v77 = vld [vmem:[%s2 + $0x80] sm:$0xf]
    %v78 = vld [vmem:[%s2 + $0x84] sm:$0xf]
    %v79 = vld [vmem:[%s2 + $0x88] sm:$0xf]
    %v80 = vld [vmem:[%s2 + $0x8c] sm:$0xf]
    %v81 = vld [vmem:[%s2 + $0x90] sm:$0xf]
    %v82 = vld [vmem:[%s2 + $0x94] sm:$0xf]
    %v83 = vld [vmem:[%s2 + $0x98] sm:$0xf]
    %v84 = vld [vmem:[%s2 + $0x9c] sm:$0xf]
    %v85 = vld [vmem:[%s2 + $0xa0] sm:$0xf]
    %v86 = vld [vmem:[%s2 + $0xa4] sm:$0xf]
    %v87 = vld [vmem:[%s2 + $0xa8] sm:$0xf]
    %v88 = vld [vmem:[%s2 + $0xac] sm:$0xf]
    %v89 = vld [vmem:[%s2 + $0xb0] sm:$0xf]
    %v90 = vld [vmem:[%s2 + $0xb4] sm:$0xf]
    %v91 = vld [vmem:[%s2 + $0xb8] sm:$0xf]
    %v92 = vld [vmem:[%s2 + $0xbc] sm:$0xf]
    %v93 = vld [vmem:[%s2 + $0xc0] sm:$0xf]
    %v94 = vld [vmem:[%s2 + $0xc4] sm:$0xf]
    %v95 = vld [vmem:[%s2 + $0xc8] sm:$0xf]
    %v96 = vld [vmem:[%s2 + $0xcc] sm:$0xf]
    %v97 = vld [vmem:[%s2 + $0xd0] sm:$0xf]
    %v98 = vld [vmem:[%s2 + $0xd4] sm:$0xf]
    %v99 = vld [vmem:[%s2 + $0xd8] sm:$0xf]
    %v100 = vld [vmem:[%s2 + $0xdc] sm:$0xf]
    %v101 = vld [vmem:[%s2 + $0xe0] sm:$0xf]
    %v102 = vld [vmem:[%s2 + $0xe4] sm:$0xf]
    %v103 = vld [vmem:[%s2 + $0xe8] sm:$0xf]
    %v104 = vld [vmem:[%s2 + $0xec] sm:$0xf]
    %v105 = vld [vmem:[%s2 + $0xf0] sm:$0xf]
    %v106 = vld [vmem:[%s2 + $0xf4] sm:$0xf]
    %v107 = vld [vmem:[%s2 + $0xf8] sm:$0xf]
    %v108 = vld [vmem:[%s2 + $0xfc] sm:$0xf]
    %v109 = vld [vmem:[%s2 + $0x100] sm:$0xf]
    %v110 = vld [vmem:[%s2 + $0x104] sm:$0xf]
    %v111 = vld [vmem:[%s2 + $0x108] sm:$0xf]
    %v112 = vld [vmem:[%s2 + $0x10c] sm:$0xf]
    %v113 = vld [vmem:[%s2 + $0x110] sm:$0xf]
    %v114 = vld [vmem:[%s2 + $0x114] sm:$0xf]
    %v115 = vld [vmem:[%s2 + $0x118] sm:$0xf]
    %v116 = vld [vmem:[%s2 + $0x11c] sm:$0xf]
    %v117 = vld [vmem:[%s2 + $0x120] sm:$0xf]
    %v118 = vld [vmem:[%s2 + $0x124] sm:$0xf]
    %v119 = vld [vmem:[%s2 + $0x128] sm:$0xf]
    %v120 = vld [vmem:[%s2 + $0x12c] sm:$0xf]
    %v121 = vld [vmem:[%s2 + $0x130] sm:$0xf]
    %v122 = vld [vmem:[%s2 + $0x134] sm:$0xf]
    %v123 = vld [vmem:[%s2 + $0x138] sm:$0xf]
    %v124 = vld [vmem:[%s2 + $0x13c] sm:$0xf]
    %v125 = vld [vmem:[%s2 + $0x140] sm:$0xf]
    %v126 = vld [vmem:[%s2 + $0x144] sm:$0xf]
    %v127 = vld [vmem:[%s2 + $0x148] sm:$0xf]
    %v128 = vld [vmem:[%s2 + $0x14c] sm:$0xf]
    %v129 = vld [vmem:[%s2 + $0x150] sm:$0xf]
    %v130 = vld [vmem:[%s2 + $0x154] sm:$0xf]
    %v131 = vld [vmem:[%s2 + $0x158] sm:$0xf]
    %v132 = vld [vmem:[%s2 + $0x15c] sm:$0xf]
    %v133 = vld [vmem:[%s2 + $0x160] sm:$0xf]
    %v134 = vld [vmem:[%s2 + $0x164] sm:$0xf]
    %v135 = vld [vmem:[%s2 + $0x168] sm:$0xf]
    %v136 = vld [vmem:[%s2 + $0x16c] sm:$0xf]
    %v137 = vld [vmem:[%s2 + $0x170] sm:$0xf]
    %v138 = vld [vmem:[%s2 + $0x174] sm:$0xf]
    %v139 = vld [vmem:[%s2 + $0x178] sm:$0xf]
    %v140 = vld [vmem:[%s2 + $0x17c] sm:$0xf]
    %v141 = vld [vmem:[%s2 + $0x180] sm:$0xf]
    %v142 = vld [vmem:[%s2 + $0x184] sm:$0xf]
    %v143 = vld [vmem:[%s2 + $0x188] sm:$0xf]
    %v144 = vld [vmem:[%s2 + $0x18c] sm:$0xf]
    %v145 = vld [vmem:[%s2 + $0x190] sm:$0xf]
    %v146 = vld [vmem:[%s2 + $0x194] sm:$0xf]
    %v147 = vld [vmem:[%s2 + $0x198] sm:$0xf]
    %v148 = vld [vmem:[%s2 + $0x19c] sm:$0xf]
    %v149 = vld [vmem:[%s2 + $0x1a0] sm:$0xf]
    %v150 = vld [vmem:[%s2 + $0x1a4] sm:$0xf]
    %v151 = vld [vmem:[%s2 + $0x1a8] sm:$0xf]
    %v152 = vld [vmem:[%s2 + $0x1ac] sm:$0xf]
    %v153 = vld [vmem:[%s2 + $0x1b0] sm:$0xf]
    %v154 = vld [vmem:[%s2 + $0x1b4] sm:$0xf]
    %v155 = vld [vmem:[%s2 + $0x1b8] sm:$0xf]
    %v156 = vld [vmem:[%s2 + $0x1bc] sm:$0xf]
    %v157 = vld [vmem:[%s2 + $0x1c0] sm:$0xf]
    %v158 = vld [vmem:[%s2 + $0x1c4] sm:$0xf]
    %v159 = vld [vmem:[%s2 + $0x1c8] sm:$0xf]
    %v160 = vld [vmem:[%s2 + $0x1cc] sm:$0xf]
    %v161 = vld [vmem:[%s2 + $0x1d0] sm:$0xf]
    %v162 = vld [vmem:[%s2 + $0x1d4] sm:$0xf]
    %v163 = vld [vmem:[%s2 + $0x1d8] sm:$0xf]
    %v164 = vld [vmem:[%s2 + $0x1dc] sm:$0xf]
    %v165 = vld [vmem:[%s2 + $0x1e0] sm:$0xf]
    %v166 = vld [vmem:[%s2 + $0x1e4] sm:$0xf]
    %v167 = vld [vmem:[%s2 + $0x1e8] sm:$0xf]
    %v168 = vld [vmem:[%s2 + $0x1ec] sm:$0xf]
    %v169 = vld [vmem:[%s2 + $0x1f0] sm:$0xf]
    %v170 = vld [vmem:[%s2 + $0x1f4] sm:$0xf]
    %v171 = vld [vmem:[%s2 + $0x1f8] sm:$0xf]
    %v172 = vld [vmem:[%s2 + $0x1fc] sm:$0xf]
    %v173 = vld [vmem:[%s3] sm:$0x1]
    %v175 = vlaneseq
    %v176 = vshrl.u32 %v175, 7
    %v177 = vsub.s32 0, %v176
    %v178 = vrot.slane %v173, %v177
    %v188 = vunpack.c.l.b16 %v37
    %v189 = vunpack.c.h.b16 %v37
    %v190 = vunpack.c.l.b16 %v38
    %v191 = vunpack.c.h.b16 %v38
    %v192 = vunpack.c.l.b16 %v39
    %v193 = vunpack.c.h.b16 %v39
    %v194 = vunpack.c.l.b16 %v40
    %v195 = vunpack.c.h.b16 %v40
    %v196 = vunpack.c.l.b16 %v41
    %v197 = vunpack.c.h.b16 %v41
    %v198 = vunpack.c.l.b16 %v42
    %v199 = vunpack.c.h.b16 %v42
    %v200 = vunpack.c.l.b16 %v43
    %v201 = vunpack.c.h.b16 %v43
    %v202 = vunpack.c.l.b16 %v44
    %v203 = vunpack.c.h.b16 %v44
    %v204 = vpack.c.b16 %v196, %v188
    %v205 = vpack.c.b16 %v197, %v189
    %v206 = vpack.c.b16 %v198, %v190
    %v207 = vpack.c.b16 %v199, %v191
    %v208 = vpack.c.b16 %v200, %v192
    %v209 = vpack.c.b16 %v201, %v193
    %v210 = vpack.c.b16 %v202, %v194
    %v211 = vpack.c.b16 %v203, %v195
    %v348 = vunpack.c.l.b16 %v45
    %v349 = vunpack.c.l.b16 %v46
    %v350 = vunpack.c.l.b16 %v47
    %v351 = vunpack.c.l.b16 %v48
    %v352 = vunpack.c.l.b16 %v49
    %v353 = vunpack.c.l.b16 %v50
    %v354 = vunpack.c.l.b16 %v51
    %v355 = vunpack.c.l.b16 %v52
    %v356 = vunpack.c.l.b16 %v53
    %v357 = vunpack.c.l.b16 %v54
    %v358 = vunpack.c.l.b16 %v55
    %v359 = vunpack.c.l.b16 %v56
    %v360 = vunpack.c.l.b16 %v57
    %v361 = vunpack.c.l.b16 %v58
    %v362 = vunpack.c.l.b16 %v59
    %v363 = vunpack.c.l.b16 %v60
    %v364 = vunpack.c.l.b16 %v61
    %v365 = vunpack.c.l.b16 %v62
    %v366 = vunpack.c.l.b16 %v63
    %v367 = vunpack.c.l.b16 %v64
    %v368 = vunpack.c.l.b16 %v65
    %v369 = vunpack.c.l.b16 %v66
    %v370 = vunpack.c.l.b16 %v67
    %v371 = vunpack.c.l.b16 %v68
    %v372 = vunpack.c.l.b16 %v69
    %v373 = vunpack.c.l.b16 %v70
    %v374 = vunpack.c.l.b16 %v71
    %v375 = vunpack.c.l.b16 %v72
    %v376 = vunpack.c.l.b16 %v73
    %v377 = vunpack.c.l.b16 %v74
    %v378 = vunpack.c.l.b16 %v75
    %v379 = vunpack.c.l.b16 %v76
    %v380 = vunpack.c.l.b16 %v77
    %v381 = vunpack.c.l.b16 %v78
    %v382 = vunpack.c.l.b16 %v79
    %v383 = vunpack.c.l.b16 %v80
    %v384 = vunpack.c.l.b16 %v81
    %v385 = vunpack.c.l.b16 %v82
    %v386 = vunpack.c.l.b16 %v83
    %v387 = vunpack.c.l.b16 %v84
    %v388 = vunpack.c.l.b16 %v85
    %v389 = vunpack.c.l.b16 %v86
    %v390 = vunpack.c.l.b16 %v87
    %v391 = vunpack.c.l.b16 %v88
    %v392 = vunpack.c.l.b16 %v89
    %v393 = vunpack.c.l.b16 %v90
    %v394 = vunpack.c.l.b16 %v91
    %v395 = vunpack.c.l.b16 %v92
    %v396 = vunpack.c.l.b16 %v93
    %v397 = vunpack.c.l.b16 %v94
    %v398 = vunpack.c.l.b16 %v95
    %v399 = vunpack.c.l.b16 %v96
    %v400 = vunpack.c.l.b16 %v97
    %v401 = vunpack.c.l.b16 %v98
    %v402 = vunpack.c.l.b16 %v99
    %v403 = vunpack.c.l.b16 %v100
    %v404 = vunpack.c.l.b16 %v101
    %v405 = vunpack.c.l.b16 %v102
    %v406 = vunpack.c.l.b16 %v103
    %v407 = vunpack.c.l.b16 %v104
    %v408 = vunpack.c.l.b16 %v105
    %v409 = vunpack.c.l.b16 %v106
    %v410 = vunpack.c.l.b16 %v107
    %v411 = vunpack.c.l.b16 %v108
    %v412 = vunpack.c.l.b16 %v109
    %v413 = vunpack.c.l.b16 %v110
    %v414 = vunpack.c.l.b16 %v111
    %v415 = vunpack.c.l.b16 %v112
    %v416 = vunpack.c.l.b16 %v113
    %v417 = vunpack.c.l.b16 %v114
    %v418 = vunpack.c.l.b16 %v115
    %v419 = vunpack.c.l.b16 %v116
    %v420 = vunpack.c.l.b16 %v117
    %v421 = vunpack.c.l.b16 %v118
    %v422 = vunpack.c.l.b16 %v119
    %v423 = vunpack.c.l.b16 %v120
    %v424 = vunpack.c.l.b16 %v121
    %v425 = vunpack.c.l.b16 %v122
    %v426 = vunpack.c.l.b16 %v123
    %v427 = vunpack.c.l.b16 %v124
    %v428 = vunpack.c.l.b16 %v125
    %v429 = vunpack.c.l.b16 %v126
    %v430 = vunpack.c.l.b16 %v127
    %v431 = vunpack.c.l.b16 %v128
    %v432 = vunpack.c.l.b16 %v129
    %v433 = vunpack.c.l.b16 %v130
    %v434 = vunpack.c.l.b16 %v131
    %v435 = vunpack.c.l.b16 %v132
    %v436 = vunpack.c.l.b16 %v133
    %v437 = vunpack.c.l.b16 %v134
    %v438 = vunpack.c.l.b16 %v135
    %v439 = vunpack.c.l.b16 %v136
    %v440 = vunpack.c.l.b16 %v137
    %v441 = vunpack.c.l.b16 %v138
    %v442 = vunpack.c.l.b16 %v139
    %v443 = vunpack.c.l.b16 %v140
    %v444 = vunpack.c.l.b16 %v141
    %v445 = vunpack.c.l.b16 %v142
    %v446 = vunpack.c.l.b16 %v143
    %v447 = vunpack.c.l.b16 %v144
    %v448 = vunpack.c.l.b16 %v145
    %v449 = vunpack.c.l.b16 %v146
    %v450 = vunpack.c.l.b16 %v147
    %v451 = vunpack.c.l.b16 %v148
    %v452 = vunpack.c.l.b16 %v149
    %v453 = vunpack.c.l.b16 %v150
    %v454 = vunpack.c.l.b16 %v151
    %v455 = vunpack.c.l.b16 %v152
    %v456 = vunpack.c.l.b16 %v153
    %v457 = vunpack.c.l.b16 %v154
    %v458 = vunpack.c.l.b16 %v155
    %v459 = vunpack.c.l.b16 %v156
    %v460 = vunpack.c.l.b16 %v157
    %v461 = vunpack.c.l.b16 %v158
    %v462 = vunpack.c.l.b16 %v159
    %v463 = vunpack.c.l.b16 %v160
    %v464 = vunpack.c.l.b16 %v161
    %v465 = vunpack.c.l.b16 %v162
    %v466 = vunpack.c.l.b16 %v163
    %v467 = vunpack.c.l.b16 %v164
    %v468 = vunpack.c.l.b16 %v165
    %v469 = vunpack.c.l.b16 %v166
    %v470 = vunpack.c.l.b16 %v167
    %v471 = vunpack.c.l.b16 %v168
    %v472 = vunpack.c.l.b16 %v169
    %v473 = vunpack.c.l.b16 %v170
    %v474 = vunpack.c.l.b16 %v171
    %v475 = vunpack.c.l.b16 %v172
    %v476 = vpack.c.b16 %v349, %v348
    %v477 = vpack.c.b16 %v351, %v350
    %v478 = vpack.c.b16 %v353, %v352
    %v479 = vpack.c.b16 %v355, %v354
    %v480 = vpack.c.b16 %v357, %v356
    %v481 = vpack.c.b16 %v359, %v358
    %v482 = vpack.c.b16 %v361, %v360
    %v483 = vpack.c.b16 %v363, %v362
    %v484 = vpack.c.b16 %v365, %v364
    %v485 = vpack.c.b16 %v367, %v366
    %v486 = vpack.c.b16 %v369, %v368
    %v487 = vpack.c.b16 %v371, %v370
    %v488 = vpack.c.b16 %v373, %v372
    %v489 = vpack.c.b16 %v375, %v374
    %v490 = vpack.c.b16 %v377, %v376
    %v491 = vpack.c.b16 %v379, %v378
    %v492 = vpack.c.b16 %v381, %v380
    %v493 = vpack.c.b16 %v383, %v382
    %v494 = vpack.c.b16 %v385, %v384
    %v495 = vpack.c.b16 %v387, %v386
    %v496 = vpack.c.b16 %v389, %v388
    %v497 = vpack.c.b16 %v391, %v390
    %v498 = vpack.c.b16 %v393, %v392
    %v499 = vpack.c.b16 %v395, %v394
    %v500 = vpack.c.b16 %v397, %v396
    %v501 = vpack.c.b16 %v399, %v398
    %v502 = vpack.c.b16 %v401, %v400
    %v503 = vpack.c.b16 %v403, %v402
    %v504 = vpack.c.b16 %v405, %v404
    %v505 = vpack.c.b16 %v407, %v406
    %v506 = vpack.c.b16 %v409, %v408
    %v507 = vpack.c.b16 %v411, %v410
    %v508 = vpack.c.b16 %v413, %v412
    %v509 = vpack.c.b16 %v415, %v414
    %v510 = vpack.c.b16 %v417, %v416
    %v511 = vpack.c.b16 %v419, %v418
    %v512 = vpack.c.b16 %v421, %v420
    %v513 = vpack.c.b16 %v423, %v422
    %v514 = vpack.c.b16 %v425, %v424
    %v515 = vpack.c.b16 %v427, %v426
    %v516 = vpack.c.b16 %v429, %v428
    %v517 = vpack.c.b16 %v431, %v430
    %v518 = vpack.c.b16 %v433, %v432
    %v519 = vpack.c.b16 %v435, %v434
    %v520 = vpack.c.b16 %v437, %v436
    %v521 = vpack.c.b16 %v439, %v438
    %v522 = vpack.c.b16 %v441, %v440
    %v523 = vpack.c.b16 %v443, %v442
    %v524 = vpack.c.b16 %v445, %v444
    %v525 = vpack.c.b16 %v447, %v446
    %v526 = vpack.c.b16 %v449, %v448
    %v527 = vpack.c.b16 %v451, %v450
    %v528 = vpack.c.b16 %v453, %v452
    %v529 = vpack.c.b16 %v455, %v454
    %v530 = vpack.c.b16 %v457, %v456
    %v531 = vpack.c.b16 %v459, %v458
    %v532 = vpack.c.b16 %v461, %v460
    %v533 = vpack.c.b16 %v463, %v462
    %v534 = vpack.c.b16 %v465, %v464
    %v535 = vpack.c.b16 %v467, %v466
    %v536 = vpack.c.b16 %v469, %v468
    %v537 = vpack.c.b16 %v471, %v470
    %v538 = vpack.c.b16 %v473, %v472
    %v539 = vpack.c.b16 %v475, %v474
    %604 = vmatprep.subr.bf16.mxu0 0
    %605 = vmatpush1.bf16.msra.mxu0 %v483
    %606 = vmatprep.subr.bf16.mxu0 0
    %607 = vmatpush1.bf16.msra.mxu0 %v482
    %608 = vmatprep.subr.bf16.mxu0 0
    %609 = vmatpush1.bf16.msra.mxu0 %v481
    %610 = vmatprep.subr.bf16.mxu0 0
    %611 = vmatpush1.bf16.msra.mxu0 %v480
    %612 = vmatprep.subr.bf16.mxu0 0
    %613 = vmatpush1.bf16.msra.mxu0 %v479
    %614 = vmatprep.subr.bf16.mxu0 0
    %615 = vmatpush1.bf16.msra.mxu0 %v478
    %616 = vmatprep.subr.bf16.mxu0 0
    %617 = vmatpush1.bf16.msra.mxu0 %v477
    %618 = vmatprep.subr.bf16.mxu0 0
    %619 = vmatpush1.bf16.msra.mxu0 %v476
    %620 = vmatprep.subr.bf16.mxu0 0
    %621 = vmatpush2.bf16.msra.mxu0 %v491
    %622 = vmatprep.subr.bf16.mxu0 0
    %623 = vmatpush2.bf16.msra.mxu0 %v490
    %624 = vmatprep.subr.bf16.mxu0 0
    %625 = vmatpush2.bf16.msra.mxu0 %v489
    %626 = vmatprep.subr.bf16.mxu0 0
    %627 = vmatpush2.bf16.msra.mxu0 %v488
    %628 = vmatprep.subr.bf16.mxu0 0
    %629 = vmatpush2.bf16.msra.mxu0 %v487
    %630 = vmatprep.subr.bf16.mxu0 0
    %631 = vmatpush2.bf16.msra.mxu0 %v486
    %632 = vmatprep.subr.bf16.mxu0 0
    %633 = vmatpush2.bf16.msra.mxu0 %v485
    %634 = vmatprep.subr.bf16.mxu0 0
    %635 = vmatpush2.bf16.msra.mxu0 %v484
    %636 = vmatprep.mubr.bf16.mxu0 %v205
    %637 = vmatmul.mubr.bf16.gmra.mxu0 %v204
    %v638 = vpop.f32.mrf.mxu0
    %v639 = vadd.f32 %v178, %v638
    %v640 = vpop.f32.mrf.mxu0
    %v641 = vpop.f32.mrf.mxu0
    %v642 = vadd.f32 %v178, %v641
    %v643 = vpop.f32.mrf.mxu0
    %644 = vdwg.mxu0
    %645 = vmatprep.subr.bf16.mxu0 0
    %646 = vmatpush1.bf16.msra.mxu0 %v499
    %647 = vmatprep.subr.bf16.mxu0 0
    %648 = vmatpush1.bf16.msra.mxu0 %v498
    %649 = vmatprep.subr.bf16.mxu0 0
    %650 = vmatpush1.bf16.msra.mxu0 %v497
    %651 = vmatprep.subr.bf16.mxu0 0
    %652 = vmatpush1.bf16.msra.mxu0 %v496
    %653 = vmatprep.subr.bf16.mxu0 0
    %654 = vmatpush1.bf16.msra.mxu0 %v495
    %655 = vmatprep.subr.bf16.mxu0 0
    %656 = vmatpush1.bf16.msra.mxu0 %v494
    %657 = vmatprep.subr.bf16.mxu0 0
    %658 = vmatpush1.bf16.msra.mxu0 %v493
    %659 = vmatprep.subr.bf16.mxu0 0
    %660 = vmatpush1.bf16.msra.mxu0 %v492
    %661 = vmatprep.subr.bf16.mxu0 0
    %662 = vmatpush2.bf16.msra.mxu0 %v507
    %663 = vmatprep.subr.bf16.mxu0 0
    %664 = vmatpush2.bf16.msra.mxu0 %v506
    %665 = vmatprep.subr.bf16.mxu0 0
    %666 = vmatpush2.bf16.msra.mxu0 %v505
    %667 = vmatprep.subr.bf16.mxu0 0
    %668 = vmatpush2.bf16.msra.mxu0 %v504
    %669 = vmatprep.subr.bf16.mxu0 0
    %670 = vmatpush2.bf16.msra.mxu0 %v503
    %671 = vmatprep.subr.bf16.mxu0 0
    %672 = vmatpush2.bf16.msra.mxu0 %v502
    %673 = vmatprep.subr.bf16.mxu0 0
    %674 = vmatpush2.bf16.msra.mxu0 %v501
    %675 = vmatprep.subr.bf16.mxu0 0
    %676 = vmatpush2.bf16.msra.mxu0 %v500
    %677 = vmatprep.mubr.bf16.mxu0 %v207
    %678 = vmatmul.mubr.bf16.gmra.mxu0 %v206
    %v679 = vpop.f32.mrf.mxu0
    %v680 = vadd.f32 %v639, %v679
    %v681 = vpop.f32.mrf.mxu0
    %v682 = vpop.f32.mrf.mxu0
    %v683 = vadd.f32 %v642, %v682
    %v684 = vpop.f32.mrf.mxu0
    %685 = vdwg.mxu0
    %686 = vmatprep.subr.bf16.mxu0 0
    %687 = vmatpush1.bf16.msra.mxu0 %v515
    %688 = vmatprep.subr.bf16.mxu0 0
    %689 = vmatpush1.bf16.msra.mxu0 %v514
    %690 = vmatprep.subr.bf16.mxu0 0
    %691 = vmatpush1.bf16.msra.mxu0 %v513
    %692 = vmatprep.subr.bf16.mxu0 0
    %693 = vmatpush1.bf16.msra.mxu0 %v512
    %694 = vmatprep.subr.bf16.mxu0 0
    %695 = vmatpush1.bf16.msra.mxu0 %v511
    %696 = vmatprep.subr.bf16.mxu0 0
    %697 = vmatpush1.bf16.msra.mxu0 %v510
    %698 = vmatprep.subr.bf16.mxu0 0
    %699 = vmatpush1.bf16.msra.mxu0 %v509
    %700 = vmatprep.subr.bf16.mxu0 0
    %701 = vmatpush1.bf16.msra.mxu0 %v508
    %702 = vmatprep.subr.bf16.mxu0 0
    %703 = vmatpush2.bf16.msra.mxu0 %v523
    %704 = vmatprep.subr.bf16.mxu0 0
    %705 = vmatpush2.bf16.msra.mxu0 %v522
    %706 = vmatprep.subr.bf16.mxu0 0
    %707 = vmatpush2.bf16.msra.mxu0 %v521
    %708 = vmatprep.subr.bf16.mxu0 0
    %709 = vmatpush2.bf16.msra.mxu0 %v520
    %710 = vmatprep.subr.bf16.mxu0 0
    %711 = vmatpush2.bf16.msra.mxu0 %v519
    %712 = vmatprep.subr.bf16.mxu0 0
    %713 = vmatpush2.bf16.msra.mxu0 %v518
    %714 = vmatprep.subr.bf16.mxu0 0
    %715 = vmatpush2.bf16.msra.mxu0 %v517
    %716 = vmatprep.subr.bf16.mxu0 0
    %717 = vmatpush2.bf16.msra.mxu0 %v516
    %718 = vmatprep.mubr.bf16.mxu0 %v209
    %719 = vmatmul.mubr.bf16.gmra.mxu0 %v208
    %v720 = vpop.f32.mrf.mxu0
    %v721 = vadd.f32 %v680, %v720
    %v722 = vpop.f32.mrf.mxu0
    %v723 = vpop.f32.mrf.mxu0
    %v724 = vadd.f32 %v683, %v723
    %v725 = vpop.f32.mrf.mxu0
    %726 = vdwg.mxu0
    %727 = vmatprep.subr.bf16.mxu0 0
    %728 = vmatpush1.bf16.msra.mxu0 %v531
    %729 = vmatprep.subr.bf16.mxu0 0
    %730 = vmatpush1.bf16.msra.mxu0 %v530
    %731 = vmatprep.subr.bf16.mxu0 0
    %732 = vmatpush1.bf16.msra.mxu0 %v529
    %733 = vmatprep.subr.bf16.mxu0 0
    %734 = vmatpush1.bf16.msra.mxu0 %v528
    %735 = vmatprep.subr.bf16.mxu0 0
    %736 = vmatpush1.bf16.msra.mxu0 %v527
    %737 = vmatprep.subr.bf16.mxu0 0
    %738 = vmatpush1.bf16.msra.mxu0 %v526
    %739 = vmatprep.subr.bf16.mxu0 0
    %740 = vmatpush1.bf16.msra.mxu0 %v525
    %741 = vmatprep.subr.bf16.mxu0 0
    %742 = vmatpush1.bf16.msra.mxu0 %v524
    %743 = vmatprep.subr.bf16.mxu0 0
    %744 = vmatpush2.bf16.msra.mxu0 %v539
    %745 = vmatprep.subr.bf16.mxu0 0
    %746 = vmatpush2.bf16.msra.mxu0 %v538
    %747 = vmatprep.subr.bf16.mxu0 0
    %748 = vmatpush2.bf16.msra.mxu0 %v537
    %749 = vmatprep.subr.bf16.mxu0 0
    %750 = vmatpush2.bf16.msra.mxu0 %v536
    %751 = vmatprep.subr.bf16.mxu0 0
    %752 = vmatpush2.bf16.msra.mxu0 %v535
    %753 = vmatprep.subr.bf16.mxu0 0
    %754 = vmatpush2.bf16.msra.mxu0 %v534
    %755 = vmatprep.subr.bf16.mxu0 0
    %756 = vmatpush2.bf16.msra.mxu0 %v533
    %757 = vmatprep.subr.bf16.mxu0 0
    %758 = vmatpush2.bf16.msra.mxu0 %v532
    %759 = vmatprep.mubr.bf16.mxu0 %v211
    %760 = vmatmul.mubr.bf16.gmra.mxu0 %v210
    %v761 = vpop.f32.mrf.mxu0
    %v762 = vadd.f32 %v721, %v761
    %v763 = vpop.f32.mrf.mxu0
    %v764 = vpop.f32.mrf.mxu0
    %v765 = vadd.f32 %v724, %v764
    %v766 = vpop.f32.mrf.mxu0
    %767 = vdwg.mxu0
    %v768 = vld [vmem:[%s1] sm:$0xff]
    %v769 = vld [vmem:[%s1 + $0x8] sm:$0xff]
    %v770 = vadd.f32 %v768, %v762
    %v771 = vadd.f32 %v769, %v765
    %v772 = vld [vmem:[%s4] sm:$0x1]
    %v773 = vld [vmem:[%s5] sm:$0x1]
    %774 = vadd.xlane.f32.xlu0 %v770
    %v775 = vpop.xlane.xlu0 %774
    %776 = vadd.xlane.f32.xlu0 %v771
    %v777 = vpop.xlane.xlu0 %776
    %v778 = vrcp.pop 128.0
    %v779 = vmul.f32 %v775, %v778
    %v780 = vmul.f32 %v777, %v778
    %v781 = vsub.f32 %v770, %v779
    %v782 = vsub.f32 %v771, %v780
    %v783 = vmul.f32 %v781, %v781
    %v784 = vmul.f32 %v782, %v782
    %785 = vadd.xlane.f32.xlu0 %v783
    %v786 = vpop.xlane.xlu0 %785
    %787 = vadd.xlane.f32.xlu0 %v784
    %v788 = vpop.xlane.xlu0 %787
    %v789 = vmul.f32 %v786, %v778
    %v790 = vmul.f32 %v788, %v778
    %v791 = vadd.f32 %v789, 1e-05
    %v792 = vadd.f32 %v790, 1e-05
    %v793 = vrsqrt.pop %v791
    %v794 = vrsqrt.pop %v792
    %v795 = vmul.f32 %v781, %v793
    %v796 = vmul.f32 %v782, %v794
    %v798 = vlaneseq
    %v799 = vshrl.u32 %v798, 7
    %v800 = vsub.s32 0, %v799
    %v801 = vrot.slane %v772, %v800
    %v803 = vmul.f32 %v795, %v801
    %v804 = vmul.f32 %v796, %v801
    %v806 = vlaneseq
    %v807 = vshrl.u32 %v806, 7
    %v808 = vsub.s32 0, %v807
    %v809 = vrot.slane %v773, %v808
    %v811 = vadd.f32 %v803, %v809
    %v812 = vadd.f32 %v804, %v809
    %v813 = vpack.c.bf16 %v812, %v811
    %v814 = vld [vmem:[%s6] sm:$0xf]
    %v815 = vld [vmem:[%s6 + $0x4] sm:$0xf]
    %v816 = vld [vmem:[%s6 + $0x8] sm:$0xf]
    %v817 = vld [vmem:[%s6 + $0xc] sm:$0xf]
    %v818 = vld [vmem:[%s6 + $0x10] sm:$0xf]
    %v819 = vld [vmem:[%s6 + $0x14] sm:$0xf]
    %v820 = vld [vmem:[%s6 + $0x18] sm:$0xf]
    %v821 = vld [vmem:[%s6 + $0x1c] sm:$0xf]
    %v822 = vld [vmem:[%s6 + $0x20] sm:$0xf]
    %v823 = vld [vmem:[%s6 + $0x24] sm:$0xf]
    %v824 = vld [vmem:[%s6 + $0x28] sm:$0xf]
    %v825 = vld [vmem:[%s6 + $0x2c] sm:$0xf]
    %v826 = vld [vmem:[%s6 + $0x30] sm:$0xf]
    %v827 = vld [vmem:[%s6 + $0x34] sm:$0xf]
    %v828 = vld [vmem:[%s6 + $0x38] sm:$0xf]
    %v829 = vld [vmem:[%s6 + $0x3c] sm:$0xf]
    %v830 = vld [vmem:[%s7] sm:$0x1]
    %v832 = vlaneseq
    %v833 = vshrl.u32 %v832, 7
    %v834 = vsub.s32 0, %v833
    %v835 = vrot.slane %v830, %v834
    %v853 = vunpack.c.l.b16 %v814
    %v854 = vunpack.c.l.b16 %v815
    %v855 = vunpack.c.l.b16 %v816
    %v856 = vunpack.c.l.b16 %v817
    %v857 = vunpack.c.l.b16 %v818
    %v858 = vunpack.c.l.b16 %v819
    %v859 = vunpack.c.l.b16 %v820
    %v860 = vunpack.c.l.b16 %v821
    %v861 = vunpack.c.l.b16 %v822
    %v862 = vunpack.c.l.b16 %v823
    %v863 = vunpack.c.l.b16 %v824
    %v864 = vunpack.c.l.b16 %v825
    %v865 = vunpack.c.l.b16 %v826
    %v866 = vunpack.c.l.b16 %v827
    %v867 = vunpack.c.l.b16 %v828
    %v868 = vunpack.c.l.b16 %v829
    %v869 = vpack.c.b16 %v854, %v853
    %v870 = vpack.c.b16 %v856, %v855
    %v871 = vpack.c.b16 %v858, %v857
    %v872 = vpack.c.b16 %v860, %v859
    %v873 = vpack.c.b16 %v862, %v861
    %v874 = vpack.c.b16 %v864, %v863
    %v875 = vpack.c.b16 %v866, %v865
    %v876 = vpack.c.b16 %v868, %v867
    %885 = vmatprep.subr.bf16.mxu0 0
    %886 = vmatpush1.bf16.msra.mxu0 %v876
    %887 = vmatprep.subr.bf16.mxu0 0
    %888 = vmatpush1.bf16.msra.mxu0 %v875
    %889 = vmatprep.subr.bf16.mxu0 0
    %890 = vmatpush1.bf16.msra.mxu0 %v874
    %891 = vmatprep.subr.bf16.mxu0 0
    %892 = vmatpush1.bf16.msra.mxu0 %v873
    %893 = vmatprep.subr.bf16.mxu0 0
    %894 = vmatpush1.bf16.msra.mxu0 %v872
    %895 = vmatprep.subr.bf16.mxu0 0
    %896 = vmatpush1.bf16.msra.mxu0 %v871
    %897 = vmatprep.subr.bf16.mxu0 0
    %898 = vmatpush1.bf16.msra.mxu0 %v870
    %899 = vmatprep.subr.bf16.mxu0 0
    %900 = vmatpush1.bf16.msra.mxu0 %v869
    %901 = vmatprep.subr.bf16.mxu0 0
    %902 = vmatpush2.bf16.msra.mxu0 0
    %903 = vmatprep.subr.bf16.mxu0 0
    %904 = vmatpush2.bf16.msra.mxu0 0
    %905 = vmatprep.subr.bf16.mxu0 0
    %906 = vmatpush2.bf16.msra.mxu0 0
    %907 = vmatprep.subr.bf16.mxu0 0
    %908 = vmatpush2.bf16.msra.mxu0 0
    %909 = vmatprep.subr.bf16.mxu0 0
    %910 = vmatpush2.bf16.msra.mxu0 0
    %911 = vmatprep.subr.bf16.mxu0 0
    %912 = vmatpush2.bf16.msra.mxu0 0
    %913 = vmatprep.subr.bf16.mxu0 0
    %914 = vmatpush2.bf16.msra.mxu0 0
    %915 = vmatprep.subr.bf16.mxu0 0
    %916 = vmatpush2.bf16.msra.mxu0 0
    %917 = vmatprep.mubr.bf16.mxu0 0
    %918 = vmatmul.mubr.bf16.gmra.mxu0 %v813
    %v919 = vpop.f32.mrf.mxu0
    %v920 = vadd.f32 %v835, %v919
    %v921 = vpop.f32.mrf.mxu0
    %v922 = vpop.f32.mrf.mxu0
    %v923 = vadd.f32 %v835, %v922
    %v924 = vpop.f32.mrf.mxu0
    %925 = vdwg.mxu0
    %v926 = vmul.f32 %v920, 0.5
    %v927 = vmul.f32 %v923, 0.5
    %v928 = vmul.f32 %v920, 0.044715
    %v929 = vmul.f32 %v923, 0.044715
    %v930 = vmul.f32 %v928, %v920
    %v931 = vmul.f32 %v929, %v923
    %v932 = vmul.f32 %v930, %v920
    %v933 = vmul.f32 %v931, %v923
    %v934 = vadd.f32 %v920, %v932
    %v935 = vadd.f32 %v923, %v933
    %v936 = vmul.f32 %v934, 0.7978846
    %v937 = vmul.f32 %v935, 0.7978846
    %v938 = vtanh.pop %v936
    %v939 = vtanh.pop %v937
    %v940 = vadd.f32 %v938, 1.0
    %v941 = vadd.f32 %v939, 1.0
    %v942 = vmul.f32 %v926, %v940
    %v943 = vmul.f32 %v927, %v941
    %v944 = vpack.c.bf16 %v943, %v942
    %v945 = vld [vmem:[%s8] sm:$0xf]
    %v946 = vld [vmem:[%s8 + $0x4] sm:$0xf]
    %v947 = vld [vmem:[%s8 + $0x8] sm:$0xf]
    %v948 = vld [vmem:[%s8 + $0xc] sm:$0xf]
    %v949 = vld [vmem:[%s8 + $0x10] sm:$0xf]
    %v950 = vld [vmem:[%s8 + $0x14] sm:$0xf]
    %v951 = vld [vmem:[%s8 + $0x18] sm:$0xf]
    %v952 = vld [vmem:[%s8 + $0x1c] sm:$0xf]
    %v953 = vld [vmem:[%s8 + $0x20] sm:$0xf]
    %v954 = vld [vmem:[%s8 + $0x24] sm:$0xf]
    %v955 = vld [vmem:[%s8 + $0x28] sm:$0xf]
    %v956 = vld [vmem:[%s8 + $0x2c] sm:$0xf]
    %v957 = vld [vmem:[%s8 + $0x30] sm:$0xf]
    %v958 = vld [vmem:[%s8 + $0x34] sm:$0xf]
    %v959 = vld [vmem:[%s8 + $0x38] sm:$0xf]
    %v960 = vld [vmem:[%s8 + $0x3c] sm:$0xf]
    %v961 = vld [vmem:[%s9] sm:$0x1]
    %v963 = vlaneseq
    %v964 = vshrl.u32 %v963, 7
    %v965 = vsub.s32 0, %v964
    %v966 = vrot.slane %v961, %v965
    %v984 = vunpack.c.l.b16 %v945
    %v985 = vunpack.c.l.b16 %v946
    %v986 = vunpack.c.l.b16 %v947
    %v987 = vunpack.c.l.b16 %v948
    %v988 = vunpack.c.l.b16 %v949
    %v989 = vunpack.c.l.b16 %v950
    %v990 = vunpack.c.l.b16 %v951
    %v991 = vunpack.c.l.b16 %v952
    %v992 = vunpack.c.l.b16 %v953
    %v993 = vunpack.c.l.b16 %v954
    %v994 = vunpack.c.l.b16 %v955
    %v995 = vunpack.c.l.b16 %v956
    %v996 = vunpack.c.l.b16 %v957
    %v997 = vunpack.c.l.b16 %v958
    %v998 = vunpack.c.l.b16 %v959
    %v999 = vunpack.c.l.b16 %v960
    %v1000 = vpack.c.b16 %v985, %v984
    %v1001 = vpack.c.b16 %v987, %v986
    %v1002 = vpack.c.b16 %v989, %v988
    %v1003 = vpack.c.b16 %v991, %v990
    %v1004 = vpack.c.b16 %v993, %v992
    %v1005 = vpack.c.b16 %v995, %v994
    %v1006 = vpack.c.b16 %v997, %v996
    %v1007 = vpack.c.b16 %v999, %v998
    %1016 = vmatprep.subr.bf16.mxu0 0
    %1017 = vmatpush1.bf16.msra.mxu0 %v1007
    %1018 = vmatprep.subr.bf16.mxu0 0
    %1019 = vmatpush1.bf16.msra.mxu0 %v1006
    %1020 = vmatprep.subr.bf16.mxu0 0
    %1021 = vmatpush1.bf16.msra.mxu0 %v1005
    %1022 = vmatprep.subr.bf16.mxu0 0
    %1023 = vmatpush1.bf16.msra.mxu0 %v1004
    %1024 = vmatprep.subr.bf16.mxu0 0
    %1025 = vmatpush1.bf16.msra.mxu0 %v1003
    %1026 = vmatprep.subr.bf16.mxu0 0
    %1027 = vmatpush1.bf16.msra.mxu0 %v1002
    %1028 = vmatprep.subr.bf16.mxu0 0
    %1029 = vmatpush1.bf16.msra.mxu0 %v1001
    %1030 = vmatprep.subr.bf16.mxu0 0
    %1031 = vmatpush1.bf16.msra.mxu0 %v1000
    %1032 = vmatprep.subr.bf16.mxu0 0
    %1033 = vmatpush2.bf16.msra.mxu0 0
    %1034 = vmatprep.subr.bf16.mxu0 0
    %1035 = vmatpush2.bf16.msra.mxu0 0
    %1036 = vmatprep.subr.bf16.mxu0 0
    %1037 = vmatpush2.bf16.msra.mxu0 0
    %1038 = vmatprep.subr.bf16.mxu0 0
    %1039 = vmatpush2.bf16.msra.mxu0 0
    %1040 = vmatprep.subr.bf16.mxu0 0
    %1041 = vmatpush2.bf16.msra.mxu0 0
    %1042 = vmatprep.subr.bf16.mxu0 0
    %1043 = vmatpush2.bf16.msra.mxu0 0
    %1044 = vmatprep.subr.bf16.mxu0 0
    %1045 = vmatpush2.bf16.msra.mxu0 0
    %1046 = vmatprep.subr.bf16.mxu0 0
    %1047 = vmatpush2.bf16.msra.mxu0 0
    %1048 = vmatprep.mubr.bf16.mxu0 0
    %1049 = vmatmul.mubr.bf16.gmra.mxu0 %v944
    %v1050 = vpop.f32.mrf.mxu0
    %v1051 = vadd.f32 %v966, %v1050
    %v1052 = vpop.f32.mrf.mxu0
    %v1053 = vpop.f32.mrf.mxu0
    %v1054 = vadd.f32 %v966, %v1053
    %v1055 = vpop.f32.mrf.mxu0
    %1056 = vdwg.mxu0
    %1057 = vst [vmem:[#allocation2] sm:$0xff] %v1051
    %1058 = vst [vmem:[#allocation2 + $0x8] sm:$0xff] %v1054
    // Predicated region
    $region42: #{mask_embedder_forward.3} parent=1 // pred_check
      _
    $region43: #{mask_embedder_forward.3} parent=1 // pred_check_branch
      %1060 = sbr.rel (0) target = $region45
    $region44: #{mask_embedder_forward.3} parent=1 // pred_region
      %s1062 = ssub.s32 256, 256
      %1063 = vsyncadd [#allocation3], %s1062
      %s1064 = sshll.u32 [#allocation2], 4
      %s1065 = int_to_ptr.vmem [resolvable:$true] %s1064
      %1070 = dma.vmem_to_hbm [thread:$0]  %s1065, 256, %s10, [#allocation3], 128, 128, 8
    $region45: #{mask_embedder_forward.3} parent=1 // pred_fallthru
      _
    // Predicated region
    $region46: #{mask_embedder_forward.3} parent=1 // pred_check
      _
    $region47: #{mask_embedder_forward.3} parent=1 // pred_check_branch
      %1072 = sbr.rel (0) target = $region49
    $region48: #{mask_embedder_forward.3} parent=1 // pred_region
      %1073 = dma.done [#allocation3], 256
    $region49: #{mask_embedder_forward.3} parent=1 // pred_fallthru
      _
    %1074 = vsyncpa [#allocation3], 1

// kernel: mask_embedder_forward.2
$region0: #{mask_embedder_forward.2}
  #allocation0 [shape = 'u32[]', space=smem, size = 0x4, offset = 0x4, fixed_abs, tag = 'smem constant byte address 0x4 - core index']
  #allocation1 [shape = 'u32[144,128]{1,0:T(1,128)}', space=vmem, size = 0x12000, scoped, tag = 'internal scratch']
  #allocation2 [shape = 'f32[8,128]{1,0:T(8,128)}', space=vmem, size = 0x1000, scoped, tag = 'scratch operand']
  #allocation3 [shape = 'f32[8,1]{1,0:T(8,128)}', space=vmem, size = 0x1000, scoped, tag = 'scratch operand']
  #allocation4 [shape = 'f32[8,1]{1,0:T(8,128)}', space=vmem, size = 0x1000, scoped, tag = 'scratch operand']
  #allocation5 [shape = 'f32[8,128]{1,0:T(8,128)}', space=vmem, size = 0x1000, scoped, tag = 'scratch operand']
  %s0 = inlined_call_operand.vmem [shape: f32[2,128,1024], index: 0, kind: input, shape index: {}]
  %s1 = inlined_call_operand.vmem [shape: f32[2,8,128], index: 1, kind: input, shape index: {}]
  %s2 = inlined_call_operand.vmem [shape: f32[2,8,1024], index: 2, kind: input, shape index: {}]
  %s3 = inlined_call_operand.vmem [shape: bf16[128,128], index: 3, kind: input, shape index: {}]
  %s4 = inlined_call_operand.vmem [shape: f32[1,128], index: 4, kind: input, shape index: {}]
  %s5 = inlined_call_operand.vmem [shape: bf16[128,128], index: 5, kind: input, shape index: {}]
  %s6 = inlined_call_operand.vmem [shape: f32[1,128], index: 6, kind: input, shape index: {}]
  %s7 = inlined_call_operand.vmem [shape: f32[1,128], index: 7, kind: input, shape index: {}]
  %s8 = inlined_call_operand.vmem [shape: f32[1,128], index: 8, kind: input, shape index: {}]
  %s9 = inlined_call_operand.vmem [shape: bf16[128,256], index: 9, kind: input, shape index: {}]
  %s10 = inlined_call_operand.vmem [shape: f32[1,256], index: 10, kind: input, shape index: {}]
  %s11 = inlined_call_operand.vmem [shape: bf16[128,128], index: 11, kind: input, shape index: {}]
  %s12 = inlined_call_operand.vmem [shape: f32[1,128], index: 12, kind: input, shape index: {}]
  %s13 = inlined_call_operand.vmem [shape: bf16[128,128], index: 13, kind: input, shape index: {}]
  %s14 = inlined_call_operand.vmem [shape: f32[1,128], index: 14, kind: input, shape index: {}]
  %s15 = inlined_call_operand.vmem [shape: f32[1,128], index: 15, kind: input, shape index: {}]
  %s16 = inlined_call_operand.vmem [shape: f32[1,128], index: 16, kind: input, shape index: {}]
  %s17 = inlined_call_operand.vmem [shape: bf16[128,128], index: 17, kind: input, shape index: {}]
  %s18 = inlined_call_operand.vmem [shape: f32[1,128], index: 18, kind: input, shape index: {}]
  %s19 = inlined_call_operand.vmem [shape: f32[2,8,128], index: 19, kind: output, shape index: {}]
  %s20 = sld [smem:[#allocation0]]
  $region140: #{mask_embedder_forward.2} parent=0
    _
  %s22 = ssub.s32 1, %s20
  %s23 = scalar_select 0, %s22, %s20
  $region1: #{mask_embedder_forward.2} parent=0
    #allocation6 [shape = 'u8[524288]{0}', space=vmem, size = 0x80000, scoped, tag = 'input window, operand 0']
    loop: start=0, step=1, limit=6
    $region2: #{mask_embedder_forward.2} parent=1 // loop_pre_header
      _
    $region3: #{mask_embedder_forward.2} parent=1 // loop_header
      %s25 = sphi 0, %s29
      %p26 = scmp.ge.s32.totalorder %s25, 6
      %s32 = sphi 0, %s44
      %s33 = sphi 0, %s40
      %s34 = sphi 0, %s32
      %s35 = sphi 0, %s33
      %s36 = sphi 0, %s34
      %s37 = sphi 0, %s35
      %s49 = sphi 0, %s51
      %s52 = sphi 0, %s49
      %s53 = sphi 0, %s52
      %s69 = sphi 0, %s53
      %s75 = sphi 0, %s77
      %s78 = sphi 0, %s75
      %s79 = sphi 0, %s78
      %s95 = sphi 0, %s79
      %s103 = sphi 0, %s105
      %s106 = sphi 0, %s103
      %s107 = sphi 0, %s106
      %s123 = sphi 0, %s107
      %s127 = sphi 0, %s127
      %s129 = sphi 0, %s127
      %s130 = sphi 0, %s129
      %s144 = sphi 0, %s130
      %s148 = sphi 0, %s148
      %s150 = sphi 0, %s148
      %s151 = sphi 0, %s150
      %s165 = sphi 0, %s151
      %s169 = sphi 0, %s169
      %s171 = sphi 0, %s169
      %s172 = sphi 0, %s171
      %s186 = sphi 0, %s172
      %s190 = sphi 0, %s190
      %s192 = sphi 0, %s190
      %s193 = sphi 0, %s192
      %s207 = sphi 0, %s193
      %s211 = sphi 0, %s211
      %s213 = sphi 0, %s211
      %s214 = sphi 0, %s213
      %s228 = sphi 0, %s214
      %s232 = sphi 0, %s232
      %s234 = sphi 0, %s232
      %s235 = sphi 0, %s234
      %s249 = sphi 0, %s235
      %s253 = sphi 0, %s253
      %s255 = sphi 0, %s253
      %s256 = sphi 0, %s255
      %s270 = sphi 0, %s256
      %s274 = sphi 0, %s274
      %s276 = sphi 0, %s274
      %s277 = sphi 0, %s276
      %s291 = sphi 0, %s277
      %s295 = sphi 0, %s295
      %s297 = sphi 0, %s295
      %s298 = sphi 0, %s297
      %s312 = sphi 0, %s298
      %s316 = sphi 0, %s316
      %s318 = sphi 0, %s316
      %s319 = sphi 0, %s318
      %s333 = sphi 0, %s319
      %s337 = sphi 0, %s337
      %s339 = sphi 0, %s337
      %s340 = sphi 0, %s339
      %s354 = sphi 0, %s340
      %s358 = sphi 0, %s358
      %s360 = sphi 0, %s358
      %s361 = sphi 0, %s360
      %s375 = sphi 0, %s361
      %s379 = sphi 0, %s379
      %s381 = sphi 0, %s379
      %s382 = sphi 0, %s381
      %s396 = sphi 0, %s382
      %s400 = sphi 0, %s400
      %s402 = sphi 0, %s400
      %s403 = sphi 0, %s402
      %s417 = sphi 0, %s403
      %s421 = sphi 0, %s421
      %s423 = sphi 0, %s421
      %s424 = sphi 0, %s423
      %s438 = sphi 0, %s424
      %s442 = sphi 0, %s442
      %s444 = sphi 0, %s442
      %s445 = sphi 0, %s444
      %s459 = sphi 0, %s445
      %s465 = sphi 0, %s467
      %s468 = sphi 0, %s465
      %s469 = sphi 0, %s468
      %s485 = sphi 0, %s469
    $region4: #{mask_embedder_forward.2} parent=1 // loop_header_branch
      %28 = sbr.rel (%p26) target = $region8
    $region5: #{mask_embedder_forward.2} parent=1 // loop_body
      %s30 = ssub.s32 %s25, 1
      %s31 = ssub.s32 %s25, 2
      %s38 = sadd.s32 1, %s33
      %p39 = scmp.ge.s32.totalorder %s38, 2
      %s40 = scalar_select %p39, 0, %s38
      %s41 = sadd.s32 1, %s32
      %s42 = scalar_select %p39, %s41, %s32
      %p43 = scmp.ge.s32.totalorder %s42, 2
      %s44 = scalar_select %p43, 0, %s42
      %s45 = ssub.s32 %s32, %s44
      %s46 = ssub.s32 %s33, %s40
      %s47 = sor.u32 %s45, %s46
      %p48 = scmp.eq.s32.totalorder %s47, 0
      %s50 = sadd.s32 %s49, 1
      %s51 = scalar_select %p48, %s49, %s50
      %p54 = pneg %p48
      %p55 = scmp.eq.s32.totalorder %s25, 3
      %p56 = por %p54, %p55
      %p57 = scmp.ne.s32.totalorder %s49, %s52
      %p58 = scmp.eq.s32.totalorder %s25, 0
      %p59 = por %p57, %p58
      %p60 = scmp.ne.s32.totalorder %s49, %s52
      %p61 = scmp.eq.s32.totalorder %s30, 3
      %p62 = por %p60, %p61
      %p63 = scmp.ne.s32.totalorder %s52, %s53
      %p64 = scmp.eq.s32.totalorder %s30, 0
      %p65 = por %p63, %p64
      %p66 = scmp.ne.s32.totalorder %s52, %s53
      %p67 = scmp.eq.s32.totalorder %s31, 3
      %p68 = por %p66, %p67
      %p70 = scmp.ne.s32.totalorder %s53, %s69
      %p71 = scmp.eq.s32.totalorder %s31, 0
      %p72 = por %p70, %p71
      %s73 = ssub.s32 %s32, %s44
      %p74 = scmp.eq.s32.totalorder %s73, 0
      %s76 = sadd.s32 %s75, 1
      %s77 = scalar_select %p74, %s75, %s76
      %p80 = pneg %p74
      %p81 = scmp.eq.s32.totalorder %s25, 3
      %p82 = por %p80, %p81
      %p83 = scmp.ne.s32.totalorder %s75, %s78
      %p84 = scmp.eq.s32.totalorder %s25, 0
      %p85 = por %p83, %p84
      %p86 = scmp.ne.s32.totalorder %s75, %s78
      %p87 = scmp.eq.s32.totalorder %s30, 3
      %p88 = por %p86, %p87
      %p89 = scmp.ne.s32.totalorder %s78, %s79
      %p90 = scmp.eq.s32.totalorder %s30, 0
      %p91 = por %p89, %p90
      %p92 = scmp.ne.s32.totalorder %s78, %s79
      %p93 = scmp.eq.s32.totalorder %s31, 3
      %p94 = por %p92, %p93
      %p96 = scmp.ne.s32.totalorder %s79, %s95
      %p97 = scmp.eq.s32.totalorder %s31, 0
      %p98 = por %p96, %p97
      %s99 = ssub.s32 %s32, %s44
      %s100 = ssub.s32 %s33, %s40
      %s101 = sor.u32 %s99, %s100
      %p102 = scmp.eq.s32.totalorder %s101, 0
      %s104 = sadd.s32 %s103, 1
      %s105 = scalar_select %p102, %s103, %s104
      %p108 = pneg %p102
      %p109 = scmp.eq.s32.totalorder %s25, 3
      %p110 = por %p108, %p109
      %p111 = scmp.ne.s32.totalorder %s103, %s106
      %p112 = scmp.eq.s32.totalorder %s25, 0
      %p113 = por %p111, %p112
      %p114 = scmp.ne.s32.totalorder %s103, %s106
      %p115 = scmp.eq.s32.totalorder %s30, 3
      %p116 = por %p114, %p115
      %p117 = scmp.ne.s32.totalorder %s106, %s107
      %p118 = scmp.eq.s32.totalorder %s30, 0
      %p119 = por %p117, %p118
      %p120 = scmp.ne.s32.totalorder %s106, %s107
      %p121 = scmp.eq.s32.totalorder %s31, 3
      %p122 = por %p120, %p121
      %p124 = scmp.ne.s32.totalorder %s107, %s123
      %p125 = scmp.eq.s32.totalorder %s31, 0
      %p126 = por %p124, %p125
      %s128 = sadd.s32 %s127, 1
      %p131 = scmp.eq.s32.totalorder %s25, 3
      %p132 = scmp.ne.s32.totalorder %s127, %s129
      %p133 = scmp.eq.s32.totalorder %s25, 0
      %p134 = por %p132, %p133
      %p135 = scmp.ne.s32.totalorder %s127, %s129
      %p136 = scmp.eq.s32.totalorder %s30, 3
      %p137 = por %p135, %p136
      %p138 = scmp.ne.s32.totalorder %s129, %s130
      %p139 = scmp.eq.s32.totalorder %s30, 0
      %p140 = por %p138, %p139
      %p141 = scmp.ne.s32.totalorder %s129, %s130
      %p142 = scmp.eq.s32.totalorder %s31, 3
      %p143 = por %p141, %p142
      %p145 = scmp.ne.s32.totalorder %s130, %s144
      %p146 = scmp.eq.s32.totalorder %s31, 0
      %p147 = por %p145, %p146
      %s149 = sadd.s32 %s148, 1
      %p152 = scmp.eq.s32.totalorder %s25, 3
      %p153 = scmp.ne.s32.totalorder %s148, %s150
      %p154 = scmp.eq.s32.totalorder %s25, 0
      %p155 = por %p153, %p154
      %p156 = scmp.ne.s32.totalorder %s148, %s150
      %p157 = scmp.eq.s32.totalorder %s30, 3
      %p158 = por %p156, %p157
      %p159 = scmp.ne.s32.totalorder %s150, %s151
      %p160 = scmp.eq.s32.totalorder %s30, 0
      %p161 = por %p159, %p160
      %p162 = scmp.ne.s32.totalorder %s150, %s151
      %p163 = scmp.eq.s32.totalorder %s31, 3
      %p164 = por %p162, %p163
      %p166 = scmp.ne.s32.totalorder %s151, %s165
      %p167 = scmp.eq.s32.totalorder %s31, 0
      %p168 = por %p166, %p167
      %s170 = sadd.s32 %s169, 1
      %p173 = scmp.eq.s32.totalorder %s25, 3
      %p174 = scmp.ne.s32.totalorder %s169, %s171
      %p175 = scmp.eq.s32.totalorder %s25, 0
      %p176 = por %p174, %p175
      %p177 = scmp.ne.s32.totalorder %s169, %s171
      %p178 = scmp.eq.s32.totalorder %s30, 3
      %p179 = por %p177, %p178
      %p180 = scmp.ne.s32.totalorder %s171, %s172
      %p181 = scmp.eq.s32.totalorder %s30, 0
      %p182 = por %p180, %p181
      %p183 = scmp.ne.s32.totalorder %s171, %s172
      %p184 = scmp.eq.s32.totalorder %s31, 3
      %p185 = por %p183, %p184
      %p187 = scmp.ne.s32.totalorder %s172, %s186
      %p188 = scmp.eq.s32.totalorder %s31, 0
      %p189 = por %p187, %p188
      %s191 = sadd.s32 %s190, 1
      %p194 = scmp.eq.s32.totalorder %s25, 3
      %p195 = scmp.ne.s32.totalorder %s190, %s192
      %p196 = scmp.eq.s32.totalorder %s25, 0
      %p197 = por %p195, %p196
      %p198 = scmp.ne.s32.totalorder %s190, %s192
      %p199 = scmp.eq.s32.totalorder %s30, 3
      %p200 = por %p198, %p199
      %p201 = scmp.ne.s32.totalorder %s192, %s193
      %p202 = scmp.eq.s32.totalorder %s30, 0
      %p203 = por %p201, %p202
      %p204 = scmp.ne.s32.totalorder %s192, %s193
      %p205 = scmp.eq.s32.totalorder %s31, 3
      %p206 = por %p204, %p205
      %p208 = scmp.ne.s32.totalorder %s193, %s207
      %p209 = scmp.eq.s32.totalorder %s31, 0
      %p210 = por %p208, %p209
      %s212 = sadd.s32 %s211, 1
      %p215 = scmp.eq.s32.totalorder %s25, 3
      %p216 = scmp.ne.s32.totalorder %s211, %s213
      %p217 = scmp.eq.s32.totalorder %s25, 0
      %p218 = por %p216, %p217
      %p219 = scmp.ne.s32.totalorder %s211, %s213
      %p220 = scmp.eq.s32.totalorder %s30, 3
      %p221 = por %p219, %p220
      %p222 = scmp.ne.s32.totalorder %s213, %s214
      %p223 = scmp.eq.s32.totalorder %s30, 0
      %p224 = por %p222, %p223
      %p225 = scmp.ne.s32.totalorder %s213, %s214
      %p226 = scmp.eq.s32.totalorder %s31, 3
      %p227 = por %p225, %p226
      %p229 = scmp.ne.s32.totalorder %s214, %s228
      %p230 = scmp.eq.s32.totalorder %s31, 0
      %p231 = por %p229, %p230
      %s233 = sadd.s32 %s232, 1
      %p236 = scmp.eq.s32.totalorder %s25, 3
      %p237 = scmp.ne.s32.totalorder %s232, %s234
      %p238 = scmp.eq.s32.totalorder %s25, 0
      %p239 = por %p237, %p238
      %p240 = scmp.ne.s32.totalorder %s232, %s234
      %p241 = scmp.eq.s32.totalorder %s30, 3
      %p242 = por %p240, %p241
      %p243 = scmp.ne.s32.totalorder %s234, %s235
      %p244 = scmp.eq.s32.totalorder %s30, 0
      %p245 = por %p243, %p244
      %p246 = scmp.ne.s32.totalorder %s234, %s235
      %p247 = scmp.eq.s32.totalorder %s31, 3
      %p248 = por %p246, %p247
      %p250 = scmp.ne.s32.totalorder %s235, %s249
      %p251 = scmp.eq.s32.totalorder %s31, 0
      %p252 = por %p250, %p251
      %s254 = sadd.s32 %s253, 1
      %p257 = scmp.eq.s32.totalorder %s25, 3
      %p258 = scmp.ne.s32.totalorder %s253, %s255
      %p259 = scmp.eq.s32.totalorder %s25, 0
      %p260 = por %p258, %p259
      %p261 = scmp.ne.s32.totalorder %s253, %s255
      %p262 = scmp.eq.s32.totalorder %s30, 3
      %p263 = por %p261, %p262
      %p264 = scmp.ne.s32.totalorder %s255, %s256
      %p265 = scmp.eq.s32.totalorder %s30, 0
      %p266 = por %p264, %p265
      %p267 = scmp.ne.s32.totalorder %s255, %s256
      %p268 = scmp.eq.s32.totalorder %s31, 3
      %p269 = por %p267, %p268
      %p271 = scmp.ne.s32.totalorder %s256, %s270
      %p272 = scmp.eq.s32.totalorder %s31, 0
      %p273 = por %p271, %p272
      %s275 = sadd.s32 %s274, 1
      %p278 = scmp.eq.s32.totalorder %s25, 3
      %p279 = scmp.ne.s32.totalorder %s274, %s276
      %p280 = scmp.eq.s32.totalorder %s25, 0
      %p281 = por %p279, %p280
      %p282 = scmp.ne.s32.totalorder %s274, %s276
      %p283 = scmp.eq.s32.totalorder %s30, 3
      %p284 = por %p282, %p283
      %p285 = scmp.ne.s32.totalorder %s276, %s277
      %p286 = scmp.eq.s32.totalorder %s30, 0
      %p287 = por %p285, %p286
      %p288 = scmp.ne.s32.totalorder %s276, %s277
      %p289 = scmp.eq.s32.totalorder %s31, 3
      %p290 = por %p288, %p289
      %p292 = scmp.ne.s32.totalorder %s277, %s291
      %p293 = scmp.eq.s32.totalorder %s31, 0
      %p294 = por %p292, %p293
      %s296 = sadd.s32 %s295, 1
      %p299 = scmp.eq.s32.totalorder %s25, 3
      %p300 = scmp.ne.s32.totalorder %s295, %s297
      %p301 = scmp.eq.s32.totalorder %s25, 0
      %p302 = por %p300, %p301
      %p303 = scmp.ne.s32.totalorder %s295, %s297
      %p304 = scmp.eq.s32.totalorder %s30, 3
      %p305 = por %p303, %p304
      %p306 = scmp.ne.s32.totalorder %s297, %s298
      %p307 = scmp.eq.s32.totalorder %s30, 0
      %p308 = por %p306, %p307
      %p309 = scmp.ne.s32.totalorder %s297, %s298
      %p310 = scmp.eq.s32.totalorder %s31, 3
      %p311 = por %p309, %p310
      %p313 = scmp.ne.s32.totalorder %s298, %s312
      %p314 = scmp.eq.s32.totalorder %s31, 0
      %p315 = por %p313, %p314
      %s317 = sadd.s32 %s316, 1
      %p320 = scmp.eq.s32.totalorder %s25, 3
      %p321 = scmp.ne.s32.totalorder %s316, %s318
      %p322 = scmp.eq.s32.totalorder %s25, 0
      %p323 = por %p321, %p322
      %p324 = scmp.ne.s32.totalorder %s316, %s318
      %p325 = scmp.eq.s32.totalorder %s30, 3
      %p326 = por %p324, %p325
      %p327 = scmp.ne.s32.totalorder %s318, %s319
      %p328 = scmp.eq.s32.totalorder %s30, 0
      %p329 = por %p327, %p328
      %p330 = scmp.ne.s32.totalorder %s318, %s319
      %p331 = scmp.eq.s32.totalorder %s31, 3
      %p332 = por %p330, %p331
      %p334 = scmp.ne.s32.totalorder %s319, %s333
      %p335 = scmp.eq.s32.totalorder %s31, 0
      %p336 = por %p334, %p335
      %s338 = sadd.s32 %s337, 1
      %p341 = scmp.eq.s32.totalorder %s25, 3
      %p342 = scmp.ne.s32.totalorder %s337, %s339
      %p343 = scmp.eq.s32.totalorder %s25, 0
      %p344 = por %p342, %p343
      %p345 = scmp.ne.s32.totalorder %s337, %s339
      %p346 = scmp.eq.s32.totalorder %s30, 3
      %p347 = por %p345, %p346
      %p348 = scmp.ne.s32.totalorder %s339, %s340
      %p349 = scmp.eq.s32.totalorder %s30, 0
      %p350 = por %p348, %p349
      %p351 = scmp.ne.s32.totalorder %s339, %s340
      %p352 = scmp.eq.s32.totalorder %s31, 3
      %p353 = por %p351, %p352
      %p355 = scmp.ne.s32.totalorder %s340, %s354
      %p356 = scmp.eq.s32.totalorder %s31, 0
      %p357 = por %p355, %p356
      %s359 = sadd.s32 %s358, 1
      %p362 = scmp.eq.s32.totalorder %s25, 3
      %p363 = scmp.ne.s32.totalorder %s358, %s360
      %p364 = scmp.eq.s32.totalorder %s25, 0
      %p365 = por %p363, %p364
      %p366 = scmp.ne.s32.totalorder %s358, %s360
      %p367 = scmp.eq.s32.totalorder %s30, 3
      %p368 = por %p366, %p367
      %p369 = scmp.ne.s32.totalorder %s360, %s361
      %p370 = scmp.eq.s32.totalorder %s30, 0
      %p371 = por %p369, %p370
      %p372 = scmp.ne.s32.totalorder %s360, %s361
      %p373 = scmp.eq.s32.totalorder %s31, 3
      %p374 = por %p372, %p373
      %p376 = scmp.ne.s32.totalorder %s361, %s375
      %p377 = scmp.eq.s32.totalorder %s31, 0
      %p378 = por %p376, %p377
      %s380 = sadd.s32 %s379, 1
      %p383 = scmp.eq.s32.totalorder %s25, 3
      %p384 = scmp.ne.s32.totalorder %s379, %s381
      %p385 = scmp.eq.s32.totalorder %s25, 0
      %p386 = por %p384, %p385
      %p387 = scmp.ne.s32.totalorder %s379, %s381
      %p388 = scmp.eq.s32.totalorder %s30, 3
      %p389 = por %p387, %p388
      %p390 = scmp.ne.s32.totalorder %s381, %s382
      %p391 = scmp.eq.s32.totalorder %s30, 0
      %p392 = por %p390, %p391
      %p393 = scmp.ne.s32.totalorder %s381, %s382
      %p394 = scmp.eq.s32.totalorder %s31, 3
      %p395 = por %p393, %p394
      %p397 = scmp.ne.s32.totalorder %s382, %s396
      %p398 = scmp.eq.s32.totalorder %s31, 0
      %p399 = por %p397, %p398
      %s401 = sadd.s32 %s400, 1
      %p404 = scmp.eq.s32.totalorder %s25, 3
      %p405 = scmp.ne.s32.totalorder %s400, %s402
      %p406 = scmp.eq.s32.totalorder %s25, 0
      %p407 = por %p405, %p406
      %p408 = scmp.ne.s32.totalorder %s400, %s402
      %p409 = scmp.eq.s32.totalorder %s30, 3
      %p410 = por %p408, %p409
      %p411 = scmp.ne.s32.totalorder %s402, %s403
      %p412 = scmp.eq.s32.totalorder %s30, 0
      %p413 = por %p411, %p412
      %p414 = scmp.ne.s32.totalorder %s402, %s403
      %p415 = scmp.eq.s32.totalorder %s31, 3
      %p416 = por %p414, %p415
      %p418 = scmp.ne.s32.totalorder %s403, %s417
      %p419 = scmp.eq.s32.totalorder %s31, 0
      %p420 = por %p418, %p419
      %s422 = sadd.s32 %s421, 1
      %p425 = scmp.eq.s32.totalorder %s25, 3
      %p426 = scmp.ne.s32.totalorder %s421, %s423
      %p427 = scmp.eq.s32.totalorder %s25, 0
      %p428 = por %p426, %p427
      %p429 = scmp.ne.s32.totalorder %s421, %s423
      %p430 = scmp.eq.s32.totalorder %s30, 3
      %p431 = por %p429, %p430
      %p432 = scmp.ne.s32.totalorder %s423, %s424
      %p433 = scmp.eq.s32.totalorder %s30, 0
      %p434 = por %p432, %p433
      %p435 = scmp.ne.s32.totalorder %s423, %s424
      %p436 = scmp.eq.s32.totalorder %s31, 3
      %p437 = por %p435, %p436
      %p439 = scmp.ne.s32.totalorder %s424, %s438
      %p440 = scmp.eq.s32.totalorder %s31, 0
      %p441 = por %p439, %p440
      %s443 = sadd.s32 %s442, 1
      %p446 = scmp.eq.s32.totalorder %s25, 3
      %p447 = scmp.ne.s32.totalorder %s442, %s444
      %p448 = scmp.eq.s32.totalorder %s25, 0
      %p449 = por %p447, %p448
      %p450 = scmp.ne.s32.totalorder %s442, %s444
      %p451 = scmp.eq.s32.totalorder %s30, 3
      %p452 = por %p450, %p451
      %p453 = scmp.ne.s32.totalorder %s444, %s445
      %p454 = scmp.eq.s32.totalorder %s30, 0
      %p455 = por %p453, %p454
      %p456 = scmp.ne.s32.totalorder %s444, %s445
      %p457 = scmp.eq.s32.totalorder %s31, 3
      %p458 = por %p456, %p457
      %p460 = scmp.ne.s32.totalorder %s445, %s459
      %p461 = scmp.eq.s32.totalorder %s31, 0
      %p462 = por %p460, %p461
      %s463 = ssub.s32 %s32, %s44
      %p464 = scmp.eq.s32.totalorder %s463, 0
      %s466 = sadd.s32 %s465, 1
      %s467 = scalar_select %p464, %s465, %s466
      %p470 = pneg %p464
      %p471 = scmp.eq.s32.totalorder %s25, 3
      %p472 = por %p470, %p471
      %p473 = scmp.ne.s32.totalorder %s465, %s468
      %p474 = scmp.eq.s32.totalorder %s25, 0
      %p475 = por %p473, %p474
      %p476 = scmp.ne.s32.totalorder %s465, %s468
      %p477 = scmp.eq.s32.totalorder %s30, 3
      %p478 = por %p476, %p477
      %p479 = scmp.ne.s32.totalorder %s468, %s469
      %p480 = scmp.eq.s32.totalorder %s30, 0
      %p481 = por %p479, %p480
      %p482 = scmp.ne.s32.totalorder %s468, %s469
      %p483 = scmp.eq.s32.totalorder %s31, 3
      %p484 = por %p482, %p483
      %p486 = scmp.ne.s32.totalorder %s469, %s485
      %p487 = scmp.eq.s32.totalorder %s31, 0
      %p488 = por %p486, %p487
      %p489 = scmp.le.s32.totalorder 1, %s25
      %p490 = scmp.lt.s32.totalorder %s25, 5
      %p491 = pnand %p489, %p490
      %p492 = pneg %p491
      // Predicated region
      $region9: #{mask_embedder_forward.2} parent=5 // pred_check
        _
      $region10: #{mask_embedder_forward.2} parent=5 // pred_check_branch
        %494 = sbr.rel (%p491) target = $region12
      $region11: #{mask_embedder_forward.2} parent=5 // pred_region
        %s495 = ssub.s32 %s25, 1
        // Predicated region
        $region13: #{mask_embedder_forward.2} parent=11 // pred_check
          %p496 = pneg %p140
        $region14: #{mask_embedder_forward.2} parent=11 // pred_check_branch
          %498 = sbr.rel (%p496) target = $region16
        $region15: #{mask_embedder_forward.2} parent=11 // pred_region
          _
        $region16: #{mask_embedder_forward.2} parent=11 // pred_fallthru
          _
        // Predicated region
        $region17: #{mask_embedder_forward.2} parent=11 // pred_check
          %p499 = pneg %p161
        $region18: #{mask_embedder_forward.2} parent=11 // pred_check_branch
          %501 = sbr.rel (%p499) target = $region20
        $region19: #{mask_embedder_forward.2} parent=11 // pred_region
          _
        $region20: #{mask_embedder_forward.2} parent=11 // pred_fallthru
          _
        // Predicated region
        $region21: #{mask_embedder_forward.2} parent=11 // pred_check
          %p502 = pneg %p182
        $region22: #{mask_embedder_forward.2} parent=11 // pred_check_branch
          %504 = sbr.rel (%p502) target = $region24
        $region23: #{mask_embedder_forward.2} parent=11 // pred_region
          _
        $region24: #{mask_embedder_forward.2} parent=11 // pred_fallthru
          _
        // Predicated region
        $region25: #{mask_embedder_forward.2} parent=11 // pred_check
          %p505 = pneg %p203
        $region26: #{mask_embedder_forward.2} parent=11 // pred_check_branch
          %507 = sbr.rel (%p505) target = $region28
        $region27: #{mask_embedder_forward.2} parent=11 // pred_region
          _
        $region28: #{mask_embedder_forward.2} parent=11 // pred_fallthru
          _
        // Predicated region
        $region29: #{mask_embedder_forward.2} parent=11 // pred_check
          %p508 = pneg %p224
        $region30: #{mask_embedder_forward.2} parent=11 // pred_check_branch
          %510 = sbr.rel (%p508) target = $region32
        $region31: #{mask_embedder_forward.2} parent=11 // pred_region
          _
        $region32: #{mask_embedder_forward.2} parent=11 // pred_fallthru
          _
        // Predicated region
        $region33: #{mask_embedder_forward.2} parent=11 // pred_check
          %p511 = pneg %p245
        $region34: #{mask_embedder_forward.2} parent=11 // pred_check_branch
          %513 = sbr.rel (%p511) target = $region36
        $region35: #{mask_embedder_forward.2} parent=11 // pred_region
          _
        $region36: #{mask_embedder_forward.2} parent=11 // pred_fallthru
          _
        // Predicated region
        $region37: #{mask_embedder_forward.2} parent=11 // pred_check
          %p514 = pneg %p266
        $region38: #{mask_embedder_forward.2} parent=11 // pred_check_branch
          %516 = sbr.rel (%p514) target = $region40
        $region39: #{mask_embedder_forward.2} parent=11 // pred_region
          _
        $region40: #{mask_embedder_forward.2} parent=11 // pred_fallthru
          _
        // Predicated region
        $region41: #{mask_embedder_forward.2} parent=11 // pred_check
          %p517 = pneg %p287
        $region42: #{mask_embedder_forward.2} parent=11 // pred_check_branch
          %519 = sbr.rel (%p517) target = $region44
        $region43: #{mask_embedder_forward.2} parent=11 // pred_region
          _
        $region44: #{mask_embedder_forward.2} parent=11 // pred_fallthru
          _
        // Predicated region
        $region45: #{mask_embedder_forward.2} parent=11 // pred_check
          %p520 = pneg %p308
        $region46: #{mask_embedder_forward.2} parent=11 // pred_check_branch
          %522 = sbr.rel (%p520) target = $region48
        $region47: #{mask_embedder_forward.2} parent=11 // pred_region
          _
        $region48: #{mask_embedder_forward.2} parent=11 // pred_fallthru
          _
        // Predicated region
        $region49: #{mask_embedder_forward.2} parent=11 // pred_check
          %p523 = pneg %p329
        $region50: #{mask_embedder_forward.2} parent=11 // pred_check_branch
          %525 = sbr.rel (%p523) target = $region52
        $region51: #{mask_embedder_forward.2} parent=11 // pred_region
          _
        $region52: #{mask_embedder_forward.2} parent=11 // pred_fallthru
          _
        // Predicated region
        $region53: #{mask_embedder_forward.2} parent=11 // pred_check
          %p526 = pneg %p350
        $region54: #{mask_embedder_forward.2} parent=11 // pred_check_branch
          %528 = sbr.rel (%p526) target = $region56
        $region55: #{mask_embedder_forward.2} parent=11 // pred_region
          _
        $region56: #{mask_embedder_forward.2} parent=11 // pred_fallthru
          _
        // Predicated region
        $region57: #{mask_embedder_forward.2} parent=11 // pred_check
          %p529 = pneg %p371
        $region58: #{mask_embedder_forward.2} parent=11 // pred_check_branch
          %531 = sbr.rel (%p529) target = $region60
        $region59: #{mask_embedder_forward.2} parent=11 // pred_region
          _
        $region60: #{mask_embedder_forward.2} parent=11 // pred_fallthru
          _
        // Predicated region
        $region61: #{mask_embedder_forward.2} parent=11 // pred_check
          %p532 = pneg %p392
        $region62: #{mask_embedder_forward.2} parent=11 // pred_check_branch
          %534 = sbr.rel (%p532) target = $region64
        $region63: #{mask_embedder_forward.2} parent=11 // pred_region
          _
        $region64: #{mask_embedder_forward.2} parent=11 // pred_fallthru
          _
        // Predicated region
        $region65: #{mask_embedder_forward.2} parent=11 // pred_check
          %p535 = pneg %p413
        $region66: #{mask_embedder_forward.2} parent=11 // pred_check_branch
          %537 = sbr.rel (%p535) target = $region68
        $region67: #{mask_embedder_forward.2} parent=11 // pred_region
          _
        $region68: #{mask_embedder_forward.2} parent=11 // pred_fallthru
          _
        // Predicated region
        $region69: #{mask_embedder_forward.2} parent=11 // pred_check
          %p538 = pneg %p434
        $region70: #{mask_embedder_forward.2} parent=11 // pred_check_branch
          %540 = sbr.rel (%p538) target = $region72
        $region71: #{mask_embedder_forward.2} parent=11 // pred_region
          _
        $region72: #{mask_embedder_forward.2} parent=11 // pred_fallthru
          _
        // Predicated region
        $region73: #{mask_embedder_forward.2} parent=11 // pred_check
          %p541 = pneg %p455
        $region74: #{mask_embedder_forward.2} parent=11 // pred_check_branch
          %543 = sbr.rel (%p541) target = $region76
        $region75: #{mask_embedder_forward.2} parent=11 // pred_region
          _
        $region76: #{mask_embedder_forward.2} parent=11 // pred_fallthru
          _
      $region12: #{mask_embedder_forward.2} parent=5 // pred_fallthru
        _
      %p544 = scmp.lt.s32.totalorder %s25, 4
      // Predicated region
      $region77: #{mask_embedder_forward.2} parent=5 // pred_check
        %p545 = pneg %p544
      $region78: #{mask_embedder_forward.2} parent=5 // pred_check_branch
        %547 = sbr.rel (%p545) target = $region80
      $region79: #{mask_embedder_forward.2} parent=5 // pred_region
        // Predicated region
        $region81: #{mask_embedder_forward.2} parent=79 // pred_check
          %p548 = pneg %p59
        $region82: #{mask_embedder_forward.2} parent=79 // pred_check_branch
          %550 = sbr.rel (%p548) target = $region84
        $region83: #{mask_embedder_forward.2} parent=79 // pred_region
          %s551 = sand.u32 %s49, 1
          %s552 = sand.u32 %s49, 1
          %s553 = smul.addr %s552, 512
          %s554 = scalar_lea.vmem [#allocation6], %s553
          %s555 = smul.u32 4, %s33
          %s556 = smul.addr %s32, 128
          %s557 = sadd.s32 %s555, %s556
          %s558 = smul.addr %s557, 8
          %s559 = scalar_lea.vmem %s0, %s558
          // Predicated region
          $region85: #{mask_embedder_forward.2} parent=83 // pred_check
            _
          $region86: #{mask_embedder_forward.2} parent=83 // pred_check_branch
            %561 = sbr.rel (0) target = $region88
          $region87: #{mask_embedder_forward.2} parent=83 // pred_region
            // Predicated region
            $region89: #{mask_embedder_forward.2} parent=87 // pred_check
              _
            $region90: #{mask_embedder_forward.2} parent=87 // pred_check_branch
              %563 = sbr.rel (0) target = $region92
            $region91: #{mask_embedder_forward.2} parent=87 // pred_region
              loop: start=0, step=1, limit=1
              $region93: #{mask_embedder_forward.2} parent=91 // loop_pre_header
                _
              $region94: #{mask_embedder_forward.2} parent=91 // loop_header
                %s565 = sphi 0, %s569
                %p566 = scmp.ge.s32.totalorder %s565, 1
                %s570 = sphi %s559, %s559
                %s571 = sphi %s554, %s554
              $region95: #{mask_embedder_forward.2} parent=91 // loop_header_branch
                %568 = sbr.rel (%p566) target = $region99
              $region96: #{mask_embedder_forward.2} parent=91 // loop_body
                %v572 = vld [vmem:[%s570] sm:$0xff]
                %573 = vst [vmem:[%s571] sm:$0xff] %v572
                %v574 = vld [vmem:[%s570 + $0x8] sm:$0xff]
                %575 = vst [vmem:[%s571 + $0x8] sm:$0xff] %v574
                %v576 = vld [vmem:[%s570 + $0x10] sm:$0xff]
                %577 = vst [vmem:[%s571 + $0x10] sm:$0xff] %v576
                %v578 = vld [vmem:[%s570 + $0x18] sm:$0xff]
                %579 = vst [vmem:[%s571 + $0x18] sm:$0xff] %v578
                %v580 = vld [vmem:[%s570 + $0x40] sm:$0xff]
                %581 = vst [vmem:[%s571 + $0x20] sm:$0xff] %v580
                %v582 = vld [vmem:[%s570 + $0x48] sm:$0xff]
                %583 = vst [vmem:[%s571 + $0x28] sm:$0xff] %v582
                %v584 = vld [vmem:[%s570 + $0x50] sm:$0xff]
                %585 = vst [vmem:[%s571 + $0x30] sm:$0xff] %v584
                %v586 = vld [vmem:[%s570 + $0x58] sm:$0xff]
                %587 = vst [vmem:[%s571 + $0x38] sm:$0xff] %v586
                %v588 = vld [vmem:[%s570 + $0x80] sm:$0xff]
                %589 = vst [vmem:[%s571 + $0x40] sm:$0xff] %v588
                %v590 = vld [vmem:[%s570 + $0x88] sm:$0xff]
                %591 = vst [vmem:[%s571 + $0x48] sm:$0xff] %v590
                %v592 = vld [vmem:[%s570 + $0x90] sm:$0xff]
                %593 = vst [vmem:[%s571 + $0x50] sm:$0xff] %v592
                %v594 = vld [vmem:[%s570 + $0x98] sm:$0xff]
                %595 = vst [vmem:[%s571 + $0x58] sm:$0xff] %v594
                %v596 = vld [vmem:[%s570 + $0xc0] sm:$0xff]
                %597 = vst [vmem:[%s571 + $0x60] sm:$0xff] %v596
                %v598 = vld [vmem:[%s570 + $0xc8] sm:$0xff]
                %599 = vst [vmem:[%s571 + $0x68] sm:$0xff] %v598
                %v600 = vld [vmem:[%s570 + $0xd0] sm:$0xff]
                %601 = vst [vmem:[%s571 + $0x70] sm:$0xff] %v600
                %v602 = vld [vmem:[%s570 + $0xd8] sm:$0xff]
                %603 = vst [vmem:[%s571 + $0x78] sm:$0xff] %v602
                %v604 = vld [vmem:[%s570 + $0x100] sm:$0xff]
                %605 = vst [vmem:[%s571 + $0x80] sm:$0xff] %v604
                %v606 = vld [vmem:[%s570 + $0x108] sm:$0xff]
                %607 = vst [vmem:[%s571 + $0x88] sm:$0xff] %v606
                %v608 = vld [vmem:[%s570 + $0x110] sm:$0xff]
                %609 = vst [vmem:[%s571 + $0x90] sm:$0xff] %v608
                %v610 = vld [vmem:[%s570 + $0x118] sm:$0xff]
                %611 = vst [vmem:[%s571 + $0x98] sm:$0xff] %v610
                %v612 = vld [vmem:[%s570 + $0x140] sm:$0xff]
                %613 = vst [vmem:[%s571 + $0xa0] sm:$0xff] %v612
                %v614 = vld [vmem:[%s570 + $0x148] sm:$0xff]
                %615 = vst [vmem:[%s571 + $0xa8] sm:$0xff] %v614
                %v616 = vld [vmem:[%s570 + $0x150] sm:$0xff]
                %617 = vst [vmem:[%s571 + $0xb0] sm:$0xff] %v616
                %v618 = vld [vmem:[%s570 + $0x158] sm:$0xff]
                %619 = vst [vmem:[%s571 + $0xb8] sm:$0xff] %v618
                %v620 = vld [vmem:[%s570 + $0x180] sm:$0xff]
                %621 = vst [vmem:[%s571 + $0xc0] sm:$0xff] %v620
                %v622 = vld [vmem:[%s570 + $0x188] sm:$0xff]
                %623 = vst [vmem:[%s571 + $0xc8] sm:$0xff] %v622
                %v624 = vld [vmem:[%s570 + $0x190] sm:$0xff]
                %625 = vst [vmem:[%s571 + $0xd0] sm:$0xff] %v624
                %v626 = vld [vmem:[%s570 + $0x198] sm:$0xff]
                %627 = vst [vmem:[%s571 + $0xd8] sm:$0xff] %v626
                %v628 = vld [vmem:[%s570 + $0x1c0] sm:$0xff]
                %629 = vst [vmem:[%s571 + $0xe0] sm:$0xff] %v628
                %v630 = vld [vmem:[%s570 + $0x1c8] sm:$0xff]
                %631 = vst [vmem:[%s571 + $0xe8] sm:$0xff] %v630
                %v632 = vld [vmem:[%s570 + $0x1d0] sm:$0xff]
                %633 = vst [vmem:[%s571 + $0xf0] sm:$0xff] %v632
                %v634 = vld [vmem:[%s570 + $0x1d8] sm:$0xff]
                %635 = vst [vmem:[%s571 + $0xf8] sm:$0xff] %v634
                %v636 = vld [vmem:[%s570 + $0x200] sm:$0xff]
                %637 = vst [vmem:[%s571 + $0x100] sm:$0xff] %v636
                %v638 = vld [vmem:[%s570 + $0x208] sm:$0xff]
                %639 = vst [vmem:[%s571 + $0x108] sm:$0xff] %v638
                %v640 = vld [vmem:[%s570 + $0x210] sm:$0xff]
                %641 = vst [vmem:[%s571 + $0x110] sm:$0xff] %v640
                %v642 = vld [vmem:[%s570 + $0x218] sm:$0xff]
                %643 = vst [vmem:[%s571 + $0x118] sm:$0xff] %v642
                %v644 = vld [vmem:[%s570 + $0x240] sm:$0xff]
                %645 = vst [vmem:[%s571 + $0x120] sm:$0xff] %v644
                %v646 = vld [vmem:[%s570 + $0x248] sm:$0xff]
                %647 = vst [vmem:[%s571 + $0x128] sm:$0xff] %v646
                %v648 = vld [vmem:[%s570 + $0x250] sm:$0xff]
                %649 = vst [vmem:[%s571 + $0x130] sm:$0xff] %v648
                %v650 = vld [vmem:[%s570 + $0x258] sm:$0xff]
                %651 = vst [vmem:[%s571 + $0x138] sm:$0xff] %v650
                %v652 = vld [vmem:[%s570 + $0x280] sm:$0xff]
                %653 = vst [vmem:[%s571 + $0x140] sm:$0xff] %v652
                %v654 = vld [vmem:[%s570 + $0x288] sm:$0xff]
                %655 = vst [vmem:[%s571 + $0x148] sm:$0xff] %v654
                %v656 = vld [vmem:[%s570 + $0x290] sm:$0xff]
                %657 = vst [vmem:[%s571 + $0x150] sm:$0xff] %v656
                %v658 = vld [vmem:[%s570 + $0x298] sm:$0xff]
                %659 = vst [vmem:[%s571 + $0x158] sm:$0xff] %v658
                %v660 = vld [vmem:[%s570 + $0x2c0] sm:$0xff]
                %661 = vst [vmem:[%s571 + $0x160] sm:$0xff] %v660
                %v662 = vld [vmem:[%s570 + $0x2c8] sm:$0xff]
                %663 = vst [vmem:[%s571 + $0x168] sm:$0xff] %v662
                %v664 = vld [vmem:[%s570 + $0x2d0] sm:$0xff]
                %665 = vst [vmem:[%s571 + $0x170] sm:$0xff] %v664
                %v666 = vld [vmem:[%s570 + $0x2d8] sm:$0xff]
                %667 = vst [vmem:[%s571 + $0x178] sm:$0xff] %v666
                %v668 = vld [vmem:[%s570 + $0x300] sm:$0xff]
                %669 = vst [vmem:[%s571 + $0x180] sm:$0xff] %v668
                %v670 = vld [vmem:[%s570 + $0x308] sm:$0xff]
                %671 = vst [vmem:[%s571 + $0x188] sm:$0xff] %v670
                %v672 = vld [vmem:[%s570 + $0x310] sm:$0xff]
                %673 = vst [vmem:[%s571 + $0x190] sm:$0xff] %v672
                %v674 = vld [vmem:[%s570 + $0x318] sm:$0xff]
                %675 = vst [vmem:[%s571 + $0x198] sm:$0xff] %v674
                %v676 = vld [vmem:[%s570 + $0x340] sm:$0xff]
                %677 = vst [vmem:[%s571 + $0x1a0] sm:$0xff] %v676
                %v678 = vld [vmem:[%s570 + $0x348] sm:$0xff]
                %679 = vst [vmem:[%s571 + $0x1a8] sm:$0xff] %v678
                %v680 = vld [vmem:[%s570 + $0x350] sm:$0xff]
                %681 = vst [vmem:[%s571 + $0x1b0] sm:$0xff] %v680
                %v682 = vld [vmem:[%s570 + $0x358] sm:$0xff]
                %683 = vst [vmem:[%s571 + $0x1b8] sm:$0xff] %v682
                %v684 = vld [vmem:[%s570 + $0x380] sm:$0xff]
                %685 = vst [vmem:[%s571 + $0x1c0] sm:$0xff] %v684
                %v686 = vld [vmem:[%s570 + $0x388] sm:$0xff]
                %687 = vst [vmem:[%s571 + $0x1c8] sm:$0xff] %v686
                %v688 = vld [vmem:[%s570 + $0x390] sm:$0xff]
                %689 = vst [vmem:[%s571 + $0x1d0] sm:$0xff] %v688
                %v690 = vld [vmem:[%s570 + $0x398] sm:$0xff]
                %691 = vst [vmem:[%s571 + $0x1d8] sm:$0xff] %v690
                %v692 = vld [vmem:[%s570 + $0x3c0] sm:$0xff]
                %693 = vst [vmem:[%s571 + $0x1e0] sm:$0xff] %v692
                %v694 = vld [vmem:[%s570 + $0x3c8] sm:$0xff]
                %695 = vst [vmem:[%s571 + $0x1e8] sm:$0xff] %v694
                %v696 = vld [vmem:[%s570 + $0x3d0] sm:$0xff]
                %697 = vst [vmem:[%s571 + $0x1f0] sm:$0xff] %v696
                %v698 = vld [vmem:[%s570 + $0x3d8] sm:$0xff]
                %699 = vst [vmem:[%s571 + $0x1f8] sm:$0xff] %v698
              $region97: #{mask_embedder_forward.2} parent=91 // loop_footer
                %s569 = sadd.s32 1, %s565
              $region98: #{mask_embedder_forward.2} parent=91 // loop_footer_branch
                %564 = sbr.rel target = $region94
              $region99: #{mask_embedder_forward.2} parent=91 // loop_exit
                _
            $region92: #{mask_embedder_forward.2} parent=87 // pred_fallthru
              _
            // Predicated region
            $region100: #{mask_embedder_forward.2} parent=87 // pred_check
              _
            $region101: #{mask_embedder_forward.2} parent=87 // pred_check_branch
              %701 = sbr.rel target = $region103
            $region102: #{mask_embedder_forward.2} parent=87 // pred_region
              _
            $region103: #{mask_embedder_forward.2} parent=87 // pred_fallthru
              _
          $region88: #{mask_embedder_forward.2} parent=83 // pred_fallthru
            _
          %702 = vnop
        $region84: #{mask_embedder_forward.2} parent=79 // pred_fallthru
          _
        // Predicated region
        $region104: #{mask_embedder_forward.2} parent=79 // pred_check
          %p703 = pneg %p85
        $region105: #{mask_embedder_forward.2} parent=79 // pred_check_branch
          %705 = sbr.rel (%p703) target = $region107
        $region106: #{mask_embedder_forward.2} parent=79 // pred_region
          %p706 = scmp.lt.s32.totalorder %s32, 1
          %s707 = scalar_select %p706, %s32, 1
          %s708 = smul.addr %s707, 8
          %s709 = scalar_lea.vmem %s1, %s708
        $region107: #{mask_embedder_forward.2} parent=79 // pred_fallthru
          _
        // Predicated region
        $region108: #{mask_embedder_forward.2} parent=79 // pred_check
          %p710 = pneg %p113
        $region109: #{mask_embedder_forward.2} parent=79 // pred_check_branch
          %712 = sbr.rel (%p710) target = $region111
        $region110: #{mask_embedder_forward.2} parent=79 // pred_region
          %s713 = smul.u32 4, %s33
          %p714 = scmp.lt.s32.totalorder %s32, 1
          %s715 = scalar_select %p714, %s32, 1
          %p716 = scmp.lt.s32.totalorder %s713, 7
          %s717 = scalar_select %p716, %s713, 7
          %s718 = smul.addr %s715, 8
          %s719 = sadd.s32 %s717, %s718
          %s720 = smul.addr %s719, 8
          %s721 = scalar_lea.vmem %s2, %s720
          %s722 = smul.u32 4, %s33
        $region111: #{mask_embedder_forward.2} parent=79 // pred_fallthru
          _
      $region80: #{mask_embedder_forward.2} parent=5 // pred_fallthru
        _
      %p723 = scmp.le.s32.totalorder 1, %s25
      %p724 = scmp.lt.s32.totalorder %s25, 5
      %p725 = pnand %p723, %p724
      %p726 = pneg %p725
      // Predicated region
      $region112: #{mask_embedder_forward.2} parent=5 // pred_check
        _
      $region113: #{mask_embedder_forward.2} parent=5 // pred_check_branch
        %728 = sbr.rel (%p725) target = $region115
      $region114: #{mask_embedder_forward.2} parent=5 // pred_region
        %s729 = ssub.s32 %s25, 1
        %s730 = sand.u32 %s52, 1
        %s731 = sand.u32 %s52, 1
        %s732 = smul.addr %s731, 512
        %s733 = scalar_lea.vmem [#allocation6], %s732
        // Predicated region
        $region116: #{mask_embedder_forward.2} parent=114 // pred_check
          %p734 = pneg %p65
        $region117: #{mask_embedder_forward.2} parent=114 // pred_check_branch
          %736 = sbr.rel (%p734) target = $region119
        $region118: #{mask_embedder_forward.2} parent=114 // pred_region
          _
        $region119: #{mask_embedder_forward.2} parent=114 // pred_fallthru
          _
        %s737 = sand.u32 %s52, 1
        %s738 = sand.u32 %s52, 1
        %s739 = smul.addr %s738, 512
        %s740 = scalar_lea.vmem [#allocation6], %s739
        %p741 = pneg %p65
        %p742 = pneg %p62
        %p743 = scmp.lt.s32.totalorder %s34, 1
        %s744 = scalar_select %p743, %s34, 1
        %s745 = smul.addr %s744, 8
        %s746 = scalar_lea.vmem %s1, %s745
        %p747 = pneg %p91
        %p748 = pneg %p88
        %s749 = smul.u32 4, %s35
        %p750 = scmp.lt.s32.totalorder %s34, 1
        %s751 = scalar_select %p750, %s34, 1
        %p752 = scmp.lt.s32.totalorder %s749, 7
        %s753 = scalar_select %p752, %s749, 7
        %s754 = smul.addr %s751, 8
        %s755 = sadd.s32 %s753, %s754
        %s756 = smul.addr %s755, 8
        %s757 = scalar_lea.vmem %s2, %s756
        %p758 = pneg %p119
        %p759 = pneg %p116
        %p760 = pneg %p140
        %p761 = pneg %p137
        %p762 = pneg %p161
        %p763 = pneg %p158
        %p764 = pneg %p182
        %p765 = pneg %p179
        %p766 = pneg %p203
        %p767 = pneg %p200
        %p768 = pneg %p224
        %p769 = pneg %p221
        %p770 = pneg %p245
        %p771 = pneg %p242
        %p772 = pneg %p266
        %p773 = pneg %p263
        %p774 = pneg %p287
        %p775 = pneg %p284
        %p776 = pneg %p308
        %p777 = pneg %p305
        %p778 = pneg %p329
        %p779 = pneg %p326
        %p780 = pneg %p350
        %p781 = pneg %p347
        %p782 = pneg %p371
        %p783 = pneg %p368
        %p784 = pneg %p392
        %p785 = pneg %p389
        %p786 = pneg %p413
        %p787 = pneg %p410
        %p788 = pneg %p434
        %p789 = pneg %p431
        %p790 = pneg %p455
        %p791 = pneg %p452
        %p792 = pneg %p481
        %p793 = pneg %p478
        %p794 = scmp.lt.s32.totalorder %s34, 1
        %s795 = scalar_select %p794, %s34, 1
        %s796 = smul.addr %s795, 8
        %s797 = scalar_lea.vmem %s19, %s796
        %s798 = smul.u32 4, %s35
        %p799 = scmp.lt.s32.totalorder %s34, 1
        %s800 = scalar_select %p799, %s34, 1
        %s801 = smul.addr %s800, 8
        %s802 = scalar_lea.vmem %s1, %s801
        %s803 = smul.u32 4, %s35
        %p804 = scmp.lt.s32.totalorder %s34, 1
        %s805 = scalar_select %p804, %s34, 1
        %p806 = scmp.lt.s32.totalorder %s803, 7
        %s807 = scalar_select %p806, %s803, 7
        %s808 = smul.addr %s805, 8
        %s809 = sadd.s32 %s807, %s808
        %s810 = smul.addr %s809, 8
        %s811 = scalar_lea.vmem %s2, %s810
        %s812 = smul.u32 4, %s35
        %p813 = scmp.lt.s32.totalorder %s34, 1
        %s814 = scalar_select %p813, %s34, 1
        %s815 = smul.addr %s814, 8
        %s816 = scalar_lea.vmem %s19, %s815
        %p818 = scmp.eq.s32.totalorder %s35, 0
        // Predicated region
        $region120: #{mask_embedder_forward.2} parent=114 // pred_check
          %p819 = pneg %p818
        $region121: #{mask_embedder_forward.2} parent=114 // pred_check_branch
          %821 = sbr.rel (%p819) target = $region123
        $region122: #{mask_embedder_forward.2} parent=114 // pred_region
          %v822 = vld [vmem:[%s802] sm:$0xff]
          %v823 = vpack.c.bf16 %v822, %v822
          %v824 = vld [vmem:[%s11] sm:$0xf]
          %v825 = vld [vmem:[%s11 + $0x4] sm:$0xf]
          %v826 = vld [vmem:[%s11 + $0x8] sm:$0xf]
          %v827 = vld [vmem:[%s11 + $0xc] sm:$0xf]
          %v828 = vld [vmem:[%s11 + $0x10] sm:$0xf]
          %v829 = vld [vmem:[%s11 + $0x14] sm:$0xf]
          %v830 = vld [vmem:[%s11 + $0x18] sm:$0xf]
          %v831 = vld [vmem:[%s11 + $0x1c] sm:$0xf]
          %v832 = vld [vmem:[%s11 + $0x20] sm:$0xf]
          %v833 = vld [vmem:[%s11 + $0x24] sm:$0xf]
          %v834 = vld [vmem:[%s11 + $0x28] sm:$0xf]
          %v835 = vld [vmem:[%s11 + $0x2c] sm:$0xf]
          %v836 = vld [vmem:[%s11 + $0x30] sm:$0xf]
          %v837 = vld [vmem:[%s11 + $0x34] sm:$0xf]
          %v838 = vld [vmem:[%s11 + $0x38] sm:$0xf]
          %v839 = vld [vmem:[%s11 + $0x3c] sm:$0xf]
          %v840 = vld [vmem:[%s12] sm:$0x1]
          %v842 = vlaneseq
          %v843 = vshrl.u32 %v842, 7
          %v844 = vsub.s32 0, %v843
          %v845 = vrot.slane %v840, %v844
          %v863 = vunpack.c.l.b16 %v824
          %v864 = vunpack.c.l.b16 %v825
          %v865 = vunpack.c.l.b16 %v826
          %v866 = vunpack.c.l.b16 %v827
          %v867 = vunpack.c.l.b16 %v828
          %v868 = vunpack.c.l.b16 %v829
          %v869 = vunpack.c.l.b16 %v830
          %v870 = vunpack.c.l.b16 %v831
          %v871 = vunpack.c.l.b16 %v832
          %v872 = vunpack.c.l.b16 %v833
          %v873 = vunpack.c.l.b16 %v834
          %v874 = vunpack.c.l.b16 %v835
          %v875 = vunpack.c.l.b16 %v836
          %v876 = vunpack.c.l.b16 %v837
          %v877 = vunpack.c.l.b16 %v838
          %v878 = vunpack.c.l.b16 %v839
          %v879 = vpack.c.b16 %v864, %v863
          %v880 = vpack.c.b16 %v866, %v865
          %v881 = vpack.c.b16 %v868, %v867
          %v882 = vpack.c.b16 %v870, %v869
          %v883 = vpack.c.b16 %v872, %v871
          %v884 = vpack.c.b16 %v874, %v873
          %v885 = vpack.c.b16 %v876, %v875
          %v886 = vpack.c.b16 %v878, %v877
          %895 = vmatprep.subr.bf16.mxu0 0
          %896 = vmatpush1.bf16.msra.mxu0 %v886
          %897 = vmatprep.subr.bf16.mxu0 0
          %898 = vmatpush1.bf16.msra.mxu0 %v885
          %899 = vmatprep.subr.bf16.mxu0 0
          %900 = vmatpush1.bf16.msra.mxu0 %v884
          %901 = vmatprep.subr.bf16.mxu0 0
          %902 = vmatpush1.bf16.msra.mxu0 %v883
          %903 = vmatprep.subr.bf16.mxu0 0
          %904 = vmatpush1.bf16.msra.mxu0 %v882
          %905 = vmatprep.subr.bf16.mxu0 0
          %906 = vmatpush1.bf16.msra.mxu0 %v881
          %907 = vmatprep.subr.bf16.mxu0 0
          %908 = vmatpush1.bf16.msra.mxu0 %v880
          %909 = vmatprep.subr.bf16.mxu0 0
          %910 = vmatpush1.bf16.msra.mxu0 %v879
          %911 = vmatprep.subr.bf16.mxu0 0
          %912 = vmatpush2.bf16.msra.mxu0 0
          %913 = vmatprep.subr.bf16.mxu0 0
          %914 = vmatpush2.bf16.msra.mxu0 0
          %915 = vmatprep.subr.bf16.mxu0 0
          %916 = vmatpush2.bf16.msra.mxu0 0
          %917 = vmatprep.subr.bf16.mxu0 0
          %918 = vmatpush2.bf16.msra.mxu0 0
          %919 = vmatprep.subr.bf16.mxu0 0
          %920 = vmatpush2.bf16.msra.mxu0 0
          %921 = vmatprep.subr.bf16.mxu0 0
          %922 = vmatpush2.bf16.msra.mxu0 0
          %923 = vmatprep.subr.bf16.mxu0 0
          %924 = vmatpush2.bf16.msra.mxu0 0
          %925 = vmatprep.subr.bf16.mxu0 0
          %926 = vmatpush2.bf16.msra.mxu0 0
          %927 = vmatprep.mubr.bf16.mxu0 0
          %928 = vmatmul.mubr.bf16.gmra.mxu0 %v823
          %v929 = vpop.f32.mrf.mxu0
          %v930 = vadd.f32 %v845, %v929
          %v931 = vpop.f32.mrf.mxu0
          %v932 = vpop.f32.mrf.mxu0
          %v933 = vpop.f32.mrf.mxu0
          %934 = vdwg.mxu0
          %935 = vst [vmem:[#allocation2] sm:$0xff] %v930
          %vm936 = vcmask 7168
          %937 = vst.msk [vmem:[#allocation3] sm:$0xff] %vm936, -inf
          %938 = vst.msk [vmem:[#allocation4] sm:$0xff] %vm936, 0.0
          %939 = vst [vmem:[#allocation5] sm:$0xff] 0.0
        $region123: #{mask_embedder_forward.2} parent=114 // pred_fallthru
          _
        %v940 = vld [vmem:[%s733] sm:$0xff]
        %v941 = vld [vmem:[%s733 + $0x8] sm:$0xff]
        %v942 = vld [vmem:[%s733 + $0x10] sm:$0xff]
        %v943 = vld [vmem:[%s733 + $0x18] sm:$0xff]
        %v944 = vld [vmem:[%s733 + $0x20] sm:$0xff]
        %v945 = vld [vmem:[%s733 + $0x28] sm:$0xff]
        %v946 = vld [vmem:[%s733 + $0x30] sm:$0xff]
        %v947 = vld [vmem:[%s733 + $0x38] sm:$0xff]
        %v948 = vld [vmem:[%s733 + $0x40] sm:$0xff]
        %v949 = vld [vmem:[%s733 + $0x48] sm:$0xff]
        %v950 = vld [vmem:[%s733 + $0x50] sm:$0xff]
        %v951 = vld [vmem:[%s733 + $0x58] sm:$0xff]
        %v952 = vld [vmem:[%s733 + $0x60] sm:$0xff]
        %v953 = vld [vmem:[%s733 + $0x68] sm:$0xff]
        %v954 = vld [vmem:[%s733 + $0x70] sm:$0xff]
        %v955 = vld [vmem:[%s733 + $0x78] sm:$0xff]
        %v956 = vld [vmem:[%s733 + $0x80] sm:$0xff]
        %v957 = vld [vmem:[%s733 + $0x88] sm:$0xff]
        %v958 = vld [vmem:[%s733 + $0x90] sm:$0xff]
        %v959 = vld [vmem:[%s733 + $0x98] sm:$0xff]
        %v960 = vld [vmem:[%s733 + $0xa0] sm:$0xff]
        %v961 = vld [vmem:[%s733 + $0xa8] sm:$0xff]
        %v962 = vld [vmem:[%s733 + $0xb0] sm:$0xff]
        %v963 = vld [vmem:[%s733 + $0xb8] sm:$0xff]
        %v964 = vld [vmem:[%s733 + $0xc0] sm:$0xff]
        %v965 = vld [vmem:[%s733 + $0xc8] sm:$0xff]
        %v966 = vld [vmem:[%s733 + $0xd0] sm:$0xff]
        %v967 = vld [vmem:[%s733 + $0xd8] sm:$0xff]
        %v968 = vld [vmem:[%s733 + $0xe0] sm:$0xff]
        %v969 = vld [vmem:[%s733 + $0xe8] sm:$0xff]
        %v970 = vld [vmem:[%s733 + $0xf0] sm:$0xff]
        %v971 = vld [vmem:[%s733 + $0xf8] sm:$0xff]
        %v972 = vld [vmem:[%s733 + $0x100] sm:$0xff]
        %v973 = vld [vmem:[%s733 + $0x108] sm:$0xff]
        %v974 = vld [vmem:[%s733 + $0x110] sm:$0xff]
        %v975 = vld [vmem:[%s733 + $0x118] sm:$0xff]
        %v976 = vld [vmem:[%s733 + $0x120] sm:$0xff]
        %v977 = vld [vmem:[%s733 + $0x128] sm:$0xff]
        %v978 = vld [vmem:[%s733 + $0x130] sm:$0xff]
        %v979 = vld [vmem:[%s733 + $0x138] sm:$0xff]
        %v980 = vld [vmem:[%s733 + $0x140] sm:$0xff]
        %v981 = vld [vmem:[%s733 + $0x148] sm:$0xff]
        %v982 = vld [vmem:[%s733 + $0x150] sm:$0xff]
        %v983 = vld [vmem:[%s733 + $0x158] sm:$0xff]
        %v984 = vld [vmem:[%s733 + $0x160] sm:$0xff]
        %v985 = vld [vmem:[%s733 + $0x168] sm:$0xff]
        %v986 = vld [vmem:[%s733 + $0x170] sm:$0xff]
        %v987 = vld [vmem:[%s733 + $0x178] sm:$0xff]
        %v988 = vld [vmem:[%s733 + $0x180] sm:$0xff]
        %v989 = vld [vmem:[%s733 + $0x188] sm:$0xff]
        %v990 = vld [vmem:[%s733 + $0x190] sm:$0xff]
        %v991 = vld [vmem:[%s733 + $0x198] sm:$0xff]
        %v992 = vld [vmem:[%s733 + $0x1a0] sm:$0xff]
        %v993 = vld [vmem:[%s733 + $0x1a8] sm:$0xff]
        %v994 = vld [vmem:[%s733 + $0x1b0] sm:$0xff]
        %v995 = vld [vmem:[%s733 + $0x1b8] sm:$0xff]
        %v996 = vld [vmem:[%s733 + $0x1c0] sm:$0xff]
        %v997 = vld [vmem:[%s733 + $0x1c8] sm:$0xff]
        %v998 = vld [vmem:[%s733 + $0x1d0] sm:$0xff]
        %v999 = vld [vmem:[%s733 + $0x1d8] sm:$0xff]
        %v1000 = vld [vmem:[%s733 + $0x1e0] sm:$0xff]
        %v1001 = vld [vmem:[%s733 + $0x1e8] sm:$0xff]
        %v1002 = vld [vmem:[%s733 + $0x1f0] sm:$0xff]
        %v1003 = vld [vmem:[%s733 + $0x1f8] sm:$0xff]
        %1004 = vxpose.xlu0.b32.start [1/16] %v940, 128
        %1005 = vxpose.xlu0.b32.cont [2/16] %v944, 128
        %1006 = vxpose.xlu0.b32.cont [3/16] %v948, 128
        %1007 = vxpose.xlu0.b32.cont [4/16] %v952, 128
        %1008 = vxpose.xlu0.b32.cont [5/16] %v956, 128
        %1009 = vxpose.xlu0.b32.cont [6/16] %v960, 128
        %1010 = vxpose.xlu0.b32.cont [7/16] %v964, 128
        %1011 = vxpose.xlu0.b32.cont [8/16] %v968, 128
        %1012 = vxpose.xlu0.b32.cont [9/16] %v972, 128
        %1013 = vxpose.xlu0.b32.cont [10/16] %v976, 128
        %1014 = vxpose.xlu0.b32.cont [11/16] %v980, 128
        %1015 = vxpose.xlu0.b32.cont [12/16] %v984, 128
        %1016 = vxpose.xlu0.b32.cont [13/16] %v988, 128
        %1017 = vxpose.xlu0.b32.cont [14/16] %v992, 128
        %1018 = vxpose.xlu0.b32.cont [15/16] %v996, 128
        %1019 = vxpose.xlu0.b32.end [16/16] %v1000, 128
        %v1020 = vpop.trf.xlu0
        %v1021 = vpop.trf.xlu0
        %v1022 = vpop.trf.xlu0
        %v1023 = vpop.trf.xlu0
        %v1024 = vpop.trf.xlu0
        %v1025 = vpop.trf.xlu0
        %v1026 = vpop.trf.xlu0
        %v1027 = vpop.trf.xlu0
        %v1028 = vpop.trf.xlu0
        %v1029 = vpop.trf.xlu0
        %v1030 = vpop.trf.xlu0
        %v1031 = vpop.trf.xlu0
        %v1032 = vpop.trf.xlu0
        %v1033 = vpop.trf.xlu0
        %v1034 = vpop.trf.xlu0
        %v1035 = vpop.trf.xlu0
        %1036 = vxpose.xlu0.b32.start [1/16] %v941, 128
        %1037 = vxpose.xlu0.b32.cont [2/16] %v945, 128
        %1038 = vxpose.xlu0.b32.cont [3/16] %v949, 128
        %1039 = vxpose.xlu0.b32.cont [4/16] %v953, 128
        %1040 = vxpose.xlu0.b32.cont [5/16] %v957, 128
        %1041 = vxpose.xlu0.b32.cont [6/16] %v961, 128
        %1042 = vxpose.xlu0.b32.cont [7/16] %v965, 128
        %1043 = vxpose.xlu0.b32.cont [8/16] %v969, 128
        %1044 = vxpose.xlu0.b32.cont [9/16] %v973, 128
        %1045 = vxpose.xlu0.b32.cont [10/16] %v977, 128
        %1046 = vxpose.xlu0.b32.cont [11/16] %v981, 128
        %1047 = vxpose.xlu0.b32.cont [12/16] %v985, 128
        %1048 = vxpose.xlu0.b32.cont [13/16] %v989, 128
        %1049 = vxpose.xlu0.b32.cont [14/16] %v993, 128
        %1050 = vxpose.xlu0.b32.cont [15/16] %v997, 128
        %1051 = vxpose.xlu0.b32.end [16/16] %v1001, 128
        %v1052 = vpop.trf.xlu0
        %v1053 = vpop.trf.xlu0
        %v1054 = vpop.trf.xlu0
        %v1055 = vpop.trf.xlu0
        %v1056 = vpop.trf.xlu0
        %v1057 = vpop.trf.xlu0
        %v1058 = vpop.trf.xlu0
        %v1059 = vpop.trf.xlu0
        %v1060 = vpop.trf.xlu0
        %v1061 = vpop.trf.xlu0
        %v1062 = vpop.trf.xlu0
        %v1063 = vpop.trf.xlu0
        %v1064 = vpop.trf.xlu0
        %v1065 = vpop.trf.xlu0
        %v1066 = vpop.trf.xlu0
        %v1067 = vpop.trf.xlu0
        %1068 = vxpose.xlu0.b32.start [1/16] %v942, 128
        %1069 = vxpose.xlu0.b32.cont [2/16] %v946, 128
        %1070 = vxpose.xlu0.b32.cont [3/16] %v950, 128
        %1071 = vxpose.xlu0.b32.cont [4/16] %v954, 128
        %1072 = vxpose.xlu0.b32.cont [5/16] %v958, 128
        %1073 = vxpose.xlu0.b32.cont [6/16] %v962, 128
        %1074 = vxpose.xlu0.b32.cont [7/16] %v966, 128
        %1075 = vxpose.xlu0.b32.cont [8/16] %v970, 128
        %1076 = vxpose.xlu0.b32.cont [9/16] %v974, 128
        %1077 = vxpose.xlu0.b32.cont [10/16] %v978, 128
        %1078 = vxpose.xlu0.b32.cont [11/16] %v982, 128
        %1079 = vxpose.xlu0.b32.cont [12/16] %v986, 128
        %1080 = vxpose.xlu0.b32.cont [13/16] %v990, 128
        %1081 = vxpose.xlu0.b32.cont [14/16] %v994, 128
        %1082 = vxpose.xlu0.b32.cont [15/16] %v998, 128
        %1083 = vxpose.xlu0.b32.end [16/16] %v1002, 128
        %v1084 = vpop.trf.xlu0
        %v1085 = vpop.trf.xlu0
        %v1086 = vpop.trf.xlu0
        %v1087 = vpop.trf.xlu0
        %v1088 = vpop.trf.xlu0
        %v1089 = vpop.trf.xlu0
        %v1090 = vpop.trf.xlu0
        %v1091 = vpop.trf.xlu0
        %v1092 = vpop.trf.xlu0
        %v1093 = vpop.trf.xlu0
        %v1094 = vpop.trf.xlu0
        %v1095 = vpop.trf.xlu0
        %v1096 = vpop.trf.xlu0
        %v1097 = vpop.trf.xlu0
        %v1098 = vpop.trf.xlu0
        %v1099 = vpop.trf.xlu0
        %1100 = vxpose.xlu0.b32.start [1/16] %v943, 128
        %1101 = vxpose.xlu0.b32.cont [2/16] %v947, 128
        %1102 = vxpose.xlu0.b32.cont [3/16] %v951, 128
        %1103 = vxpose.xlu0.b32.cont [4/16] %v955, 128
        %1104 = vxpose.xlu0.b32.cont [5/16] %v959, 128
        %1105 = vxpose.xlu0.b32.cont [6/16] %v963, 128
        %1106 = vxpose.xlu0.b32.cont [7/16] %v967, 128
        %1107 = vxpose.xlu0.b32.cont [8/16] %v971, 128
        %1108 = vxpose.xlu0.b32.cont [9/16] %v975, 128
        %1109 = vxpose.xlu0.b32.cont [10/16] %v979, 128
        %1110 = vxpose.xlu0.b32.cont [11/16] %v983, 128
        %1111 = vxpose.xlu0.b32.cont [12/16] %v987, 128
        %1112 = vxpose.xlu0.b32.cont [13/16] %v991, 128
        %1113 = vxpose.xlu0.b32.cont [14/16] %v995, 128
        %1114 = vxpose.xlu0.b32.cont [15/16] %v999, 128
        %1115 = vxpose.xlu0.b32.end [16/16] %v1003, 128
        %v1116 = vpop.trf.xlu0
        %v1117 = vpop.trf.xlu0
        %v1118 = vpop.trf.xlu0
        %v1119 = vpop.trf.xlu0
        %v1120 = vpop.trf.xlu0
        %v1121 = vpop.trf.xlu0
        %v1122 = vpop.trf.xlu0
        %v1123 = vpop.trf.xlu0
        %v1124 = vpop.trf.xlu0
        %v1125 = vpop.trf.xlu0
        %v1126 = vpop.trf.xlu0
        %v1127 = vpop.trf.xlu0
        %v1128 = vpop.trf.xlu0
        %v1129 = vpop.trf.xlu0
        %v1130 = vpop.trf.xlu0
        %v1131 = vpop.trf.xlu0
        %v1132 = vpack.c.bf16 %v1021, %v1020
        %v1133 = vpack.c.bf16 %v1023, %v1022
        %v1134 = vpack.c.bf16 %v1025, %v1024
        %v1135 = vpack.c.bf16 %v1027, %v1026
        %v1136 = vpack.c.bf16 %v1029, %v1028
        %v1137 = vpack.c.bf16 %v1031, %v1030
        %v1138 = vpack.c.bf16 %v1033, %v1032
        %v1139 = vpack.c.bf16 %v1035, %v1034
        %v1140 = vpack.c.bf16 %v1053, %v1052
        %v1141 = vpack.c.bf16 %v1055, %v1054
        %v1142 = vpack.c.bf16 %v1057, %v1056
        %v1143 = vpack.c.bf16 %v1059, %v1058
        %v1144 = vpack.c.bf16 %v1061, %v1060
        %v1145 = vpack.c.bf16 %v1063, %v1062
        %v1146 = vpack.c.bf16 %v1065, %v1064
        %v1147 = vpack.c.bf16 %v1067, %v1066
        %v1148 = vpack.c.bf16 %v1085, %v1084
        %v1149 = vpack.c.bf16 %v1087, %v1086
        %v1150 = vpack.c.bf16 %v1089, %v1088
        %v1151 = vpack.c.bf16 %v1091, %v1090
        %v1152 = vpack.c.bf16 %v1093, %v1092
        %v1153 = vpack.c.bf16 %v1095, %v1094
        %v1154 = vpack.c.bf16 %v1097, %v1096
        %v1155 = vpack.c.bf16 %v1099, %v1098
        %v1156 = vpack.c.bf16 %v1117, %v1116
        %v1157 = vpack.c.bf16 %v1119, %v1118
        %v1158 = vpack.c.bf16 %v1121, %v1120
        %v1159 = vpack.c.bf16 %v1123, %v1122
        %v1160 = vpack.c.bf16 %v1125, %v1124
        %v1161 = vpack.c.bf16 %v1127, %v1126
        %v1162 = vpack.c.bf16 %v1129, %v1128
        %v1163 = vpack.c.bf16 %v1131, %v1130
        %v1164 = vld [vmem:[%s3] sm:$0xf]
        %v1165 = vld [vmem:[%s3 + $0x4] sm:$0xf]
        %v1166 = vld [vmem:[%s3 + $0x8] sm:$0xf]
        %v1167 = vld [vmem:[%s3 + $0xc] sm:$0xf]
        %v1168 = vld [vmem:[%s3 + $0x10] sm:$0xf]
        %v1169 = vld [vmem:[%s3 + $0x14] sm:$0xf]
        %v1170 = vld [vmem:[%s3 + $0x18] sm:$0xf]
        %v1171 = vld [vmem:[%s3 + $0x1c] sm:$0xf]
        %v1172 = vld [vmem:[%s3 + $0x20] sm:$0xf]
        %v1173 = vld [vmem:[%s3 + $0x24] sm:$0xf]
        %v1174 = vld [vmem:[%s3 + $0x28] sm:$0xf]
        %v1175 = vld [vmem:[%s3 + $0x2c] sm:$0xf]
        %v1176 = vld [vmem:[%s3 + $0x30] sm:$0xf]
        %v1177 = vld [vmem:[%s3 + $0x34] sm:$0xf]
        %v1178 = vld [vmem:[%s3 + $0x38] sm:$0xf]
        %v1179 = vld [vmem:[%s3 + $0x3c] sm:$0xf]
        %v1180 = vld [vmem:[%s4] sm:$0x1]
        %v1182 = vlaneseq
        %v1183 = vshrl.u32 %v1182, 7
        %v1184 = vsub.s32 0, %v1183
        %v1185 = vrot.slane %v1180, %v1184
        %v1203 = vunpack.c.l.b16 %v1164
        %v1204 = vunpack.c.l.b16 %v1165
        %v1205 = vunpack.c.l.b16 %v1166
        %v1206 = vunpack.c.l.b16 %v1167
        %v1207 = vunpack.c.l.b16 %v1168
        %v1208 = vunpack.c.l.b16 %v1169
        %v1209 = vunpack.c.l.b16 %v1170
        %v1210 = vunpack.c.l.b16 %v1171
        %v1211 = vunpack.c.l.b16 %v1172
        %v1212 = vunpack.c.l.b16 %v1173
        %v1213 = vunpack.c.l.b16 %v1174
        %v1214 = vunpack.c.l.b16 %v1175
        %v1215 = vunpack.c.l.b16 %v1176
        %v1216 = vunpack.c.l.b16 %v1177
        %v1217 = vunpack.c.l.b16 %v1178
        %v1218 = vunpack.c.l.b16 %v1179
        %v1219 = vpack.c.b16 %v1204, %v1203
        %v1220 = vpack.c.b16 %v1206, %v1205
        %v1221 = vpack.c.b16 %v1208, %v1207
        %v1222 = vpack.c.b16 %v1210, %v1209
        %v1223 = vpack.c.b16 %v1212, %v1211
        %v1224 = vpack.c.b16 %v1214, %v1213
        %v1225 = vpack.c.b16 %v1216, %v1215
        %v1226 = vpack.c.b16 %v1218, %v1217
        %1235 = vmatprep.subr.bf16.mxu0 0
        %1236 = vmatpush1.bf16.msra.mxu0 %v1226
        %1237 = vmatprep.subr.bf16.mxu0 0
        %1238 = vmatpush1.bf16.msra.mxu0 %v1225
        %1239 = vmatprep.subr.bf16.mxu0 0
        %1240 = vmatpush1.bf16.msra.mxu0 %v1224
        %1241 = vmatprep.subr.bf16.mxu0 0
        %1242 = vmatpush1.bf16.msra.mxu0 %v1223
        %1243 = vmatprep.subr.bf16.mxu0 0
        %1244 = vmatpush1.bf16.msra.mxu0 %v1222
        %1245 = vmatprep.subr.bf16.mxu0 0
        %1246 = vmatpush1.bf16.msra.mxu0 %v1221
        %1247 = vmatprep.subr.bf16.mxu0 0
        %1248 = vmatpush1.bf16.msra.mxu0 %v1220
        %1249 = vmatprep.subr.bf16.mxu0 0
        %1250 = vmatpush1.bf16.msra.mxu0 %v1219
        %1251 = vmatprep.subr.bf16.mxu0 0
        %1252 = vmatpush2.bf16.msra.mxu0 0
        %1253 = vmatprep.subr.bf16.mxu0 0
        %1254 = vmatpush2.bf16.msra.mxu0 0
        %1255 = vmatprep.subr.bf16.mxu0 0
        %1256 = vmatpush2.bf16.msra.mxu0 0
        %1257 = vmatprep.subr.bf16.mxu0 0
        %1258 = vmatpush2.bf16.msra.mxu0 0
        %1259 = vmatprep.subr.bf16.mxu0 0
        %1260 = vmatpush2.bf16.msra.mxu0 0
        %1261 = vmatprep.subr.bf16.mxu0 0
        %1262 = vmatpush2.bf16.msra.mxu0 0
        %1263 = vmatprep.subr.bf16.mxu0 0
        %1264 = vmatpush2.bf16.msra.mxu0 0
        %1265 = vmatprep.subr.bf16.mxu0 0
        %1266 = vmatpush2.bf16.msra.mxu0 0
        %1267 = vmatprep.mubr.bf16.mxu0 0
        %1268 = vmatmul.mubr.bf16.gmra.mxu0 %v1132
        %v1269 = vpop.f32.mrf.mxu0
        %v1270 = vadd.f32 %v1185, %v1269
        %v1271 = vpop.f32.mrf.mxu0
        %v1272 = vpop.f32.mrf.mxu0
        %v1273 = vadd.f32 %v1185, %v1272
        %v1274 = vpop.f32.mrf.mxu0
        %1275 = vmatprep.mubr.bf16.mxu0 0
        %1276 = vmatmul.mubr.bf16.gmra.mxu0 %v1133
        %v1277 = vpop.f32.mrf.mxu0
        %v1278 = vadd.f32 %v1185, %v1277
        %v1279 = vpop.f32.mrf.mxu0
        %v1280 = vpop.f32.mrf.mxu0
        %v1281 = vadd.f32 %v1185, %v1280
        %v1282 = vpop.f32.mrf.mxu0
        %1283 = vmatprep.mubr.bf16.mxu0 0
        %1284 = vmatmul.mubr.bf16.gmra.mxu0 %v1134
        %v1285 = vpop.f32.mrf.mxu0
        %v1286 = vadd.f32 %v1185, %v1285
        %v1287 = vpop.f32.mrf.mxu0
        %v1288 = vpop.f32.mrf.mxu0
        %v1289 = vadd.f32 %v1185, %v1288
        %v1290 = vpop.f32.mrf.mxu0
        %1291 = vmatprep.mubr.bf16.mxu0 0
        %1292 = vmatmul.mubr.bf16.gmra.mxu0 %v1135
        %v1293 = vpop.f32.mrf.mxu0
        %v1294 = vadd.f32 %v1185, %v1293
        %v1295 = vpop.f32.mrf.mxu0
        %v1296 = vpop.f32.mrf.mxu0
        %v1297 = vadd.f32 %v1185, %v1296
        %v1298 = vpop.f32.mrf.mxu0
        %1299 = vmatprep.mubr.bf16.mxu0 0
        %1300 = vmatmul.mubr.bf16.gmra.mxu0 %v1136
        %v1301 = vpop.f32.mrf.mxu0
        %v1302 = vadd.f32 %v1185, %v1301
        %v1303 = vpop.f32.mrf.mxu0
        %v1304 = vpop.f32.mrf.mxu0
        %v1305 = vadd.f32 %v1185, %v1304
        %v1306 = vpop.f32.mrf.mxu0
        %1307 = vmatprep.mubr.bf16.mxu0 0
        %1308 = vmatmul.mubr.bf16.gmra.mxu0 %v1137
        %v1309 = vpop.f32.mrf.mxu0
        %v1310 = vadd.f32 %v1185, %v1309
        %v1311 = vpop.f32.mrf.mxu0
        %v1312 = vpop.f32.mrf.mxu0
        %v1313 = vadd.f32 %v1185, %v1312
        %v1314 = vpop.f32.mrf.mxu0
        %1315 = vmatprep.mubr.bf16.mxu0 0
        %1316 = vmatmul.mubr.bf16.gmra.mxu0 %v1138
        %v1317 = vpop.f32.mrf.mxu0
        %v1318 = vadd.f32 %v1185, %v1317
        %v1319 = vpop.f32.mrf.mxu0
        %v1320 = vpop.f32.mrf.mxu0
        %v1321 = vadd.f32 %v1185, %v1320
        %v1322 = vpop.f32.mrf.mxu0
        %1323 = vmatprep.mubr.bf16.mxu0 0
        %1324 = vmatmul.mubr.bf16.gmra.mxu0 %v1139
        %v1325 = vpop.f32.mrf.mxu0
        %v1326 = vadd.f32 %v1185, %v1325
        %v1327 = vpop.f32.mrf.mxu0
        %v1328 = vpop.f32.mrf.mxu0
        %v1329 = vadd.f32 %v1185, %v1328
        %v1330 = vpop.f32.mrf.mxu0
        %1331 = vmatprep.mubr.bf16.mxu0 0
        %1332 = vmatmul.mubr.bf16.gmra.mxu0 %v1140
        %v1333 = vpop.f32.mrf.mxu0
        %v1334 = vadd.f32 %v1185, %v1333
        %v1335 = vpop.f32.mrf.mxu0
        %v1336 = vpop.f32.mrf.mxu0
        %v1337 = vadd.f32 %v1185, %v1336
        %v1338 = vpop.f32.mrf.mxu0
        %1339 = vmatprep.mubr.bf16.mxu0 0
        %1340 = vmatmul.mubr.bf16.gmra.mxu0 %v1141
        %v1341 = vpop.f32.mrf.mxu0
        %v1342 = vadd.f32 %v1185, %v1341
        %v1343 = vpop.f32.mrf.mxu0
        %v1344 = vpop.f32.mrf.mxu0
        %v1345 = vadd.f32 %v1185, %v1344
        %v1346 = vpop.f32.mrf.mxu0
        %1347 = vmatprep.mubr.bf16.mxu0 0
        %1348 = vmatmul.mubr.bf16.gmra.mxu0 %v1142
        %v1349 = vpop.f32.mrf.mxu0
        %v1350 = vadd.f32 %v1185, %v1349
        %v1351 = vpop.f32.mrf.mxu0
        %v1352 = vpop.f32.mrf.mxu0
        %v1353 = vadd.f32 %v1185, %v1352
        %v1354 = vpop.f32.mrf.mxu0
        %1355 = vmatprep.mubr.bf16.mxu0 0
        %1356 = vmatmul.mubr.bf16.gmra.mxu0 %v1143
        %v1357 = vpop.f32.mrf.mxu0
        %v1358 = vadd.f32 %v1185, %v1357
        %v1359 = vpop.f32.mrf.mxu0
        %v1360 = vpop.f32.mrf.mxu0
        %v1361 = vadd.f32 %v1185, %v1360
        %v1362 = vpop.f32.mrf.mxu0
        %1363 = vmatprep.mubr.bf16.mxu0 0
        %1364 = vmatmul.mubr.bf16.gmra.mxu0 %v1144
        %v1365 = vpop.f32.mrf.mxu0
        %v1366 = vadd.f32 %v1185, %v1365
        %v1367 = vpop.f32.mrf.mxu0
        %v1368 = vpop.f32.mrf.mxu0
        %v1369 = vadd.f32 %v1185, %v1368
        %v1370 = vpop.f32.mrf.mxu0
        %1371 = vmatprep.mubr.bf16.mxu0 0
        %1372 = vmatmul.mubr.bf16.gmra.mxu0 %v1145
        %v1373 = vpop.f32.mrf.mxu0
        %v1374 = vadd.f32 %v1185, %v1373
        %v1375 = vpop.f32.mrf.mxu0
        %v1376 = vpop.f32.mrf.mxu0
        %v1377 = vadd.f32 %v1185, %v1376
        %v1378 = vpop.f32.mrf.mxu0
        %1379 = vmatprep.mubr.bf16.mxu0 0
        %1380 = vmatmul.mubr.bf16.gmra.mxu0 %v1146
        %v1381 = vpop.f32.mrf.mxu0
        %v1382 = vadd.f32 %v1185, %v1381
        %v1383 = vpop.f32.mrf.mxu0
        %v1384 = vpop.f32.mrf.mxu0
        %v1385 = vadd.f32 %v1185, %v1384
        %v1386 = vpop.f32.mrf.mxu0
        %1387 = vmatprep.mubr.bf16.mxu0 0
        %1388 = vmatmul.mubr.bf16.gmra.mxu0 %v1147
        %v1389 = vpop.f32.mrf.mxu0
        %v1390 = vadd.f32 %v1185, %v1389
        %v1391 = vpop.f32.mrf.mxu0
        %v1392 = vpop.f32.mrf.mxu0
        %v1393 = vadd.f32 %v1185, %v1392
        %v1394 = vpop.f32.mrf.mxu0
        %1395 = vmatprep.mubr.bf16.mxu0 0
        %1396 = vmatmul.mubr.bf16.gmra.mxu0 %v1148
        %v1397 = vpop.f32.mrf.mxu0
        %v1398 = vadd.f32 %v1185, %v1397
        %v1399 = vpop.f32.mrf.mxu0
        %v1400 = vpop.f32.mrf.mxu0
        %v1401 = vadd.f32 %v1185, %v1400
        %v1402 = vpop.f32.mrf.mxu0
        %1403 = vmatprep.mubr.bf16.mxu0 0
        %1404 = vmatmul.mubr.bf16.gmra.mxu0 %v1149
        %v1405 = vpop.f32.mrf.mxu0
        %v1406 = vadd.f32 %v1185, %v1405
        %v1407 = vpop.f32.mrf.mxu0
        %v1408 = vpop.f32.mrf.mxu0
        %v1409 = vadd.f32 %v1185, %v1408
        %v1410 = vpop.f32.mrf.mxu0
        %1411 = vmatprep.mubr.bf16.mxu0 0
        %1412 = vmatmul.mubr.bf16.gmra.mxu0 %v1150
        %v1413 = vpop.f32.mrf.mxu0
        %v1414 = vadd.f32 %v1185, %v1413
        %v1415 = vpop.f32.mrf.mxu0
        %v1416 = vpop.f32.mrf.mxu0
        %v1417 = vadd.f32 %v1185, %v1416
        %v1418 = vpop.f32.mrf.mxu0
        %1419 = vmatprep.mubr.bf16.mxu0 0
        %1420 = vmatmul.mubr.bf16.gmra.mxu0 %v1151
        %v1421 = vpop.f32.mrf.mxu0
        %v1422 = vadd.f32 %v1185, %v1421
        %v1423 = vpop.f32.mrf.mxu0
        %v1424 = vpop.f32.mrf.mxu0
        %v1425 = vadd.f32 %v1185, %v1424
        %v1426 = vpop.f32.mrf.mxu0
        %1427 = vmatprep.mubr.bf16.mxu0 0
        %1428 = vmatmul.mubr.bf16.gmra.mxu0 %v1152
        %v1429 = vpop.f32.mrf.mxu0
        %v1430 = vadd.f32 %v1185, %v1429
        %v1431 = vpop.f32.mrf.mxu0
        %v1432 = vpop.f32.mrf.mxu0
        %v1433 = vadd.f32 %v1185, %v1432
        %v1434 = vpop.f32.mrf.mxu0
        %1435 = vmatprep.mubr.bf16.mxu0 0
        %1436 = vmatmul.mubr.bf16.gmra.mxu0 %v1153
        %v1437 = vpop.f32.mrf.mxu0
        %v1438 = vadd.f32 %v1185, %v1437
        %v1439 = vpop.f32.mrf.mxu0
        %v1440 = vpop.f32.mrf.mxu0
        %v1441 = vadd.f32 %v1185, %v1440
        %v1442 = vpop.f32.mrf.mxu0
        %1443 = vmatprep.mubr.bf16.mxu0 0
        %1444 = vmatmul.mubr.bf16.gmra.mxu0 %v1154
        %v1445 = vpop.f32.mrf.mxu0
        %v1446 = vadd.f32 %v1185, %v1445
        %v1447 = vpop.f32.mrf.mxu0
        %v1448 = vpop.f32.mrf.mxu0
        %v1449 = vadd.f32 %v1185, %v1448
        %v1450 = vpop.f32.mrf.mxu0
        %1451 = vmatprep.mubr.bf16.mxu0 0
        %1452 = vmatmul.mubr.bf16.gmra.mxu0 %v1155
        %v1453 = vpop.f32.mrf.mxu0
        %v1454 = vadd.f32 %v1185, %v1453
        %v1455 = vpop.f32.mrf.mxu0
        %v1456 = vpop.f32.mrf.mxu0
        %v1457 = vadd.f32 %v1185, %v1456
        %v1458 = vpop.f32.mrf.mxu0
        %1459 = vmatprep.mubr.bf16.mxu0 0
        %1460 = vmatmul.mubr.bf16.gmra.mxu0 %v1156
        %v1461 = vpop.f32.mrf.mxu0
        %v1462 = vadd.f32 %v1185, %v1461
        %v1463 = vpop.f32.mrf.mxu0
        %v1464 = vpop.f32.mrf.mxu0
        %v1465 = vadd.f32 %v1185, %v1464
        %v1466 = vpop.f32.mrf.mxu0
        %1467 = vmatprep.mubr.bf16.mxu0 0
        %1468 = vmatmul.mubr.bf16.gmra.mxu0 %v1157
        %v1469 = vpop.f32.mrf.mxu0
        %v1470 = vadd.f32 %v1185, %v1469
        %v1471 = vpop.f32.mrf.mxu0
        %v1472 = vpop.f32.mrf.mxu0
        %v1473 = vadd.f32 %v1185, %v1472
        %v1474 = vpop.f32.mrf.mxu0
        %1475 = vmatprep.mubr.bf16.mxu0 0
        %1476 = vmatmul.mubr.bf16.gmra.mxu0 %v1158
        %v1477 = vpop.f32.mrf.mxu0
        %v1478 = vadd.f32 %v1185, %v1477
        %v1479 = vpop.f32.mrf.mxu0
        %v1480 = vpop.f32.mrf.mxu0
        %v1481 = vadd.f32 %v1185, %v1480
        %v1482 = vpop.f32.mrf.mxu0
        %1483 = vmatprep.mubr.bf16.mxu0 0
        %1484 = vmatmul.mubr.bf16.gmra.mxu0 %v1159
        %v1485 = vpop.f32.mrf.mxu0
        %v1486 = vadd.f32 %v1185, %v1485
        %v1487 = vpop.f32.mrf.mxu0
        %v1488 = vpop.f32.mrf.mxu0
        %v1489 = vadd.f32 %v1185, %v1488
        %v1490 = vpop.f32.mrf.mxu0
        %1491 = vmatprep.mubr.bf16.mxu0 0
        %1492 = vmatmul.mubr.bf16.gmra.mxu0 %v1160
        %v1493 = vpop.f32.mrf.mxu0
        %v1494 = vadd.f32 %v1185, %v1493
        %v1495 = vpop.f32.mrf.mxu0
        %v1496 = vpop.f32.mrf.mxu0
        %v1497 = vadd.f32 %v1185, %v1496
        %v1498 = vpop.f32.mrf.mxu0
        %1499 = vmatprep.mubr.bf16.mxu0 0
        %1500 = vmatmul.mubr.bf16.gmra.mxu0 %v1161
        %v1501 = vpop.f32.mrf.mxu0
        %v1502 = vadd.f32 %v1185, %v1501
        %v1503 = vpop.f32.mrf.mxu0
        %v1504 = vpop.f32.mrf.mxu0
        %v1505 = vadd.f32 %v1185, %v1504
        %v1506 = vpop.f32.mrf.mxu0
        %1507 = vmatprep.mubr.bf16.mxu0 0
        %1508 = vmatmul.mubr.bf16.gmra.mxu0 %v1162
        %v1509 = vpop.f32.mrf.mxu0
        %v1510 = vadd.f32 %v1185, %v1509
        %v1511 = vpop.f32.mrf.mxu0
        %v1512 = vpop.f32.mrf.mxu0
        %v1513 = vadd.f32 %v1185, %v1512
        %v1514 = vpop.f32.mrf.mxu0
        %1515 = vmatprep.mubr.bf16.mxu0 0
        %1516 = vmatmul.mubr.bf16.gmra.mxu0 %v1163
        %v1517 = vpop.f32.mrf.mxu0
        %v1518 = vadd.f32 %v1185, %v1517
        %v1519 = vpop.f32.mrf.mxu0
        %v1520 = vpop.f32.mrf.mxu0
        %v1521 = vadd.f32 %v1185, %v1520
        %v1522 = vpop.f32.mrf.mxu0
        %1523 = vdwg.mxu0
        %v1524 = vmul.f32 %v1270, 0.5
        %v1525 = vmul.f32 %v1273, 0.5
        %v1526 = vmul.f32 %v1278, 0.5
        %v1527 = vmul.f32 %v1281, 0.5
        %v1528 = vmul.f32 %v1286, 0.5
        %v1529 = vmul.f32 %v1289, 0.5
        %v1530 = vmul.f32 %v1294, 0.5
        %v1531 = vmul.f32 %v1297, 0.5
        %v1532 = vmul.f32 %v1302, 0.5
        %v1533 = vmul.f32 %v1305, 0.5
        %v1534 = vmul.f32 %v1310, 0.5
        %v1535 = vmul.f32 %v1313, 0.5
        %v1536 = vmul.f32 %v1318, 0.5
        %v1537 = vmul.f32 %v1321, 0.5
        %v1538 = vmul.f32 %v1326, 0.5
        %v1539 = vmul.f32 %v1329, 0.5
        %v1540 = vmul.f32 %v1334, 0.5
        %v1541 = vmul.f32 %v1337, 0.5
        %v1542 = vmul.f32 %v1342, 0.5
        %v1543 = vmul.f32 %v1345, 0.5
        %v1544 = vmul.f32 %v1350, 0.5
        %v1545 = vmul.f32 %v1353, 0.5
        %v1546 = vmul.f32 %v1358, 0.5
        %v1547 = vmul.f32 %v1361, 0.5
        %v1548 = vmul.f32 %v1366, 0.5
        %v1549 = vmul.f32 %v1369, 0.5
        %v1550 = vmul.f32 %v1374, 0.5
        %v1551 = vmul.f32 %v1377, 0.5
        %v1552 = vmul.f32 %v1382, 0.5
        %v1553 = vmul.f32 %v1385, 0.5
        %v1554 = vmul.f32 %v1390, 0.5
        %v1555 = vmul.f32 %v1393, 0.5
        %v1556 = vmul.f32 %v1398, 0.5
        %v1557 = vmul.f32 %v1401, 0.5
        %v1558 = vmul.f32 %v1406, 0.5
        %v1559 = vmul.f32 %v1409, 0.5
        %v1560 = vmul.f32 %v1414, 0.5
        %v1561 = vmul.f32 %v1417, 0.5
        %v1562 = vmul.f32 %v1422, 0.5
        %v1563 = vmul.f32 %v1425, 0.5
        %v1564 = vmul.f32 %v1430, 0.5
        %v1565 = vmul.f32 %v1433, 0.5
        %v1566 = vmul.f32 %v1438, 0.5
        %v1567 = vmul.f32 %v1441, 0.5
        %v1568 = vmul.f32 %v1446, 0.5
        %v1569 = vmul.f32 %v1449, 0.5
        %v1570 = vmul.f32 %v1454, 0.5
        %v1571 = vmul.f32 %v1457, 0.5
        %v1572 = vmul.f32 %v1462, 0.5
        %v1573 = vmul.f32 %v1465, 0.5
        %v1574 = vmul.f32 %v1470, 0.5
        %v1575 = vmul.f32 %v1473, 0.5
        %v1576 = vmul.f32 %v1478, 0.5
        %v1577 = vmul.f32 %v1481, 0.5
        %v1578 = vmul.f32 %v1486, 0.5
        %v1579 = vmul.f32 %v1489, 0.5
        %v1580 = vmul.f32 %v1494, 0.5
        %v1581 = vmul.f32 %v1497, 0.5
        %v1582 = vmul.f32 %v1502, 0.5
        %v1583 = vmul.f32 %v1505, 0.5
        %v1584 = vmul.f32 %v1510, 0.5
        %v1585 = vmul.f32 %v1513, 0.5
        %v1586 = vmul.f32 %v1518, 0.5
        %v1587 = vmul.f32 %v1521, 0.5
        %v1588 = vmul.f32 %v1270, 0.044715
        %v1589 = vmul.f32 %v1273, 0.044715
        %v1590 = vmul.f32 %v1278, 0.044715
        %v1591 = vmul.f32 %v1281, 0.044715
        %v1592 = vmul.f32 %v1286, 0.044715
        %v1593 = vmul.f32 %v1289, 0.044715
        %v1594 = vmul.f32 %v1294, 0.044715
        %v1595 = vmul.f32 %v1297, 0.044715
        %v1596 = vmul.f32 %v1302, 0.044715
        %v1597 = vmul.f32 %v1305, 0.044715
        %v1598 = vmul.f32 %v1310, 0.044715
        %v1599 = vmul.f32 %v1313, 0.044715
        %v1600 = vmul.f32 %v1318, 0.044715
        %v1601 = vmul.f32 %v1321, 0.044715
        %v1602 = vmul.f32 %v1326, 0.044715
        %v1603 = vmul.f32 %v1329, 0.044715
        %v1604 = vmul.f32 %v1334, 0.044715
        %v1605 = vmul.f32 %v1337, 0.044715
        %v1606 = vmul.f32 %v1342, 0.044715
        %v1607 = vmul.f32 %v1345, 0.044715
        %v1608 = vmul.f32 %v1350, 0.044715
        %v1609 = vmul.f32 %v1353, 0.044715
        %v1610 = vmul.f32 %v1358, 0.044715
        %v1611 = vmul.f32 %v1361, 0.044715
        %v1612 = vmul.f32 %v1366, 0.044715
        %v1613 = vmul.f32 %v1369, 0.044715
        %v1614 = vmul.f32 %v1374, 0.044715
        %v1615 = vmul.f32 %v1377, 0.044715
        %v1616 = vmul.f32 %v1382, 0.044715
        %v1617 = vmul.f32 %v1385, 0.044715
        %v1618 = vmul.f32 %v1390, 0.044715
        %v1619 = vmul.f32 %v1393, 0.044715
        %v1620 = vmul.f32 %v1398, 0.044715
        %v1621 = vmul.f32 %v1401, 0.044715
        %v1622 = vmul.f32 %v1406, 0.044715
        %v1623 = vmul.f32 %v1409, 0.044715
        %v1624 = vmul.f32 %v1414, 0.044715
        %v1625 = vmul.f32 %v1417, 0.044715
        %v1626 = vmul.f32 %v1422, 0.044715
        %v1627 = vmul.f32 %v1425, 0.044715
        %v1628 = vmul.f32 %v1430, 0.044715
        %v1629 = vmul.f32 %v1433, 0.044715
        %v1630 = vmul.f32 %v1438, 0.044715
        %v1631 = vmul.f32 %v1441, 0.044715
        %v1632 = vmul.f32 %v1446, 0.044715
        %v1633 = vmul.f32 %v1449, 0.044715
        %v1634 = vmul.f32 %v1454, 0.044715
        %v1635 = vmul.f32 %v1457, 0.044715
        %v1636 = vmul.f32 %v1462, 0.044715
        %v1637 = vmul.f32 %v1465, 0.044715
        %v1638 = vmul.f32 %v1470, 0.044715
        %v1639 = vmul.f32 %v1473, 0.044715
        %v1640 = vmul.f32 %v1478, 0.044715
        %v1641 = vmul.f32 %v1481, 0.044715
        %v1642 = vmul.f32 %v1486, 0.044715
        %v1643 = vmul.f32 %v1489, 0.044715
        %v1644 = vmul.f32 %v1494, 0.044715
        %v1645 = vmul.f32 %v1497, 0.044715
        %v1646 = vmul.f32 %v1502, 0.044715
        %v1647 = vmul.f32 %v1505, 0.044715
        %v1648 = vmul.f32 %v1510, 0.044715
        %v1649 = vmul.f32 %v1513, 0.044715
        %v1650 = vmul.f32 %v1518, 0.044715
        %v1651 = vmul.f32 %v1521, 0.044715
        %v1652 = vmul.f32 %v1588, %v1270
        %v1653 = vmul.f32 %v1589, %v1273
        %v1654 = vmul.f32 %v1590, %v1278
        %v1655 = vmul.f32 %v1591, %v1281
        %v1656 = vmul.f32 %v1592, %v1286
        %v1657 = vmul.f32 %v1593, %v1289
        %v1658 = vmul.f32 %v1594, %v1294
        %v1659 = vmul.f32 %v1595, %v1297
        %v1660 = vmul.f32 %v1596, %v1302
        %v1661 = vmul.f32 %v1597, %v1305
        %v1662 = vmul.f32 %v1598, %v1310
        %v1663 = vmul.f32 %v1599, %v1313
        %v1664 = vmul.f32 %v1600, %v1318
        %v1665 = vmul.f32 %v1601, %v1321
        %v1666 = vmul.f32 %v1602, %v1326
        %v1667 = vmul.f32 %v1603, %v1329
        %v1668 = vmul.f32 %v1604, %v1334
        %v1669 = vmul.f32 %v1605, %v1337
        %v1670 = vmul.f32 %v1606, %v1342
        %v1671 = vmul.f32 %v1607, %v1345
        %v1672 = vmul.f32 %v1608, %v1350
        %v1673 = vmul.f32 %v1609, %v1353
        %v1674 = vmul.f32 %v1610, %v1358
        %v1675 = vmul.f32 %v1611, %v1361
        %v1676 = vmul.f32 %v1612, %v1366
        %v1677 = vmul.f32 %v1613, %v1369
        %v1678 = vmul.f32 %v1614, %v1374
        %v1679 = vmul.f32 %v1615, %v1377
        %v1680 = vmul.f32 %v1616, %v1382
        %v1681 = vmul.f32 %v1617, %v1385
        %v1682 = vmul.f32 %v1618, %v1390
        %v1683 = vmul.f32 %v1619, %v1393
        %v1684 = vmul.f32 %v1620, %v1398
        %v1685 = vmul.f32 %v1621, %v1401
        %v1686 = vmul.f32 %v1622, %v1406
        %v1687 = vmul.f32 %v1623, %v1409
        %v1688 = vmul.f32 %v1624, %v1414
        %v1689 = vmul.f32 %v1625, %v1417
        %v1690 = vmul.f32 %v1626, %v1422
        %v1691 = vmul.f32 %v1627, %v1425
        %v1692 = vmul.f32 %v1628, %v1430
        %v1693 = vmul.f32 %v1629, %v1433
        %v1694 = vmul.f32 %v1630, %v1438
        %v1695 = vmul.f32 %v1631, %v1441
        %v1696 = vmul.f32 %v1632, %v1446
        %v1697 = vmul.f32 %v1633, %v1449
        %v1698 = vmul.f32 %v1634, %v1454
        %v1699 = vmul.f32 %v1635, %v1457
        %v1700 = vmul.f32 %v1636, %v1462
        %v1701 = vmul.f32 %v1637, %v1465
        %v1702 = vmul.f32 %v1638, %v1470
        %v1703 = vmul.f32 %v1639, %v1473
        %v1704 = vmul.f32 %v1640, %v1478
        %v1705 = vmul.f32 %v1641, %v1481
        %v1706 = vmul.f32 %v1642, %v1486
        %v1707 = vmul.f32 %v1643, %v1489
        %v1708 = vmul.f32 %v1644, %v1494
        %v1709 = vmul.f32 %v1645, %v1497
        %v1710 = vmul.f32 %v1646, %v1502
        %v1711 = vmul.f32 %v1647, %v1505
        %v1712 = vmul.f32 %v1648, %v1510
        %v1713 = vmul.f32 %v1649, %v1513
        %v1714 = vmul.f32 %v1650, %v1518
        %v1715 = vmul.f32 %v1651, %v1521
        %v1716 = vmul.f32 %v1652, %v1270
        %v1717 = vmul.f32 %v1653, %v1273
        %v1718 = vmul.f32 %v1654, %v1278
        %v1719 = vmul.f32 %v1655, %v1281
        %v1720 = vmul.f32 %v1656, %v1286
        %v1721 = vmul.f32 %v1657, %v1289
        %v1722 = vmul.f32 %v1658, %v1294
        %v1723 = vmul.f32 %v1659, %v1297
        %v1724 = vmul.f32 %v1660, %v1302
        %v1725 = vmul.f32 %v1661, %v1305
        %v1726 = vmul.f32 %v1662, %v1310
        %v1727 = vmul.f32 %v1663, %v1313
        %v1728 = vmul.f32 %v1664, %v1318
        %v1729 = vmul.f32 %v1665, %v1321
        %v1730 = vmul.f32 %v1666, %v1326
        %v1731 = vmul.f32 %v1667, %v1329
        %v1732 = vmul.f32 %v1668, %v1334
        %v1733 = vmul.f32 %v1669, %v1337
        %v1734 = vmul.f32 %v1670, %v1342
        %v1735 = vmul.f32 %v1671, %v1345
        %v1736 = vmul.f32 %v1672, %v1350
        %v1737 = vmul.f32 %v1673, %v1353
        %v1738 = vmul.f32 %v1674, %v1358
        %v1739 = vmul.f32 %v1675, %v1361
        %v1740 = vmul.f32 %v1676, %v1366
        %v1741 = vmul.f32 %v1677, %v1369
        %v1742 = vmul.f32 %v1678, %v1374
        %v1743 = vmul.f32 %v1679, %v1377
        %v1744 = vmul.f32 %v1680, %v1382
        %v1745 = vmul.f32 %v1681, %v1385
        %v1746 = vmul.f32 %v1682, %v1390
        %v1747 = vmul.f32 %v1683, %v1393
        %v1748 = vmul.f32 %v1684, %v1398
        %v1749 = vmul.f32 %v1685, %v1401
        %v1750 = vmul.f32 %v1686, %v1406
        %v1751 = vmul.f32 %v1687, %v1409
        %v1752 = vmul.f32 %v1688, %v1414
        %v1753 = vmul.f32 %v1689, %v1417
        %v1754 = vmul.f32 %v1690, %v1422
        %v1755 = vmul.f32 %v1691, %v1425
        %v1756 = vmul.f32 %v1692, %v1430
        %v1757 = vmul.f32 %v1693, %v1433
        %v1758 = vmul.f32 %v1694, %v1438
        %v1759 = vmul.f32 %v1695, %v1441
        %v1760 = vmul.f32 %v1696, %v1446
        %v1761 = vmul.f32 %v1697, %v1449
        %v1762 = vmul.f32 %v1698, %v1454
        %v1763 = vmul.f32 %v1699, %v1457
        %v1764 = vmul.f32 %v1700, %v1462
        %v1765 = vmul.f32 %v1701, %v1465
        %v1766 = vmul.f32 %v1702, %v1470
        %v1767 = vmul.f32 %v1703, %v1473
        %v1768 = vmul.f32 %v1704, %v1478
        %v1769 = vmul.f32 %v1705, %v1481
        %v1770 = vmul.f32 %v1706, %v1486
        %v1771 = vmul.f32 %v1707, %v1489
        %v1772 = vmul.f32 %v1708, %v1494
        %v1773 = vmul.f32 %v1709, %v1497
        %v1774 = vmul.f32 %v1710, %v1502
        %v1775 = vmul.f32 %v1711, %v1505
        %v1776 = vmul.f32 %v1712, %v1510
        %v1777 = vmul.f32 %v1713, %v1513
        %v1778 = vmul.f32 %v1714, %v1518
        %v1779 = vmul.f32 %v1715, %v1521
        %v1780 = vadd.f32 %v1270, %v1716
        %v1781 = vadd.f32 %v1273, %v1717
        %v1782 = vadd.f32 %v1278, %v1718
        %v1783 = vadd.f32 %v1281, %v1719
        %v1784 = vadd.f32 %v1286, %v1720
        %v1785 = vadd.f32 %v1289, %v1721
        %v1786 = vadd.f32 %v1294, %v1722
        %v1787 = vadd.f32 %v1297, %v1723
        %v1788 = vadd.f32 %v1302, %v1724
        %v1789 = vadd.f32 %v1305, %v1725
        %v1790 = vadd.f32 %v1310, %v1726
        %v1791 = vadd.f32 %v1313, %v1727
        %v1792 = vadd.f32 %v1318, %v1728
        %v1793 = vadd.f32 %v1321, %v1729
        %v1794 = vadd.f32 %v1326, %v1730
        %v1795 = vadd.f32 %v1329, %v1731
        %v1796 = vadd.f32 %v1334, %v1732
        %v1797 = vadd.f32 %v1337, %v1733
        %v1798 = vadd.f32 %v1342, %v1734
        %v1799 = vadd.f32 %v1345, %v1735
        %v1800 = vadd.f32 %v1350, %v1736
        %v1801 = vadd.f32 %v1353, %v1737
        %v1802 = vadd.f32 %v1358, %v1738
        %v1803 = vadd.f32 %v1361, %v1739
        %v1804 = vadd.f32 %v1366, %v1740
        %v1805 = vadd.f32 %v1369, %v1741
        %v1806 = vadd.f32 %v1374, %v1742
        %v1807 = vadd.f32 %v1377, %v1743
        %v1808 = vadd.f32 %v1382, %v1744
        %v1809 = vadd.f32 %v1385, %v1745
        %v1810 = vadd.f32 %v1390, %v1746
        %v1811 = vadd.f32 %v1393, %v1747
        %v1812 = vadd.f32 %v1398, %v1748
        %v1813 = vadd.f32 %v1401, %v1749
        %v1814 = vadd.f32 %v1406, %v1750
        %v1815 = vadd.f32 %v1409, %v1751
        %v1816 = vadd.f32 %v1414, %v1752
        %v1817 = vadd.f32 %v1417, %v1753
        %v1818 = vadd.f32 %v1422, %v1754
        %v1819 = vadd.f32 %v1425, %v1755
        %v1820 = vadd.f32 %v1430, %v1756
        %v1821 = vadd.f32 %v1433, %v1757
        %v1822 = vadd.f32 %v1438, %v1758
        %v1823 = vadd.f32 %v1441, %v1759
        %v1824 = vadd.f32 %v1446, %v1760
        %v1825 = vadd.f32 %v1449, %v1761
        %v1826 = vadd.f32 %v1454, %v1762
        %v1827 = vadd.f32 %v1457, %v1763
        %v1828 = vadd.f32 %v1462, %v1764
        %v1829 = vadd.f32 %v1465, %v1765
        %v1830 = vadd.f32 %v1470, %v1766
        %v1831 = vadd.f32 %v1473, %v1767
        %v1832 = vadd.f32 %v1478, %v1768
        %v1833 = vadd.f32 %v1481, %v1769
        %v1834 = vadd.f32 %v1486, %v1770
        %v1835 = vadd.f32 %v1489, %v1771
        %v1836 = vadd.f32 %v1494, %v1772
        %v1837 = vadd.f32 %v1497, %v1773
        %v1838 = vadd.f32 %v1502, %v1774
        %v1839 = vadd.f32 %v1505, %v1775
        %v1840 = vadd.f32 %v1510, %v1776
        %v1841 = vadd.f32 %v1513, %v1777
        %v1842 = vadd.f32 %v1518, %v1778
        %v1843 = vadd.f32 %v1521, %v1779
        %v1844 = vmul.f32 %v1780, 0.7978846
        %v1845 = vmul.f32 %v1781, 0.7978846
        %v1846 = vmul.f32 %v1782, 0.7978846
        %v1847 = vmul.f32 %v1783, 0.7978846
        %v1848 = vmul.f32 %v1784, 0.7978846
        %v1849 = vmul.f32 %v1785, 0.7978846
        %v1850 = vmul.f32 %v1786, 0.7978846
        %v1851 = vmul.f32 %v1787, 0.7978846
        %v1852 = vmul.f32 %v1788, 0.7978846
        %v1853 = vmul.f32 %v1789, 0.7978846
        %v1854 = vmul.f32 %v1790, 0.7978846
        %v1855 = vmul.f32 %v1791, 0.7978846
        %v1856 = vmul.f32 %v1792, 0.7978846
        %v1857 = vmul.f32 %v1793, 0.7978846
        %v1858 = vmul.f32 %v1794, 0.7978846
        %v1859 = vmul.f32 %v1795, 0.7978846
        %v1860 = vmul.f32 %v1796, 0.7978846
        %v1861 = vmul.f32 %v1797, 0.7978846
        %v1862 = vmul.f32 %v1798, 0.7978846
        %v1863 = vmul.f32 %v1799, 0.7978846
        %v1864 = vmul.f32 %v1800, 0.7978846
        %v1865 = vmul.f32 %v1801, 0.7978846
        %v1866 = vmul.f32 %v1802, 0.7978846
        %v1867 = vmul.f32 %v1803, 0.7978846
        %v1868 = vmul.f32 %v1804, 0.7978846
        %v1869 = vmul.f32 %v1805, 0.7978846
        %v1870 = vmul.f32 %v1806, 0.7978846
        %v1871 = vmul.f32 %v1807, 0.7978846
        %v1872 = vmul.f32 %v1808, 0.7978846
        %v1873 = vmul.f32 %v1809, 0.7978846
        %v1874 = vmul.f32 %v1810, 0.7978846
        %v1875 = vmul.f32 %v1811, 0.7978846
        %v1876 = vmul.f32 %v1812, 0.7978846
        %v1877 = vmul.f32 %v1813, 0.7978846
        %v1878 = vmul.f32 %v1814, 0.7978846
        %v1879 = vmul.f32 %v1815, 0.7978846
        %v1880 = vmul.f32 %v1816, 0.7978846
        %v1881 = vmul.f32 %v1817, 0.7978846
        %v1882 = vmul.f32 %v1818, 0.7978846
        %v1883 = vmul.f32 %v1819, 0.7978846
        %v1884 = vmul.f32 %v1820, 0.7978846
        %v1885 = vmul.f32 %v1821, 0.7978846
        %v1886 = vmul.f32 %v1822, 0.7978846
        %v1887 = vmul.f32 %v1823, 0.7978846
        %v1888 = vmul.f32 %v1824, 0.7978846
        %v1889 = vmul.f32 %v1825, 0.7978846
        %v1890 = vmul.f32 %v1826, 0.7978846
        %v1891 = vmul.f32 %v1827, 0.7978846
        %v1892 = vmul.f32 %v1828, 0.7978846
        %v1893 = vmul.f32 %v1829, 0.7978846
        %v1894 = vmul.f32 %v1830, 0.7978846
        %v1895 = vmul.f32 %v1831, 0.7978846
        %v1896 = vmul.f32 %v1832, 0.7978846
        %v1897 = vmul.f32 %v1833, 0.7978846
        %v1898 = vmul.f32 %v1834, 0.7978846
        %v1899 = vmul.f32 %v1835, 0.7978846
        %v1900 = vmul.f32 %v1836, 0.7978846
        %v1901 = vmul.f32 %v1837, 0.7978846
        %v1902 = vmul.f32 %v1838, 0.7978846
        %v1903 = vmul.f32 %v1839, 0.7978846
        %v1904 = vmul.f32 %v1840, 0.7978846
        %v1905 = vmul.f32 %v1841, 0.7978846
        %v1906 = vmul.f32 %v1842, 0.7978846
        %v1907 = vmul.f32 %v1843, 0.7978846
        %v1908 = vtanh.pop %v1844
        %v1909 = vtanh.pop %v1845
        %v1910 = vtanh.pop %v1846
        %v1911 = vtanh.pop %v1847
        %v1912 = vtanh.pop %v1848
        %v1913 = vtanh.pop %v1849
        %v1914 = vtanh.pop %v1850
        %v1915 = vtanh.pop %v1851
        %v1916 = vtanh.pop %v1852
        %v1917 = vtanh.pop %v1853
        %v1918 = vtanh.pop %v1854
        %v1919 = vtanh.pop %v1855
        %v1920 = vtanh.pop %v1856
        %v1921 = vtanh.pop %v1857
        %v1922 = vtanh.pop %v1858
        %v1923 = vtanh.pop %v1859
        %v1924 = vtanh.pop %v1860
        %v1925 = vtanh.pop %v1861
        %v1926 = vtanh.pop %v1862
        %v1927 = vtanh.pop %v1863
        %v1928 = vtanh.pop %v1864
        %v1929 = vtanh.pop %v1865
        %v1930 = vtanh.pop %v1866
        %v1931 = vtanh.pop %v1867
        %v1932 = vtanh.pop %v1868
        %v1933 = vtanh.pop %v1869
        %v1934 = vtanh.pop %v1870
        %v1935 = vtanh.pop %v1871
        %v1936 = vtanh.pop %v1872
        %v1937 = vtanh.pop %v1873
        %v1938 = vtanh.pop %v1874
        %v1939 = vtanh.pop %v1875
        %v1940 = vtanh.pop %v1876
        %v1941 = vtanh.pop %v1877
        %v1942 = vtanh.pop %v1878
        %v1943 = vtanh.pop %v1879
        %v1944 = vtanh.pop %v1880
        %v1945 = vtanh.pop %v1881
        %v1946 = vtanh.pop %v1882
        %v1947 = vtanh.pop %v1883
        %v1948 = vtanh.pop %v1884
        %v1949 = vtanh.pop %v1885
        %v1950 = vtanh.pop %v1886
        %v1951 = vtanh.pop %v1887
        %v1952 = vtanh.pop %v1888
        %v1953 = vtanh.pop %v1889
        %v1954 = vtanh.pop %v1890
        %v1955 = vtanh.pop %v1891
        %v1956 = vtanh.pop %v1892
        %v1957 = vtanh.pop %v1893
        %v1958 = vtanh.pop %v1894
        %v1959 = vtanh.pop %v1895
        %v1960 = vtanh.pop %v1896
        %v1961 = vtanh.pop %v1897
        %v1962 = vtanh.pop %v1898
        %v1963 = vtanh.pop %v1899
        %v1964 = vtanh.pop %v1900
        %v1965 = vtanh.pop %v1901
        %v1966 = vtanh.pop %v1902
        %v1967 = vtanh.pop %v1903
        %v1968 = vtanh.pop %v1904
        %v1969 = vtanh.pop %v1905
        %v1970 = vtanh.pop %v1906
        %v1971 = vtanh.pop %v1907
        %v1972 = vadd.f32 %v1908, 1.0
        %v1973 = vadd.f32 %v1909, 1.0
        %v1974 = vadd.f32 %v1910, 1.0
        %v1975 = vadd.f32 %v1911, 1.0
        %v1976 = vadd.f32 %v1912, 1.0
        %v1977 = vadd.f32 %v1913, 1.0
        %v1978 = vadd.f32 %v1914, 1.0
        %v1979 = vadd.f32 %v1915, 1.0
        %v1980 = vadd.f32 %v1916, 1.0
        %v1981 = vadd.f32 %v1917, 1.0
        %v1982 = vadd.f32 %v1918, 1.0
        %v1983 = vadd.f32 %v1919, 1.0
        %v1984 = vadd.f32 %v1920, 1.0
        %v1985 = vadd.f32 %v1921, 1.0
        %v1986 = vadd.f32 %v1922, 1.0
        %v1987 = vadd.f32 %v1923, 1.0
        %v1988 = vadd.f32 %v1924, 1.0
        %v1989 = vadd.f32 %v1925, 1.0
        %v1990 = vadd.f32 %v1926, 1.0
        %v1991 = vadd.f32 %v1927, 1.0
        %v1992 = vadd.f32 %v1928, 1.0
        %v1993 = vadd.f32 %v1929, 1.0
        %v1994 = vadd.f32 %v1930, 1.0
        %v1995 = vadd.f32 %v1931, 1.0
        %v1996 = vadd.f32 %v1932, 1.0
        %v1997 = vadd.f32 %v1933, 1.0
        %v1998 = vadd.f32 %v1934, 1.0
        %v1999 = vadd.f32 %v1935, 1.0
        %v2000 = vadd.f32 %v1936, 1.0
        %v2001 = vadd.f32 %v1937, 1.0
        %v2002 = vadd.f32 %v1938, 1.0
        %v2003 = vadd.f32 %v1939, 1.0
        %v2004 = vadd.f32 %v1940, 1.0
        %v2005 = vadd.f32 %v1941, 1.0
        %v2006 = vadd.f32 %v1942, 1.0
        %v2007 = vadd.f32 %v1943, 1.0
        %v2008 = vadd.f32 %v1944, 1.0
        %v2009 = vadd.f32 %v1945, 1.0
        %v2010 = vadd.f32 %v1946, 1.0
        %v2011 = vadd.f32 %v1947, 1.0
        %v2012 = vadd.f32 %v1948, 1.0
        %v2013 = vadd.f32 %v1949, 1.0
        %v2014 = vadd.f32 %v1950, 1.0
        %v2015 = vadd.f32 %v1951, 1.0
        %v2016 = vadd.f32 %v1952, 1.0
        %v2017 = vadd.f32 %v1953, 1.0
        %v2018 = vadd.f32 %v1954, 1.0
        %v2019 = vadd.f32 %v1955, 1.0
        %v2020 = vadd.f32 %v1956, 1.0
        %v2021 = vadd.f32 %v1957, 1.0
        %v2022 = vadd.f32 %v1958, 1.0
        %v2023 = vadd.f32 %v1959, 1.0
        %v2024 = vadd.f32 %v1960, 1.0
        %v2025 = vadd.f32 %v1961, 1.0
        %v2026 = vadd.f32 %v1962, 1.0
        %v2027 = vadd.f32 %v1963, 1.0
        %v2028 = vadd.f32 %v1964, 1.0
        %v2029 = vadd.f32 %v1965, 1.0
        %v2030 = vadd.f32 %v1966, 1.0
        %v2031 = vadd.f32 %v1967, 1.0
        %v2032 = vadd.f32 %v1968, 1.0
        %v2033 = vadd.f32 %v1969, 1.0
        %v2034 = vadd.f32 %v1970, 1.0
        %v2035 = vadd.f32 %v1971, 1.0
        %v2036 = vmul.f32 %v1524, %v1972
        %v2037 = vmul.f32 %v1525, %v1973
        %v2038 = vmul.f32 %v1526, %v1974
        %v2039 = vmul.f32 %v1527, %v1975
        %v2040 = vmul.f32 %v1528, %v1976
        %v2041 = vmul.f32 %v1529, %v1977
        %v2042 = vmul.f32 %v1530, %v1978
        %v2043 = vmul.f32 %v1531, %v1979
        %v2044 = vmul.f32 %v1532, %v1980
        %v2045 = vmul.f32 %v1533, %v1981
        %v2046 = vmul.f32 %v1534, %v1982
        %v2047 = vmul.f32 %v1535, %v1983
        %v2048 = vmul.f32 %v1536, %v1984
        %v2049 = vmul.f32 %v1537, %v1985
        %v2050 = vmul.f32 %v1538, %v1986
        %v2051 = vmul.f32 %v1539, %v1987
        %v2052 = vmul.f32 %v1540, %v1988
        %v2053 = vmul.f32 %v1541, %v1989
        %v2054 = vmul.f32 %v1542, %v1990
        %v2055 = vmul.f32 %v1543, %v1991
        %v2056 = vmul.f32 %v1544, %v1992
        %v2057 = vmul.f32 %v1545, %v1993
        %v2058 = vmul.f32 %v1546, %v1994
        %v2059 = vmul.f32 %v1547, %v1995
        %v2060 = vmul.f32 %v1548, %v1996
        %v2061 = vmul.f32 %v1549, %v1997
        %v2062 = vmul.f32 %v1550, %v1998
        %v2063 = vmul.f32 %v1551, %v1999
        %v2064 = vmul.f32 %v1552, %v2000
        %v2065 = vmul.f32 %v1553, %v2001
        %v2066 = vmul.f32 %v1554, %v2002
        %v2067 = vmul.f32 %v1555, %v2003
        %v2068 = vmul.f32 %v1556, %v2004
        %v2069 = vmul.f32 %v1557, %v2005
        %v2070 = vmul.f32 %v1558, %v2006
        %v2071 = vmul.f32 %v1559, %v2007
        %v2072 = vmul.f32 %v1560, %v2008
        %v2073 = vmul.f32 %v1561, %v2009
        %v2074 = vmul.f32 %v1562, %v2010
        %v2075 = vmul.f32 %v1563, %v2011
        %v2076 = vmul.f32 %v1564, %v2012
        %v2077 = vmul.f32 %v1565, %v2013
        %v2078 = vmul.f32 %v1566, %v2014
        %v2079 = vmul.f32 %v1567, %v2015
        %v2080 = vmul.f32 %v1568, %v2016
        %v2081 = vmul.f32 %v1569, %v2017
        %v2082 = vmul.f32 %v1570, %v2018
        %v2083 = vmul.f32 %v1571, %v2019
        %v2084 = vmul.f32 %v1572, %v2020
        %v2085 = vmul.f32 %v1573, %v2021
        %v2086 = vmul.f32 %v1574, %v2022
        %v2087 = vmul.f32 %v1575, %v2023
        %v2088 = vmul.f32 %v1576, %v2024
        %v2089 = vmul.f32 %v1577, %v2025
        %v2090 = vmul.f32 %v1578, %v2026
        %v2091 = vmul.f32 %v1579, %v2027
        %v2092 = vmul.f32 %v1580, %v2028
        %v2093 = vmul.f32 %v1581, %v2029
        %v2094 = vmul.f32 %v1582, %v2030
        %v2095 = vmul.f32 %v1583, %v2031
        %v2096 = vmul.f32 %v1584, %v2032
        %v2097 = vmul.f32 %v1585, %v2033
        %v2098 = vmul.f32 %v1586, %v2034
        %v2099 = vmul.f32 %v1587, %v2035
        %v2100 = vpack.c.bf16 %v2037, %v2036
        %v2101 = vpack.c.bf16 %v2039, %v2038
        %v2102 = vpack.c.bf16 %v2041, %v2040
        %v2103 = vpack.c.bf16 %v2043, %v2042
        %v2104 = vpack.c.bf16 %v2045, %v2044
        %v2105 = vpack.c.bf16 %v2047, %v2046
        %v2106 = vpack.c.bf16 %v2049, %v2048
        %v2107 = vpack.c.bf16 %v2051, %v2050
        %v2108 = vpack.c.bf16 %v2053, %v2052
        %v2109 = vpack.c.bf16 %v2055, %v2054
        %v2110 = vpack.c.bf16 %v2057, %v2056
        %v2111 = vpack.c.bf16 %v2059, %v2058
        %v2112 = vpack.c.bf16 %v2061, %v2060
        %v2113 = vpack.c.bf16 %v2063, %v2062
        %v2114 = vpack.c.bf16 %v2065, %v2064
        %v2115 = vpack.c.bf16 %v2067, %v2066
        %v2116 = vpack.c.bf16 %v2069, %v2068
        %v2117 = vpack.c.bf16 %v2071, %v2070
        %v2118 = vpack.c.bf16 %v2073, %v2072
        %v2119 = vpack.c.bf16 %v2075, %v2074
        %v2120 = vpack.c.bf16 %v2077, %v2076
        %v2121 = vpack.c.bf16 %v2079, %v2078
        %v2122 = vpack.c.bf16 %v2081, %v2080
        %v2123 = vpack.c.bf16 %v2083, %v2082
        %v2124 = vpack.c.bf16 %v2085, %v2084
        %v2125 = vpack.c.bf16 %v2087, %v2086
        %v2126 = vpack.c.bf16 %v2089, %v2088
        %v2127 = vpack.c.bf16 %v2091, %v2090
        %v2128 = vpack.c.bf16 %v2093, %v2092
        %v2129 = vpack.c.bf16 %v2095, %v2094
        %v2130 = vpack.c.bf16 %v2097, %v2096
        %v2131 = vpack.c.bf16 %v2099, %v2098
        %v2132 = vld [vmem:[%s5] sm:$0xf]
        %v2133 = vld [vmem:[%s5 + $0x4] sm:$0xf]
        %v2134 = vld [vmem:[%s5 + $0x8] sm:$0xf]
        %v2135 = vld [vmem:[%s5 + $0xc] sm:$0xf]
        %v2136 = vld [vmem:[%s5 + $0x10] sm:$0xf]
        %v2137 = vld [vmem:[%s5 + $0x14] sm:$0xf]
        %v2138 = vld [vmem:[%s5 + $0x18] sm:$0xf]
        %v2139 = vld [vmem:[%s5 + $0x1c] sm:$0xf]
        %v2140 = vld [vmem:[%s5 + $0x20] sm:$0xf]
        %v2141 = vld [vmem:[%s5 + $0x24] sm:$0xf]
        %v2142 = vld [vmem:[%s5 + $0x28] sm:$0xf]
        %v2143 = vld [vmem:[%s5 + $0x2c] sm:$0xf]
        %v2144 = vld [vmem:[%s5 + $0x30] sm:$0xf]
        %v2145 = vld [vmem:[%s5 + $0x34] sm:$0xf]
        %v2146 = vld [vmem:[%s5 + $0x38] sm:$0xf]
        %v2147 = vld [vmem:[%s5 + $0x3c] sm:$0xf]
        %v2148 = vld [vmem:[%s6] sm:$0x1]
        %v2150 = vlaneseq
        %v2151 = vshrl.u32 %v2150, 7
        %v2152 = vsub.s32 0, %v2151
        %v2153 = vrot.slane %v2148, %v2152
        %v2171 = vunpack.c.l.b16 %v2132
        %v2172 = vunpack.c.l.b16 %v2133
        %v2173 = vunpack.c.l.b16 %v2134
        %v2174 = vunpack.c.l.b16 %v2135
        %v2175 = vunpack.c.l.b16 %v2136
        %v2176 = vunpack.c.l.b16 %v2137
        %v2177 = vunpack.c.l.b16 %v2138
        %v2178 = vunpack.c.l.b16 %v2139
        %v2179 = vunpack.c.l.b16 %v2140
        %v2180 = vunpack.c.l.b16 %v2141
        %v2181 = vunpack.c.l.b16 %v2142
        %v2182 = vunpack.c.l.b16 %v2143
        %v2183 = vunpack.c.l.b16 %v2144
        %v2184 = vunpack.c.l.b16 %v2145
        %v2185 = vunpack.c.l.b16 %v2146
        %v2186 = vunpack.c.l.b16 %v2147
        %v2187 = vpack.c.b16 %v2172, %v2171
        %v2188 = vpack.c.b16 %v2174, %v2173
        %v2189 = vpack.c.b16 %v2176, %v2175
        %v2190 = vpack.c.b16 %v2178, %v2177
        %v2191 = vpack.c.b16 %v2180, %v2179
        %v2192 = vpack.c.b16 %v2182, %v2181
        %v2193 = vpack.c.b16 %v2184, %v2183
        %v2194 = vpack.c.b16 %v2186, %v2185
        %2203 = vmatprep.subr.bf16.mxu0 0
        %2204 = vmatpush1.bf16.msra.mxu0 %v2194
        %2205 = vmatprep.subr.bf16.mxu0 0
        %2206 = vmatpush1.bf16.msra.mxu0 %v2193
        %2207 = vmatprep.subr.bf16.mxu0 0
        %2208 = vmatpush1.bf16.msra.mxu0 %v2192
        %2209 = vmatprep.subr.bf16.mxu0 0
        %2210 = vmatpush1.bf16.msra.mxu0 %v2191
        %2211 = vmatprep.subr.bf16.mxu0 0
        %2212 = vmatpush1.bf16.msra.mxu0 %v2190
        %2213 = vmatprep.subr.bf16.mxu0 0
        %2214 = vmatpush1.bf16.msra.mxu0 %v2189
        %2215 = vmatprep.subr.bf16.mxu0 0
        %2216 = vmatpush1.bf16.msra.mxu0 %v2188
        %2217 = vmatprep.subr.bf16.mxu0 0
        %2218 = vmatpush1.bf16.msra.mxu0 %v2187
        %2219 = vmatprep.subr.bf16.mxu0 0
        %2220 = vmatpush2.bf16.msra.mxu0 0
        %2221 = vmatprep.subr.bf16.mxu0 0
        %2222 = vmatpush2.bf16.msra.mxu0 0
        %2223 = vmatprep.subr.bf16.mxu0 0
        %2224 = vmatpush2.bf16.msra.mxu0 0
        %2225 = vmatprep.subr.bf16.mxu0 0
        %2226 = vmatpush2.bf16.msra.mxu0 0
        %2227 = vmatprep.subr.bf16.mxu0 0
        %2228 = vmatpush2.bf16.msra.mxu0 0
        %2229 = vmatprep.subr.bf16.mxu0 0
        %2230 = vmatpush2.bf16.msra.mxu0 0
        %2231 = vmatprep.subr.bf16.mxu0 0
        %2232 = vmatpush2.bf16.msra.mxu0 0
        %2233 = vmatprep.subr.bf16.mxu0 0
        %2234 = vmatpush2.bf16.msra.mxu0 0
        %2235 = vmatprep.mubr.bf16.mxu0 0
        %2236 = vmatmul.mubr.bf16.gmra.mxu0 %v2100
        %v2237 = vpop.f32.mrf.mxu0
        %v2238 = vadd.f32 %v2153, %v2237
        %v2239 = vpop.f32.mrf.mxu0
        %v2240 = vpop.f32.mrf.mxu0
        %v2241 = vadd.f32 %v2153, %v2240
        %v2242 = vpop.f32.mrf.mxu0
        %2243 = vmatprep.mubr.bf16.mxu0 0
        %2244 = vmatmul.mubr.bf16.gmra.mxu0 %v2101
        %v2245 = vpop.f32.mrf.mxu0
        %v2246 = vadd.f32 %v2153, %v2245
        %v2247 = vpop.f32.mrf.mxu0
        %v2248 = vpop.f32.mrf.mxu0
        %v2249 = vadd.f32 %v2153, %v2248
        %v2250 = vpop.f32.mrf.mxu0
        %2251 = vmatprep.mubr.bf16.mxu0 0
        %2252 = vmatmul.mubr.bf16.gmra.mxu0 %v2102
        %v2253 = vpop.f32.mrf.mxu0
        %v2254 = vadd.f32 %v2153, %v2253
        %v2255 = vpop.f32.mrf.mxu0
        %v2256 = vpop.f32.mrf.mxu0
        %v2257 = vadd.f32 %v2153, %v2256
        %v2258 = vpop.f32.mrf.mxu0
        %2259 = vmatprep.mubr.bf16.mxu0 0
        %2260 = vmatmul.mubr.bf16.gmra.mxu0 %v2103
        %v2261 = vpop.f32.mrf.mxu0
        %v2262 = vadd.f32 %v2153, %v2261
        %v2263 = vpop.f32.mrf.mxu0
        %v2264 = vpop.f32.mrf.mxu0
        %v2265 = vadd.f32 %v2153, %v2264
        %v2266 = vpop.f32.mrf.mxu0
        %2267 = vmatprep.mubr.bf16.mxu0 0
        %2268 = vmatmul.mubr.bf16.gmra.mxu0 %v2104
        %v2269 = vpop.f32.mrf.mxu0
        %v2270 = vadd.f32 %v2153, %v2269
        %v2271 = vpop.f32.mrf.mxu0
        %v2272 = vpop.f32.mrf.mxu0
        %v2273 = vadd.f32 %v2153, %v2272
        %v2274 = vpop.f32.mrf.mxu0
        %2275 = vmatprep.mubr.bf16.mxu0 0
        %2276 = vmatmul.mubr.bf16.gmra.mxu0 %v2105
        %v2277 = vpop.f32.mrf.mxu0
        %v2278 = vadd.f32 %v2153, %v2277
        %v2279 = vpop.f32.mrf.mxu0
        %v2280 = vpop.f32.mrf.mxu0
        %v2281 = vadd.f32 %v2153, %v2280
        %v2282 = vpop.f32.mrf.mxu0
        %2283 = vmatprep.mubr.bf16.mxu0 0
        %2284 = vmatmul.mubr.bf16.gmra.mxu0 %v2106
        %v2285 = vpop.f32.mrf.mxu0
        %v2286 = vadd.f32 %v2153, %v2285
        %v2287 = vpop.f32.mrf.mxu0
        %v2288 = vpop.f32.mrf.mxu0
        %v2289 = vadd.f32 %v2153, %v2288
        %v2290 = vpop.f32.mrf.mxu0
        %2291 = vmatprep.mubr.bf16.mxu0 0
        %2292 = vmatmul.mubr.bf16.gmra.mxu0 %v2107
        %v2293 = vpop.f32.mrf.mxu0
        %v2294 = vadd.f32 %v2153, %v2293
        %v2295 = vpop.f32.mrf.mxu0
        %v2296 = vpop.f32.mrf.mxu0
        %v2297 = vadd.f32 %v2153, %v2296
        %v2298 = vpop.f32.mrf.mxu0
        %2299 = vmatprep.mubr.bf16.mxu0 0
        %2300 = vmatmul.mubr.bf16.gmra.mxu0 %v2108
        %v2301 = vpop.f32.mrf.mxu0
        %v2302 = vadd.f32 %v2153, %v2301
        %v2303 = vpop.f32.mrf.mxu0
        %v2304 = vpop.f32.mrf.mxu0
        %v2305 = vadd.f32 %v2153, %v2304
        %v2306 = vpop.f32.mrf.mxu0
        %2307 = vmatprep.mubr.bf16.mxu0 0
        %2308 = vmatmul.mubr.bf16.gmra.mxu0 %v2109
        %v2309 = vpop.f32.mrf.mxu0
        %v2310 = vadd.f32 %v2153, %v2309
        %v2311 = vpop.f32.mrf.mxu0
        %v2312 = vpop.f32.mrf.mxu0
        %v2313 = vadd.f32 %v2153, %v2312
        %v2314 = vpop.f32.mrf.mxu0
        %2315 = vmatprep.mubr.bf16.mxu0 0
        %2316 = vmatmul.mubr.bf16.gmra.mxu0 %v2110
        %v2317 = vpop.f32.mrf.mxu0
        %v2318 = vadd.f32 %v2153, %v2317
        %v2319 = vpop.f32.mrf.mxu0
        %v2320 = vpop.f32.mrf.mxu0
        %v2321 = vadd.f32 %v2153, %v2320
        %v2322 = vpop.f32.mrf.mxu0
        %2323 = vmatprep.mubr.bf16.mxu0 0
        %2324 = vmatmul.mubr.bf16.gmra.mxu0 %v2111
        %v2325 = vpop.f32.mrf.mxu0
        %v2326 = vadd.f32 %v2153, %v2325
        %v2327 = vpop.f32.mrf.mxu0
        %v2328 = vpop.f32.mrf.mxu0
        %v2329 = vadd.f32 %v2153, %v2328
        %v2330 = vpop.f32.mrf.mxu0
        %2331 = vmatprep.mubr.bf16.mxu0 0
        %2332 = vmatmul.mubr.bf16.gmra.mxu0 %v2112
        %v2333 = vpop.f32.mrf.mxu0
        %v2334 = vadd.f32 %v2153, %v2333
        %v2335 = vpop.f32.mrf.mxu0
        %v2336 = vpop.f32.mrf.mxu0
        %v2337 = vadd.f32 %v2153, %v2336
        %v2338 = vpop.f32.mrf.mxu0
        %2339 = vmatprep.mubr.bf16.mxu0 0
        %2340 = vmatmul.mubr.bf16.gmra.mxu0 %v2113
        %v2341 = vpop.f32.mrf.mxu0
        %v2342 = vadd.f32 %v2153, %v2341
        %v2343 = vpop.f32.mrf.mxu0
        %v2344 = vpop.f32.mrf.mxu0
        %v2345 = vadd.f32 %v2153, %v2344
        %v2346 = vpop.f32.mrf.mxu0
        %2347 = vmatprep.mubr.bf16.mxu0 0
        %2348 = vmatmul.mubr.bf16.gmra.mxu0 %v2114
        %v2349 = vpop.f32.mrf.mxu0
        %v2350 = vadd.f32 %v2153, %v2349
        %v2351 = vpop.f32.mrf.mxu0
        %v2352 = vpop.f32.mrf.mxu0
        %v2353 = vadd.f32 %v2153, %v2352
        %v2354 = vpop.f32.mrf.mxu0
        %2355 = vmatprep.mubr.bf16.mxu0 0
        %2356 = vmatmul.mubr.bf16.gmra.mxu0 %v2115
        %v2357 = vpop.f32.mrf.mxu0
        %v2358 = vadd.f32 %v2153, %v2357
        %v2359 = vpop.f32.mrf.mxu0
        %v2360 = vpop.f32.mrf.mxu0
        %v2361 = vadd.f32 %v2153, %v2360
        %v2362 = vpop.f32.mrf.mxu0
        %2363 = vmatprep.mubr.bf16.mxu0 0
        %2364 = vmatmul.mubr.bf16.gmra.mxu0 %v2116
        %v2365 = vpop.f32.mrf.mxu0
        %v2366 = vadd.f32 %v2153, %v2365
        %v2367 = vpop.f32.mrf.mxu0
        %v2368 = vpop.f32.mrf.mxu0
        %v2369 = vadd.f32 %v2153, %v2368
        %v2370 = vpop.f32.mrf.mxu0
        %2371 = vmatprep.mubr.bf16.mxu0 0
        %2372 = vmatmul.mubr.bf16.gmra.mxu0 %v2117
        %v2373 = vpop.f32.mrf.mxu0
        %v2374 = vadd.f32 %v2153, %v2373
        %v2375 = vpop.f32.mrf.mxu0
        %v2376 = vpop.f32.mrf.mxu0
        %v2377 = vadd.f32 %v2153, %v2376
        %v2378 = vpop.f32.mrf.mxu0
        %2379 = vmatprep.mubr.bf16.mxu0 0
        %2380 = vmatmul.mubr.bf16.gmra.mxu0 %v2118
        %v2381 = vpop.f32.mrf.mxu0
        %v2382 = vadd.f32 %v2153, %v2381
        %v2383 = vpop.f32.mrf.mxu0
        %v2384 = vpop.f32.mrf.mxu0
        %v2385 = vadd.f32 %v2153, %v2384
        %v2386 = vpop.f32.mrf.mxu0
        %2387 = vmatprep.mubr.bf16.mxu0 0
        %2388 = vmatmul.mubr.bf16.gmra.mxu0 %v2119
        %v2389 = vpop.f32.mrf.mxu0
        %v2390 = vadd.f32 %v2153, %v2389
        %v2391 = vpop.f32.mrf.mxu0
        %v2392 = vpop.f32.mrf.mxu0
        %v2393 = vadd.f32 %v2153, %v2392
        %v2394 = vpop.f32.mrf.mxu0
        %2395 = vmatprep.mubr.bf16.mxu0 0
        %2396 = vmatmul.mubr.bf16.gmra.mxu0 %v2120
        %v2397 = vpop.f32.mrf.mxu0
        %v2398 = vadd.f32 %v2153, %v2397
        %v2399 = vpop.f32.mrf.mxu0
        %v2400 = vpop.f32.mrf.mxu0
        %v2401 = vadd.f32 %v2153, %v2400
        %v2402 = vpop.f32.mrf.mxu0
        %2403 = vmatprep.mubr.bf16.mxu0 0
        %2404 = vmatmul.mubr.bf16.gmra.mxu0 %v2121
        %v2405 = vpop.f32.mrf.mxu0
        %v2406 = vadd.f32 %v2153, %v2405
        %v2407 = vpop.f32.mrf.mxu0
        %v2408 = vpop.f32.mrf.mxu0
        %v2409 = vadd.f32 %v2153, %v2408
        %v2410 = vpop.f32.mrf.mxu0
        %2411 = vmatprep.mubr.bf16.mxu0 0
        %2412 = vmatmul.mubr.bf16.gmra.mxu0 %v2122
        %v2413 = vpop.f32.mrf.mxu0
        %v2414 = vadd.f32 %v2153, %v2413
        %v2415 = vpop.f32.mrf.mxu0
        %v2416 = vpop.f32.mrf.mxu0
        %v2417 = vadd.f32 %v2153, %v2416
        %v2418 = vpop.f32.mrf.mxu0
        %2419 = vmatprep.mubr.bf16.mxu0 0
        %2420 = vmatmul.mubr.bf16.gmra.mxu0 %v2123
        %v2421 = vpop.f32.mrf.mxu0
        %v2422 = vadd.f32 %v2153, %v2421
        %v2423 = vpop.f32.mrf.mxu0
        %v2424 = vpop.f32.mrf.mxu0
        %v2425 = vadd.f32 %v2153, %v2424
        %v2426 = vpop.f32.mrf.mxu0
        %2427 = vmatprep.mubr.bf16.mxu0 0
        %2428 = vmatmul.mubr.bf16.gmra.mxu0 %v2124
        %v2429 = vpop.f32.mrf.mxu0
        %v2430 = vadd.f32 %v2153, %v2429
        %v2431 = vpop.f32.mrf.mxu0
        %v2432 = vpop.f32.mrf.mxu0
        %v2433 = vadd.f32 %v2153, %v2432
        %v2434 = vpop.f32.mrf.mxu0
        %2435 = vmatprep.mubr.bf16.mxu0 0
        %2436 = vmatmul.mubr.bf16.gmra.mxu0 %v2125
        %v2437 = vpop.f32.mrf.mxu0
        %v2438 = vadd.f32 %v2153, %v2437
        %v2439 = vpop.f32.mrf.mxu0
        %v2440 = vpop.f32.mrf.mxu0
        %v2441 = vadd.f32 %v2153, %v2440
        %v2442 = vpop.f32.mrf.mxu0
        %2443 = vmatprep.mubr.bf16.mxu0 0
        %2444 = vmatmul.mubr.bf16.gmra.mxu0 %v2126
        %v2445 = vpop.f32.mrf.mxu0
        %v2446 = vadd.f32 %v2153, %v2445
        %v2447 = vpop.f32.mrf.mxu0
        %v2448 = vpop.f32.mrf.mxu0
        %v2449 = vadd.f32 %v2153, %v2448
        %v2450 = vpop.f32.mrf.mxu0
        %2451 = vmatprep.mubr.bf16.mxu0 0
        %2452 = vmatmul.mubr.bf16.gmra.mxu0 %v2127
        %v2453 = vpop.f32.mrf.mxu0
        %v2454 = vadd.f32 %v2153, %v2453
        %v2455 = vpop.f32.mrf.mxu0
        %v2456 = vpop.f32.mrf.mxu0
        %v2457 = vadd.f32 %v2153, %v2456
        %v2458 = vpop.f32.mrf.mxu0
        %2459 = vmatprep.mubr.bf16.mxu0 0
        %2460 = vmatmul.mubr.bf16.gmra.mxu0 %v2128
        %v2461 = vpop.f32.mrf.mxu0
        %v2462 = vadd.f32 %v2153, %v2461
        %v2463 = vpop.f32.mrf.mxu0
        %v2464 = vpop.f32.mrf.mxu0
        %v2465 = vadd.f32 %v2153, %v2464
        %v2466 = vpop.f32.mrf.mxu0
        %2467 = vmatprep.mubr.bf16.mxu0 0
        %2468 = vmatmul.mubr.bf16.gmra.mxu0 %v2129
        %v2469 = vpop.f32.mrf.mxu0
        %v2470 = vadd.f32 %v2153, %v2469
        %v2471 = vpop.f32.mrf.mxu0
        %v2472 = vpop.f32.mrf.mxu0
        %v2473 = vadd.f32 %v2153, %v2472
        %v2474 = vpop.f32.mrf.mxu0
        %2475 = vmatprep.mubr.bf16.mxu0 0
        %2476 = vmatmul.mubr.bf16.gmra.mxu0 %v2130
        %v2477 = vpop.f32.mrf.mxu0
        %v2478 = vadd.f32 %v2153, %v2477
        %v2479 = vpop.f32.mrf.mxu0
        %v2480 = vpop.f32.mrf.mxu0
        %v2481 = vadd.f32 %v2153, %v2480
        %v2482 = vpop.f32.mrf.mxu0
        %2483 = vmatprep.mubr.bf16.mxu0 0
        %2484 = vmatmul.mubr.bf16.gmra.mxu0 %v2131
        %v2485 = vpop.f32.mrf.mxu0
        %v2486 = vadd.f32 %v2153, %v2485
        %v2487 = vpop.f32.mrf.mxu0
        %v2488 = vpop.f32.mrf.mxu0
        %v2489 = vadd.f32 %v2153, %v2488
        %v2490 = vpop.f32.mrf.mxu0
        %2491 = vdwg.mxu0
        %v2492 = vld [vmem:[%s7] sm:$0x1]
        %v2493 = vld [vmem:[%s8] sm:$0x1]
        %2494 = vadd.xlane.f32.xlu0 %v2238
        %v2495 = vpop.xlane.xlu0 %2494
        %2496 = vadd.xlane.f32.xlu0 %v2241
        %v2497 = vpop.xlane.xlu0 %2496
        %2498 = vadd.xlane.f32.xlu0 %v2246
        %v2499 = vpop.xlane.xlu0 %2498
        %2500 = vadd.xlane.f32.xlu0 %v2249
        %v2501 = vpop.xlane.xlu0 %2500
        %2502 = vadd.xlane.f32.xlu0 %v2254
        %v2503 = vpop.xlane.xlu0 %2502
        %2504 = vadd.xlane.f32.xlu0 %v2257
        %v2505 = vpop.xlane.xlu0 %2504
        %2506 = vadd.xlane.f32.xlu0 %v2262
        %v2507 = vpop.xlane.xlu0 %2506
        %2508 = vadd.xlane.f32.xlu0 %v2265
        %v2509 = vpop.xlane.xlu0 %2508
        %2510 = vadd.xlane.f32.xlu0 %v2270
        %v2511 = vpop.xlane.xlu0 %2510
        %2512 = vadd.xlane.f32.xlu0 %v2273
        %v2513 = vpop.xlane.xlu0 %2512
        %2514 = vadd.xlane.f32.xlu0 %v2278
        %v2515 = vpop.xlane.xlu0 %2514
        %2516 = vadd.xlane.f32.xlu0 %v2281
        %v2517 = vpop.xlane.xlu0 %2516
        %2518 = vadd.xlane.f32.xlu0 %v2286
        %v2519 = vpop.xlane.xlu0 %2518
        %2520 = vadd.xlane.f32.xlu0 %v2289
        %v2521 = vpop.xlane.xlu0 %2520
        %2522 = vadd.xlane.f32.xlu0 %v2294
        %v2523 = vpop.xlane.xlu0 %2522
        %2524 = vadd.xlane.f32.xlu0 %v2297
        %v2525 = vpop.xlane.xlu0 %2524
        %2526 = vadd.xlane.f32.xlu0 %v2302
        %v2527 = vpop.xlane.xlu0 %2526
        %2528 = vadd.xlane.f32.xlu0 %v2305
        %v2529 = vpop.xlane.xlu0 %2528
        %2530 = vadd.xlane.f32.xlu0 %v2310
        %v2531 = vpop.xlane.xlu0 %2530
        %2532 = vadd.xlane.f32.xlu0 %v2313
        %v2533 = vpop.xlane.xlu0 %2532
        %2534 = vadd.xlane.f32.xlu0 %v2318
        %v2535 = vpop.xlane.xlu0 %2534
        %2536 = vadd.xlane.f32.xlu0 %v2321
        %v2537 = vpop.xlane.xlu0 %2536
        %2538 = vadd.xlane.f32.xlu0 %v2326
        %v2539 = vpop.xlane.xlu0 %2538
        %2540 = vadd.xlane.f32.xlu0 %v2329
        %v2541 = vpop.xlane.xlu0 %2540
        %2542 = vadd.xlane.f32.xlu0 %v2334
        %v2543 = vpop.xlane.xlu0 %2542
        %2544 = vadd.xlane.f32.xlu0 %v2337
        %v2545 = vpop.xlane.xlu0 %2544
        %2546 = vadd.xlane.f32.xlu0 %v2342
        %v2547 = vpop.xlane.xlu0 %2546
        %2548 = vadd.xlane.f32.xlu0 %v2345
        %v2549 = vpop.xlane.xlu0 %2548
        %2550 = vadd.xlane.f32.xlu0 %v2350
        %v2551 = vpop.xlane.xlu0 %2550
        %2552 = vadd.xlane.f32.xlu0 %v2353
        %v2553 = vpop.xlane.xlu0 %2552
        %2554 = vadd.xlane.f32.xlu0 %v2358
        %v2555 = vpop.xlane.xlu0 %2554
        %2556 = vadd.xlane.f32.xlu0 %v2361
        %v2557 = vpop.xlane.xlu0 %2556
        %2558 = vadd.xlane.f32.xlu0 %v2366
        %v2559 = vpop.xlane.xlu0 %2558
        %2560 = vadd.xlane.f32.xlu0 %v2369
        %v2561 = vpop.xlane.xlu0 %2560
        %2562 = vadd.xlane.f32.xlu0 %v2374
        %v2563 = vpop.xlane.xlu0 %2562
        %2564 = vadd.xlane.f32.xlu0 %v2377
        %v2565 = vpop.xlane.xlu0 %2564
        %2566 = vadd.xlane.f32.xlu0 %v2382
        %v2567 = vpop.xlane.xlu0 %2566
        %2568 = vadd.xlane.f32.xlu0 %v2385
        %v2569 = vpop.xlane.xlu0 %2568
        %2570 = vadd.xlane.f32.xlu0 %v2390
        %v2571 = vpop.xlane.xlu0 %2570
        %2572 = vadd.xlane.f32.xlu0 %v2393
        %v2573 = vpop.xlane.xlu0 %2572
        %2574 = vadd.xlane.f32.xlu0 %v2398
        %v2575 = vpop.xlane.xlu0 %2574
        %2576 = vadd.xlane.f32.xlu0 %v2401
        %v2577 = vpop.xlane.xlu0 %2576
        %2578 = vadd.xlane.f32.xlu0 %v2406
        %v2579 = vpop.xlane.xlu0 %2578
        %2580 = vadd.xlane.f32.xlu0 %v2409
        %v2581 = vpop.xlane.xlu0 %2580
        %2582 = vadd.xlane.f32.xlu0 %v2414
        %v2583 = vpop.xlane.xlu0 %2582
        %2584 = vadd.xlane.f32.xlu0 %v2417
        %v2585 = vpop.xlane.xlu0 %2584
        %2586 = vadd.xlane.f32.xlu0 %v2422
        %v2587 = vpop.xlane.xlu0 %2586
        %2588 = vadd.xlane.f32.xlu0 %v2425
        %v2589 = vpop.xlane.xlu0 %2588
        %2590 = vadd.xlane.f32.xlu0 %v2430
        %v2591 = vpop.xlane.xlu0 %2590
        %2592 = vadd.xlane.f32.xlu0 %v2433
        %v2593 = vpop.xlane.xlu0 %2592
        %2594 = vadd.xlane.f32.xlu0 %v2438
        %v2595 = vpop.xlane.xlu0 %2594
        %2596 = vadd.xlane.f32.xlu0 %v2441
        %v2597 = vpop.xlane.xlu0 %2596
        %2598 = vadd.xlane.f32.xlu0 %v2446
        %v2599 = vpop.xlane.xlu0 %2598
        %2600 = vadd.xlane.f32.xlu0 %v2449
        %v2601 = vpop.xlane.xlu0 %2600
        %2602 = vadd.xlane.f32.xlu0 %v2454
        %v2603 = vpop.xlane.xlu0 %2602
        %2604 = vadd.xlane.f32.xlu0 %v2457
        %v2605 = vpop.xlane.xlu0 %2604
        %2606 = vadd.xlane.f32.xlu0 %v2462
        %v2607 = vpop.xlane.xlu0 %2606
        %2608 = vadd.xlane.f32.xlu0 %v2465
        %v2609 = vpop.xlane.xlu0 %2608
        %2610 = vadd.xlane.f32.xlu0 %v2470
        %v2611 = vpop.xlane.xlu0 %2610
        %2612 = vadd.xlane.f32.xlu0 %v2473
        %v2613 = vpop.xlane.xlu0 %2612
        %2614 = vadd.xlane.f32.xlu0 %v2478
        %v2615 = vpop.xlane.xlu0 %2614
        %2616 = vadd.xlane.f32.xlu0 %v2481
        %v2617 = vpop.xlane.xlu0 %2616
        %2618 = vadd.xlane.f32.xlu0 %v2486
        %v2619 = vpop.xlane.xlu0 %2618
        %2620 = vadd.xlane.f32.xlu0 %v2489
        %v2621 = vpop.xlane.xlu0 %2620
        %v2622 = vrcp.pop 128.0
        %v2623 = vmul.f32 %v2495, %v2622
        %v2624 = vmul.f32 %v2497, %v2622
        %v2625 = vmul.f32 %v2499, %v2622
        %v2626 = vmul.f32 %v2501, %v2622
        %v2627 = vmul.f32 %v2503, %v2622
        %v2628 = vmul.f32 %v2505, %v2622
        %v2629 = vmul.f32 %v2507, %v2622
        %v2630 = vmul.f32 %v2509, %v2622
        %v2631 = vmul.f32 %v2511, %v2622
        %v2632 = vmul.f32 %v2513, %v2622
        %v2633 = vmul.f32 %v2515, %v2622
        %v2634 = vmul.f32 %v2517, %v2622
        %v2635 = vmul.f32 %v2519, %v2622
        %v2636 = vmul.f32 %v2521, %v2622
        %v2637 = vmul.f32 %v2523, %v2622
        %v2638 = vmul.f32 %v2525, %v2622
        %v2639 = vmul.f32 %v2527, %v2622
        %v2640 = vmul.f32 %v2529, %v2622
        %v2641 = vmul.f32 %v2531, %v2622
        %v2642 = vmul.f32 %v2533, %v2622
        %v2643 = vmul.f32 %v2535, %v2622
        %v2644 = vmul.f32 %v2537, %v2622
        %v2645 = vmul.f32 %v2539, %v2622
        %v2646 = vmul.f32 %v2541, %v2622
        %v2647 = vmul.f32 %v2543, %v2622
        %v2648 = vmul.f32 %v2545, %v2622
        %v2649 = vmul.f32 %v2547, %v2622
        %v2650 = vmul.f32 %v2549, %v2622
        %v2651 = vmul.f32 %v2551, %v2622
        %v2652 = vmul.f32 %v2553, %v2622
        %v2653 = vmul.f32 %v2555, %v2622
        %v2654 = vmul.f32 %v2557, %v2622
        %v2655 = vmul.f32 %v2559, %v2622
        %v2656 = vmul.f32 %v2561, %v2622
        %v2657 = vmul.f32 %v2563, %v2622
        %v2658 = vmul.f32 %v2565, %v2622
        %v2659 = vmul.f32 %v2567, %v2622
        %v2660 = vmul.f32 %v2569, %v2622
        %v2661 = vmul.f32 %v2571, %v2622
        %v2662 = vmul.f32 %v2573, %v2622
        %v2663 = vmul.f32 %v2575, %v2622
        %v2664 = vmul.f32 %v2577, %v2622
        %v2665 = vmul.f32 %v2579, %v2622
        %v2666 = vmul.f32 %v2581, %v2622
        %v2667 = vmul.f32 %v2583, %v2622
        %v2668 = vmul.f32 %v2585, %v2622
        %v2669 = vmul.f32 %v2587, %v2622
        %v2670 = vmul.f32 %v2589, %v2622
        %v2671 = vmul.f32 %v2591, %v2622
        %v2672 = vmul.f32 %v2593, %v2622
        %v2673 = vmul.f32 %v2595, %v2622
        %v2674 = vmul.f32 %v2597, %v2622
        %v2675 = vmul.f32 %v2599, %v2622
        %v2676 = vmul.f32 %v2601, %v2622
        %v2677 = vmul.f32 %v2603, %v2622
        %v2678 = vmul.f32 %v2605, %v2622
        %v2679 = vmul.f32 %v2607, %v2622
        %v2680 = vmul.f32 %v2609, %v2622
        %v2681 = vmul.f32 %v2611, %v2622
        %v2682 = vmul.f32 %v2613, %v2622
        %v2683 = vmul.f32 %v2615, %v2622
        %v2684 = vmul.f32 %v2617, %v2622
        %v2685 = vmul.f32 %v2619, %v2622
        %v2686 = vmul.f32 %v2621, %v2622
        %v2687 = vsub.f32 %v2238, %v2623
        %v2688 = vsub.f32 %v2241, %v2624
        %v2689 = vsub.f32 %v2246, %v2625
        %v2690 = vsub.f32 %v2249, %v2626
        %v2691 = vsub.f32 %v2254, %v2627
        %v2692 = vsub.f32 %v2257, %v2628
        %v2693 = vsub.f32 %v2262, %v2629
        %v2694 = vsub.f32 %v2265, %v2630
        %v2695 = vsub.f32 %v2270, %v2631
        %v2696 = vsub.f32 %v2273, %v2632
        %v2697 = vsub.f32 %v2278, %v2633
        %v2698 = vsub.f32 %v2281, %v2634
        %v2699 = vsub.f32 %v2286, %v2635
        %v2700 = vsub.f32 %v2289, %v2636
        %v2701 = vsub.f32 %v2294, %v2637
        %v2702 = vsub.f32 %v2297, %v2638
        %v2703 = vsub.f32 %v2302, %v2639
        %v2704 = vsub.f32 %v2305, %v2640
        %v2705 = vsub.f32 %v2310, %v2641
        %v2706 = vsub.f32 %v2313, %v2642
        %v2707 = vsub.f32 %v2318, %v2643
        %v2708 = vsub.f32 %v2321, %v2644
        %v2709 = vsub.f32 %v2326, %v2645
        %v2710 = vsub.f32 %v2329, %v2646
        %v2711 = vsub.f32 %v2334, %v2647
        %v2712 = vsub.f32 %v2337, %v2648
        %v2713 = vsub.f32 %v2342, %v2649
        %v2714 = vsub.f32 %v2345, %v2650
        %v2715 = vsub.f32 %v2350, %v2651
        %v2716 = vsub.f32 %v2353, %v2652
        %v2717 = vsub.f32 %v2358, %v2653
        %v2718 = vsub.f32 %v2361, %v2654
        %v2719 = vsub.f32 %v2366, %v2655
        %v2720 = vsub.f32 %v2369, %v2656
        %v2721 = vsub.f32 %v2374, %v2657
        %v2722 = vsub.f32 %v2377, %v2658
        %v2723 = vsub.f32 %v2382, %v2659
        %v2724 = vsub.f32 %v2385, %v2660
        %v2725 = vsub.f32 %v2390, %v2661
        %v2726 = vsub.f32 %v2393, %v2662
        %v2727 = vsub.f32 %v2398, %v2663
        %v2728 = vsub.f32 %v2401, %v2664
        %v2729 = vsub.f32 %v2406, %v2665
        %v2730 = vsub.f32 %v2409, %v2666
        %v2731 = vsub.f32 %v2414, %v2667
        %v2732 = vsub.f32 %v2417, %v2668
        %v2733 = vsub.f32 %v2422, %v2669
        %v2734 = vsub.f32 %v2425, %v2670
        %v2735 = vsub.f32 %v2430, %v2671
        %v2736 = vsub.f32 %v2433, %v2672
        %v2737 = vsub.f32 %v2438, %v2673
        %v2738 = vsub.f32 %v2441, %v2674
        %v2739 = vsub.f32 %v2446, %v2675
        %v2740 = vsub.f32 %v2449, %v2676
        %v2741 = vsub.f32 %v2454, %v2677
        %v2742 = vsub.f32 %v2457, %v2678
        %v2743 = vsub.f32 %v2462, %v2679
        %v2744 = vsub.f32 %v2465, %v2680
        %v2745 = vsub.f32 %v2470, %v2681
        %v2746 = vsub.f32 %v2473, %v2682
        %v2747 = vsub.f32 %v2478, %v2683
        %v2748 = vsub.f32 %v2481, %v2684
        %v2749 = vsub.f32 %v2486, %v2685
        %v2750 = vsub.f32 %v2489, %v2686
        %v2751 = vmul.f32 %v2687, %v2687
        %v2752 = vmul.f32 %v2688, %v2688
        %v2753 = vmul.f32 %v2689, %v2689
        %v2754 = vmul.f32 %v2690, %v2690
        %v2755 = vmul.f32 %v2691, %v2691
        %v2756 = vmul.f32 %v2692, %v2692
        %v2757 = vmul.f32 %v2693, %v2693
        %v2758 = vmul.f32 %v2694, %v2694
        %v2759 = vmul.f32 %v2695, %v2695
        %v2760 = vmul.f32 %v2696, %v2696
        %v2761 = vmul.f32 %v2697, %v2697
        %v2762 = vmul.f32 %v2698, %v2698
        %v2763 = vmul.f32 %v2699, %v2699
        %v2764 = vmul.f32 %v2700, %v2700
        %v2765 = vmul.f32 %v2701, %v2701
        %v2766 = vmul.f32 %v2702, %v2702
        %v2767 = vmul.f32 %v2703, %v2703
        %v2768 = vmul.f32 %v2704, %v2704
        %v2769 = vmul.f32 %v2705, %v2705
        %v2770 = vmul.f32 %v2706, %v2706
        %v2771 = vmul.f32 %v2707, %v2707
        %v2772 = vmul.f32 %v2708, %v2708
        %v2773 = vmul.f32 %v2709, %v2709
        %v2774 = vmul.f32 %v2710, %v2710
        %v2775 = vmul.f32 %v2711, %v2711
        %v2776 = vmul.f32 %v2712, %v2712
        %v2777 = vmul.f32 %v2713, %v2713
        %v2778 = vmul.f32 %v2714, %v2714
        %v2779 = vmul.f32 %v2715, %v2715
        %v2780 = vmul.f32 %v2716, %v2716
        %v2781 = vmul.f32 %v2717, %v2717
        %v2782 = vmul.f32 %v2718, %v2718
        %v2783 = vmul.f32 %v2719, %v2719
        %v2784 = vmul.f32 %v2720, %v2720
        %v2785 = vmul.f32 %v2721, %v2721
        %v2786 = vmul.f32 %v2722, %v2722
        %v2787 = vmul.f32 %v2723, %v2723
        %v2788 = vmul.f32 %v2724, %v2724
        %v2789 = vmul.f32 %v2725, %v2725
        %v2790 = vmul.f32 %v2726, %v2726
        %v2791 = vmul.f32 %v2727, %v2727
        %v2792 = vmul.f32 %v2728, %v2728
        %v2793 = vmul.f32 %v2729, %v2729
        %v2794 = vmul.f32 %v2730, %v2730
        %v2795 = vmul.f32 %v2731, %v2731
        %v2796 = vmul.f32 %v2732, %v2732
        %v2797 = vmul.f32 %v2733, %v2733
        %v2798 = vmul.f32 %v2734, %v2734
        %v2799 = vmul.f32 %v2735, %v2735
        %v2800 = vmul.f32 %v2736, %v2736
        %v2801 = vmul.f32 %v2737, %v2737
        %v2802 = vmul.f32 %v2738, %v2738
        %v2803 = vmul.f32 %v2739, %v2739
        %v2804 = vmul.f32 %v2740, %v2740
        %v2805 = vmul.f32 %v2741, %v2741
        %v2806 = vmul.f32 %v2742, %v2742
        %v2807 = vmul.f32 %v2743, %v2743
        %v2808 = vmul.f32 %v2744, %v2744
        %v2809 = vmul.f32 %v2745, %v2745
        %v2810 = vmul.f32 %v2746, %v2746
        %v2811 = vmul.f32 %v2747, %v2747
        %v2812 = vmul.f32 %v2748, %v2748
        %v2813 = vmul.f32 %v2749, %v2749
        %v2814 = vmul.f32 %v2750, %v2750
        %2815 = vadd.xlane.f32.xlu0 %v2751
        %v2816 = vpop.xlane.xlu0 %2815
        %2817 = vadd.xlane.f32.xlu0 %v2752
        %v2818 = vpop.xlane.xlu0 %2817
        %2819 = vadd.xlane.f32.xlu0 %v2753
        %v2820 = vpop.xlane.xlu0 %2819
        %2821 = vadd.xlane.f32.xlu0 %v2754
        %v2822 = vpop.xlane.xlu0 %2821
        %2823 = vadd.xlane.f32.xlu0 %v2755
        %v2824 = vpop.xlane.xlu0 %2823
        %2825 = vadd.xlane.f32.xlu0 %v2756
        %v2826 = vpop.xlane.xlu0 %2825
        %2827 = vadd.xlane.f32.xlu0 %v2757
        %v2828 = vpop.xlane.xlu0 %2827
        %2829 = vadd.xlane.f32.xlu0 %v2758
        %v2830 = vpop.xlane.xlu0 %2829
        %2831 = vadd.xlane.f32.xlu0 %v2759
        %v2832 = vpop.xlane.xlu0 %2831
        %2833 = vadd.xlane.f32.xlu0 %v2760
        %v2834 = vpop.xlane.xlu0 %2833
        %2835 = vadd.xlane.f32.xlu0 %v2761
        %v2836 = vpop.xlane.xlu0 %2835
        %2837 = vadd.xlane.f32.xlu0 %v2762
        %v2838 = vpop.xlane.xlu0 %2837
        %2839 = vadd.xlane.f32.xlu0 %v2763
        %v2840 = vpop.xlane.xlu0 %2839
        %2841 = vadd.xlane.f32.xlu0 %v2764
        %v2842 = vpop.xlane.xlu0 %2841
        %2843 = vadd.xlane.f32.xlu0 %v2765
        %v2844 = vpop.xlane.xlu0 %2843
        %2845 = vadd.xlane.f32.xlu0 %v2766
        %v2846 = vpop.xlane.xlu0 %2845
        %2847 = vadd.xlane.f32.xlu0 %v2767
        %v2848 = vpop.xlane.xlu0 %2847
        %2849 = vadd.xlane.f32.xlu0 %v2768
        %v2850 = vpop.xlane.xlu0 %2849
        %2851 = vadd.xlane.f32.xlu0 %v2769
        %v2852 = vpop.xlane.xlu0 %2851
        %2853 = vadd.xlane.f32.xlu0 %v2770
        %v2854 = vpop.xlane.xlu0 %2853
        %2855 = vadd.xlane.f32.xlu0 %v2771
        %v2856 = vpop.xlane.xlu0 %2855
        %2857 = vadd.xlane.f32.xlu0 %v2772
        %v2858 = vpop.xlane.xlu0 %2857
        %2859 = vadd.xlane.f32.xlu0 %v2773
        %v2860 = vpop.xlane.xlu0 %2859
        %2861 = vadd.xlane.f32.xlu0 %v2774
        %v2862 = vpop.xlane.xlu0 %2861
        %2863 = vadd.xlane.f32.xlu0 %v2775
        %v2864 = vpop.xlane.xlu0 %2863
        %2865 = vadd.xlane.f32.xlu0 %v2776
        %v2866 = vpop.xlane.xlu0 %2865
        %2867 = vadd.xlane.f32.xlu0 %v2777
        %v2868 = vpop.xlane.xlu0 %2867
        %2869 = vadd.xlane.f32.xlu0 %v2778
        %v2870 = vpop.xlane.xlu0 %2869
        %2871 = vadd.xlane.f32.xlu0 %v2779
        %v2872 = vpop.xlane.xlu0 %2871
        %2873 = vadd.xlane.f32.xlu0 %v2780
        %v2874 = vpop.xlane.xlu0 %2873
        %2875 = vadd.xlane.f32.xlu0 %v2781
        %v2876 = vpop.xlane.xlu0 %2875
        %2877 = vadd.xlane.f32.xlu0 %v2782
        %v2878 = vpop.xlane.xlu0 %2877
        %2879 = vadd.xlane.f32.xlu0 %v2783
        %v2880 = vpop.xlane.xlu0 %2879
        %2881 = vadd.xlane.f32.xlu0 %v2784
        %v2882 = vpop.xlane.xlu0 %2881
        %2883 = vadd.xlane.f32.xlu0 %v2785
        %v2884 = vpop.xlane.xlu0 %2883
        %2885 = vadd.xlane.f32.xlu0 %v2786
        %v2886 = vpop.xlane.xlu0 %2885
        %2887 = vadd.xlane.f32.xlu0 %v2787
        %v2888 = vpop.xlane.xlu0 %2887
        %2889 = vadd.xlane.f32.xlu0 %v2788
        %v2890 = vpop.xlane.xlu0 %2889
        %2891 = vadd.xlane.f32.xlu0 %v2789
        %v2892 = vpop.xlane.xlu0 %2891
        %2893 = vadd.xlane.f32.xlu0 %v2790
        %v2894 = vpop.xlane.xlu0 %2893
        %2895 = vadd.xlane.f32.xlu0 %v2791
        %v2896 = vpop.xlane.xlu0 %2895
        %2897 = vadd.xlane.f32.xlu0 %v2792
        %v2898 = vpop.xlane.xlu0 %2897
        %2899 = vadd.xlane.f32.xlu0 %v2793
        %v2900 = vpop.xlane.xlu0 %2899
        %2901 = vadd.xlane.f32.xlu0 %v2794
        %v2902 = vpop.xlane.xlu0 %2901
        %2903 = vadd.xlane.f32.xlu0 %v2795
        %v2904 = vpop.xlane.xlu0 %2903
        %2905 = vadd.xlane.f32.xlu0 %v2796
        %v2906 = vpop.xlane.xlu0 %2905
        %2907 = vadd.xlane.f32.xlu0 %v2797
        %v2908 = vpop.xlane.xlu0 %2907
        %2909 = vadd.xlane.f32.xlu0 %v2798
        %v2910 = vpop.xlane.xlu0 %2909
        %2911 = vadd.xlane.f32.xlu0 %v2799
        %v2912 = vpop.xlane.xlu0 %2911
        %2913 = vadd.xlane.f32.xlu0 %v2800
        %v2914 = vpop.xlane.xlu0 %2913
        %2915 = vadd.xlane.f32.xlu0 %v2801
        %v2916 = vpop.xlane.xlu0 %2915
        %2917 = vadd.xlane.f32.xlu0 %v2802
        %v2918 = vpop.xlane.xlu0 %2917
        %2919 = vadd.xlane.f32.xlu0 %v2803
        %v2920 = vpop.xlane.xlu0 %2919
        %2921 = vadd.xlane.f32.xlu0 %v2804
        %v2922 = vpop.xlane.xlu0 %2921
        %2923 = vadd.xlane.f32.xlu0 %v2805
        %v2924 = vpop.xlane.xlu0 %2923
        %2925 = vadd.xlane.f32.xlu0 %v2806
        %v2926 = vpop.xlane.xlu0 %2925
        %2927 = vadd.xlane.f32.xlu0 %v2807
        %v2928 = vpop.xlane.xlu0 %2927
        %2929 = vadd.xlane.f32.xlu0 %v2808
        %v2930 = vpop.xlane.xlu0 %2929
        %2931 = vadd.xlane.f32.xlu0 %v2809
        %v2932 = vpop.xlane.xlu0 %2931
        %2933 = vadd.xlane.f32.xlu0 %v2810
        %v2934 = vpop.xlane.xlu0 %2933
        %2935 = vadd.xlane.f32.xlu0 %v2811
        %v2936 = vpop.xlane.xlu0 %2935
        %2937 = vadd.xlane.f32.xlu0 %v2812
        %v2938 = vpop.xlane.xlu0 %2937
        %2939 = vadd.xlane.f32.xlu0 %v2813
        %v2940 = vpop.xlane.xlu0 %2939
        %2941 = vadd.xlane.f32.xlu0 %v2814
        %v2942 = vpop.xlane.xlu0 %2941
        %v2943 = vmul.f32 %v2816, %v2622
        %v2944 = vmul.f32 %v2818, %v2622
        %v2945 = vmul.f32 %v2820, %v2622
        %v2946 = vmul.f32 %v2822, %v2622
        %v2947 = vmul.f32 %v2824, %v2622
        %v2948 = vmul.f32 %v2826, %v2622
        %v2949 = vmul.f32 %v2828, %v2622
        %v2950 = vmul.f32 %v2830, %v2622
        %v2951 = vmul.f32 %v2832, %v2622
        %v2952 = vmul.f32 %v2834, %v2622
        %v2953 = vmul.f32 %v2836, %v2622
        %v2954 = vmul.f32 %v2838, %v2622
        %v2955 = vmul.f32 %v2840, %v2622
        %v2956 = vmul.f32 %v2842, %v2622
        %v2957 = vmul.f32 %v2844, %v2622
        %v2958 = vmul.f32 %v2846, %v2622
        %v2959 = vmul.f32 %v2848, %v2622
        %v2960 = vmul.f32 %v2850, %v2622
        %v2961 = vmul.f32 %v2852, %v2622
        %v2962 = vmul.f32 %v2854, %v2622
        %v2963 = vmul.f32 %v2856, %v2622
        %v2964 = vmul.f32 %v2858, %v2622
        %v2965 = vmul.f32 %v2860, %v2622
        %v2966 = vmul.f32 %v2862, %v2622
        %v2967 = vmul.f32 %v2864, %v2622
        %v2968 = vmul.f32 %v2866, %v2622
        %v2969 = vmul.f32 %v2868, %v2622
        %v2970 = vmul.f32 %v2870, %v2622
        %v2971 = vmul.f32 %v2872, %v2622
        %v2972 = vmul.f32 %v2874, %v2622
        %v2973 = vmul.f32 %v2876, %v2622
        %v2974 = vmul.f32 %v2878, %v2622
        %v2975 = vmul.f32 %v2880, %v2622
        %v2976 = vmul.f32 %v2882, %v2622
        %v2977 = vmul.f32 %v2884, %v2622
        %v2978 = vmul.f32 %v2886, %v2622
        %v2979 = vmul.f32 %v2888, %v2622
        %v2980 = vmul.f32 %v2890, %v2622
        %v2981 = vmul.f32 %v2892, %v2622
        %v2982 = vmul.f32 %v2894, %v2622
        %v2983 = vmul.f32 %v2896, %v2622
        %v2984 = vmul.f32 %v2898, %v2622
        %v2985 = vmul.f32 %v2900, %v2622
        %v2986 = vmul.f32 %v2902, %v2622
        %v2987 = vmul.f32 %v2904, %v2622
        %v2988 = vmul.f32 %v2906, %v2622
        %v2989 = vmul.f32 %v2908, %v2622
        %v2990 = vmul.f32 %v2910, %v2622
        %v2991 = vmul.f32 %v2912, %v2622
        %v2992 = vmul.f32 %v2914, %v2622
        %v2993 = vmul.f32 %v2916, %v2622
        %v2994 = vmul.f32 %v2918, %v2622
        %v2995 = vmul.f32 %v2920, %v2622
        %v2996 = vmul.f32 %v2922, %v2622
        %v2997 = vmul.f32 %v2924, %v2622
        %v2998 = vmul.f32 %v2926, %v2622
        %v2999 = vmul.f32 %v2928, %v2622
        %v3000 = vmul.f32 %v2930, %v2622
        %v3001 = vmul.f32 %v2932, %v2622
        %v3002 = vmul.f32 %v2934, %v2622
        %v3003 = vmul.f32 %v2936, %v2622
        %v3004 = vmul.f32 %v2938, %v2622
        %v3005 = vmul.f32 %v2940, %v2622
        %v3006 = vmul.f32 %v2942, %v2622
        %v3007 = vadd.f32 %v2943, 1e-05
        %v3008 = vadd.f32 %v2944, 1e-05
        %v3009 = vadd.f32 %v2945, 1e-05
        %v3010 = vadd.f32 %v2946, 1e-05
        %v3011 = vadd.f32 %v2947, 1e-05
        %v3012 = vadd.f32 %v2948, 1e-05
        %v3013 = vadd.f32 %v2949, 1e-05
        %v3014 = vadd.f32 %v2950, 1e-05
        %v3015 = vadd.f32 %v2951, 1e-05
        %v3016 = vadd.f32 %v2952, 1e-05
        %v3017 = vadd.f32 %v2953, 1e-05
        %v3018 = vadd.f32 %v2954, 1e-05
        %v3019 = vadd.f32 %v2955, 1e-05
        %v3020 = vadd.f32 %v2956, 1e-05
        %v3021 = vadd.f32 %v2957, 1e-05
        %v3022 = vadd.f32 %v2958, 1e-05
        %v3023 = vadd.f32 %v2959, 1e-05
        %v3024 = vadd.f32 %v2960, 1e-05
        %v3025 = vadd.f32 %v2961, 1e-05
        %v3026 = vadd.f32 %v2962, 1e-05
        %v3027 = vadd.f32 %v2963, 1e-05
        %v3028 = vadd.f32 %v2964, 1e-05
        %v3029 = vadd.f32 %v2965, 1e-05
        %v3030 = vadd.f32 %v2966, 1e-05
        %v3031 = vadd.f32 %v2967, 1e-05
        %v3032 = vadd.f32 %v2968, 1e-05
        %v3033 = vadd.f32 %v2969, 1e-05
        %v3034 = vadd.f32 %v2970, 1e-05
        %v3035 = vadd.f32 %v2971, 1e-05
        %v3036 = vadd.f32 %v2972, 1e-05
        %v3037 = vadd.f32 %v2973, 1e-05
        %v3038 = vadd.f32 %v2974, 1e-05
        %v3039 = vadd.f32 %v2975, 1e-05
        %v3040 = vadd.f32 %v2976, 1e-05
        %v3041 = vadd.f32 %v2977, 1e-05
        %v3042 = vadd.f32 %v2978, 1e-05
        %v3043 = vadd.f32 %v2979, 1e-05
        %v3044 = vadd.f32 %v2980, 1e-05
        %v3045 = vadd.f32 %v2981, 1e-05
        %v3046 = vadd.f32 %v2982, 1e-05
        %v3047 = vadd.f32 %v2983, 1e-05
        %v3048 = vadd.f32 %v2984, 1e-05
        %v3049 = vadd.f32 %v2985, 1e-05
        %v3050 = vadd.f32 %v2986, 1e-05
        %v3051 = vadd.f32 %v2987, 1e-05
        %v3052 = vadd.f32 %v2988, 1e-05
        %v3053 = vadd.f32 %v2989, 1e-05
        %v3054 = vadd.f32 %v2990, 1e-05
        %v3055 = vadd.f32 %v2991, 1e-05
        %v3056 = vadd.f32 %v2992, 1e-05
        %v3057 = vadd.f32 %v2993, 1e-05
        %v3058 = vadd.f32 %v2994, 1e-05
        %v3059 = vadd.f32 %v2995, 1e-05
        %v3060 = vadd.f32 %v2996, 1e-05
        %v3061 = vadd.f32 %v2997, 1e-05
        %v3062 = vadd.f32 %v2998, 1e-05
        %v3063 = vadd.f32 %v2999, 1e-05
        %v3064 = vadd.f32 %v3000, 1e-05
        %v3065 = vadd.f32 %v3001, 1e-05
        %v3066 = vadd.f32 %v3002, 1e-05
        %v3067 = vadd.f32 %v3003, 1e-05
        %v3068 = vadd.f32 %v3004, 1e-05
        %v3069 = vadd.f32 %v3005, 1e-05
        %v3070 = vadd.f32 %v3006, 1e-05
        %v3071 = vrsqrt.pop %v3007
        %v3072 = vrsqrt.pop %v3008
        %v3073 = vrsqrt.pop %v3009
        %v3074 = vrsqrt.pop %v3010
        %v3075 = vrsqrt.pop %v3011
        %v3076 = vrsqrt.pop %v3012
        %v3077 = vrsqrt.pop %v3013
        %v3078 = vrsqrt.pop %v3014
        %v3079 = vrsqrt.pop %v3015
        %v3080 = vrsqrt.pop %v3016
        %v3081 = vrsqrt.pop %v3017
        %v3082 = vrsqrt.pop %v3018
        %v3083 = vrsqrt.pop %v3019
        %v3084 = vrsqrt.pop %v3020
        %v3085 = vrsqrt.pop %v3021
        %v3086 = vrsqrt.pop %v3022
        %v3087 = vrsqrt.pop %v3023
        %v3088 = vrsqrt.pop %v3024
        %v3089 = vrsqrt.pop %v3025
        %v3090 = vrsqrt.pop %v3026
        %v3091 = vrsqrt.pop %v3027
        %v3092 = vrsqrt.pop %v3028
        %v3093 = vrsqrt.pop %v3029
        %v3094 = vrsqrt.pop %v3030
        %v3095 = vrsqrt.pop %v3031
        %v3096 = vrsqrt.pop %v3032
        %v3097 = vrsqrt.pop %v3033
        %v3098 = vrsqrt.pop %v3034
        %v3099 = vrsqrt.pop %v3035
        %v3100 = vrsqrt.pop %v3036
        %v3101 = vrsqrt.pop %v3037
        %v3102 = vrsqrt.pop %v3038
        %v3103 = vrsqrt.pop %v3039
        %v3104 = vrsqrt.pop %v3040
        %v3105 = vrsqrt.pop %v3041
        %v3106 = vrsqrt.pop %v3042
        %v3107 = vrsqrt.pop %v3043
        %v3108 = vrsqrt.pop %v3044
        %v3109 = vrsqrt.pop %v3045
        %v3110 = vrsqrt.pop %v3046
        %v3111 = vrsqrt.pop %v3047
        %v3112 = vrsqrt.pop %v3048
        %v3113 = vrsqrt.pop %v3049
        %v3114 = vrsqrt.pop %v3050
        %v3115 = vrsqrt.pop %v3051
        %v3116 = vrsqrt.pop %v3052
        %v3117 = vrsqrt.pop %v3053
        %v3118 = vrsqrt.pop %v3054
        %v3119 = vrsqrt.pop %v3055
        %v3120 = vrsqrt.pop %v3056
        %v3121 = vrsqrt.pop %v3057
        %v3122 = vrsqrt.pop %v3058
        %v3123 = vrsqrt.pop %v3059
        %v3124 = vrsqrt.pop %v3060
        %v3125 = vrsqrt.pop %v3061
        %v3126 = vrsqrt.pop %v3062
        %v3127 = vrsqrt.pop %v3063
        %v3128 = vrsqrt.pop %v3064
        %v3129 = vrsqrt.pop %v3065
        %v3130 = vrsqrt.pop %v3066
        %v3131 = vrsqrt.pop %v3067
        %v3132 = vrsqrt.pop %v3068
        %v3133 = vrsqrt.pop %v3069
        %v3134 = vrsqrt.pop %v3070
        %v3135 = vmul.f32 %v2687, %v3071
        %v3136 = vmul.f32 %v2688, %v3072
        %v3137 = vmul.f32 %v2689, %v3073
        %v3138 = vmul.f32 %v2690, %v3074
        %v3139 = vmul.f32 %v2691, %v3075
        %v3140 = vmul.f32 %v2692, %v3076
        %v3141 = vmul.f32 %v2693, %v3077
        %v3142 = vmul.f32 %v2694, %v3078
        %v3143 = vmul.f32 %v2695, %v3079
        %v3144 = vmul.f32 %v2696, %v3080
        %v3145 = vmul.f32 %v2697, %v3081
        %v3146 = vmul.f32 %v2698, %v3082
        %v3147 = vmul.f32 %v2699, %v3083
        %v3148 = vmul.f32 %v2700, %v3084
        %v3149 = vmul.f32 %v2701, %v3085
        %v3150 = vmul.f32 %v2702, %v3086
        %v3151 = vmul.f32 %v2703, %v3087
        %v3152 = vmul.f32 %v2704, %v3088
        %v3153 = vmul.f32 %v2705, %v3089
        %v3154 = vmul.f32 %v2706, %v3090
        %v3155 = vmul.f32 %v2707, %v3091
        %v3156 = vmul.f32 %v2708, %v3092
        %v3157 = vmul.f32 %v2709, %v3093
        %v3158 = vmul.f32 %v2710, %v3094
        %v3159 = vmul.f32 %v2711, %v3095
        %v3160 = vmul.f32 %v2712, %v3096
        %v3161 = vmul.f32 %v2713, %v3097
        %v3162 = vmul.f32 %v2714, %v3098
        %v3163 = vmul.f32 %v2715, %v3099
        %v3164 = vmul.f32 %v2716, %v3100
        %v3165 = vmul.f32 %v2717, %v3101
        %v3166 = vmul.f32 %v2718, %v3102
        %v3167 = vmul.f32 %v2719, %v3103
        %v3168 = vmul.f32 %v2720, %v3104
        %v3169 = vmul.f32 %v2721, %v3105
        %v3170 = vmul.f32 %v2722, %v3106
        %v3171 = vmul.f32 %v2723, %v3107
        %v3172 = vmul.f32 %v2724, %v3108
        %v3173 = vmul.f32 %v2725, %v3109
        %v3174 = vmul.f32 %v2726, %v3110
        %v3175 = vmul.f32 %v2727, %v3111
        %v3176 = vmul.f32 %v2728, %v3112
        %v3177 = vmul.f32 %v2729, %v3113
        %v3178 = vmul.f32 %v2730, %v3114
        %v3179 = vmul.f32 %v2731, %v3115
        %v3180 = vmul.f32 %v2732, %v3116
        %v3181 = vmul.f32 %v2733, %v3117
        %v3182 = vmul.f32 %v2734, %v3118
        %v3183 = vmul.f32 %v2735, %v3119
        %v3184 = vmul.f32 %v2736, %v3120
        %v3185 = vmul.f32 %v2737, %v3121
        %v3186 = vmul.f32 %v2738, %v3122
        %v3187 = vmul.f32 %v2739, %v3123
        %v3188 = vmul.f32 %v2740, %v3124
        %v3189 = vmul.f32 %v2741, %v3125
        %v3190 = vmul.f32 %v2742, %v3126
        %v3191 = vmul.f32 %v2743, %v3127
        %v3192 = vmul.f32 %v2744, %v3128
        %v3193 = vmul.f32 %v2745, %v3129
        %v3194 = vmul.f32 %v2746, %v3130
        %v3195 = vmul.f32 %v2747, %v3131
        %v3196 = vmul.f32 %v2748, %v3132
        %v3197 = vmul.f32 %v2749, %v3133
        %v3198 = vmul.f32 %v2750, %v3134
        %v3200 = vlaneseq
        %v3201 = vshrl.u32 %v3200, 7
        %v3202 = vsub.s32 0, %v3201
        %v3203 = vrot.slane %v2492, %v3202
        %v3205 = vmul.f32 %v3135, %v3203
        %v3206 = vmul.f32 %v3136, %v3203
        %v3207 = vmul.f32 %v3137, %v3203
        %v3208 = vmul.f32 %v3138, %v3203
        %v3209 = vmul.f32 %v3139, %v3203
        %v3210 = vmul.f32 %v3140, %v3203
        %v3211 = vmul.f32 %v3141, %v3203
        %v3212 = vmul.f32 %v3142, %v3203
        %v3213 = vmul.f32 %v3143, %v3203
        %v3214 = vmul.f32 %v3144, %v3203
        %v3215 = vmul.f32 %v3145, %v3203
        %v3216 = vmul.f32 %v3146, %v3203
        %v3217 = vmul.f32 %v3147, %v3203
        %v3218 = vmul.f32 %v3148, %v3203
        %v3219 = vmul.f32 %v3149, %v3203
        %v3220 = vmul.f32 %v3150, %v3203
        %v3221 = vmul.f32 %v3151, %v3203
        %v3222 = vmul.f32 %v3152, %v3203
        %v3223 = vmul.f32 %v3153, %v3203
        %v3224 = vmul.f32 %v3154, %v3203
        %v3225 = vmul.f32 %v3155, %v3203
        %v3226 = vmul.f32 %v3156, %v3203
        %v3227 = vmul.f32 %v3157, %v3203
        %v3228 = vmul.f32 %v3158, %v3203
        %v3229 = vmul.f32 %v3159, %v3203
        %v3230 = vmul.f32 %v3160, %v3203
        %v3231 = vmul.f32 %v3161, %v3203
        %v3232 = vmul.f32 %v3162, %v3203
        %v3233 = vmul.f32 %v3163, %v3203
        %v3234 = vmul.f32 %v3164, %v3203
        %v3235 = vmul.f32 %v3165, %v3203
        %v3236 = vmul.f32 %v3166, %v3203
        %v3237 = vmul.f32 %v3167, %v3203
        %v3238 = vmul.f32 %v3168, %v3203
        %v3239 = vmul.f32 %v3169, %v3203
        %v3240 = vmul.f32 %v3170, %v3203
        %v3241 = vmul.f32 %v3171, %v3203
        %v3242 = vmul.f32 %v3172, %v3203
        %v3243 = vmul.f32 %v3173, %v3203
        %v3244 = vmul.f32 %v3174, %v3203
        %v3245 = vmul.f32 %v3175, %v3203
        %v3246 = vmul.f32 %v3176, %v3203
        %v3247 = vmul.f32 %v3177, %v3203
        %v3248 = vmul.f32 %v3178, %v3203
        %v3249 = vmul.f32 %v3179, %v3203
        %v3250 = vmul.f32 %v3180, %v3203
        %v3251 = vmul.f32 %v3181, %v3203
        %v3252 = vmul.f32 %v3182, %v3203
        %v3253 = vmul.f32 %v3183, %v3203
        %v3254 = vmul.f32 %v3184, %v3203
        %v3255 = vmul.f32 %v3185, %v3203
        %v3256 = vmul.f32 %v3186, %v3203
        %v3257 = vmul.f32 %v3187, %v3203
        %v3258 = vmul.f32 %v3188, %v3203
        %v3259 = vmul.f32 %v3189, %v3203
        %v3260 = vmul.f32 %v3190, %v3203
        %v3261 = vmul.f32 %v3191, %v3203
        %v3262 = vmul.f32 %v3192, %v3203
        %v3263 = vmul.f32 %v3193, %v3203
        %v3264 = vmul.f32 %v3194, %v3203
        %v3265 = vmul.f32 %v3195, %v3203
        %v3266 = vmul.f32 %v3196, %v3203
        %v3267 = vmul.f32 %v3197, %v3203
        %v3268 = vmul.f32 %v3198, %v3203
        %v3270 = vlaneseq
        %v3271 = vshrl.u32 %v3270, 7
        %v3272 = vsub.s32 0, %v3271
        %v3273 = vrot.slane %v2493, %v3272
        %v3275 = vadd.f32 %v3205, %v3273
        %v3276 = vadd.f32 %v3206, %v3273
        %v3277 = vadd.f32 %v3207, %v3273
        %v3278 = vadd.f32 %v3208, %v3273
        %v3279 = vadd.f32 %v3209, %v3273
        %v3280 = vadd.f32 %v3210, %v3273
        %v3281 = vadd.f32 %v3211, %v3273
        %v3282 = vadd.f32 %v3212, %v3273
        %v3283 = vadd.f32 %v3213, %v3273
        %v3284 = vadd.f32 %v3214, %v3273
        %v3285 = vadd.f32 %v3215, %v3273
        %v3286 = vadd.f32 %v3216, %v3273
        %v3287 = vadd.f32 %v3217, %v3273
        %v3288 = vadd.f32 %v3218, %v3273
        %v3289 = vadd.f32 %v3219, %v3273
        %v3290 = vadd.f32 %v3220, %v3273
        %v3291 = vadd.f32 %v3221, %v3273
        %v3292 = vadd.f32 %v3222, %v3273
        %v3293 = vadd.f32 %v3223, %v3273
        %v3294 = vadd.f32 %v3224, %v3273
        %v3295 = vadd.f32 %v3225, %v3273
        %v3296 = vadd.f32 %v3226, %v3273
        %v3297 = vadd.f32 %v3227, %v3273
        %v3298 = vadd.f32 %v3228, %v3273
        %v3299 = vadd.f32 %v3229, %v3273
        %v3300 = vadd.f32 %v3230, %v3273
        %v3301 = vadd.f32 %v3231, %v3273
        %v3302 = vadd.f32 %v3232, %v3273
        %v3303 = vadd.f32 %v3233, %v3273
        %v3304 = vadd.f32 %v3234, %v3273
        %v3305 = vadd.f32 %v3235, %v3273
        %v3306 = vadd.f32 %v3236, %v3273
        %v3307 = vadd.f32 %v3237, %v3273
        %v3308 = vadd.f32 %v3238, %v3273
        %v3309 = vadd.f32 %v3239, %v3273
        %v3310 = vadd.f32 %v3240, %v3273
        %v3311 = vadd.f32 %v3241, %v3273
        %v3312 = vadd.f32 %v3242, %v3273
        %v3313 = vadd.f32 %v3243, %v3273
        %v3314 = vadd.f32 %v3244, %v3273
        %v3315 = vadd.f32 %v3245, %v3273
        %v3316 = vadd.f32 %v3246, %v3273
        %v3317 = vadd.f32 %v3247, %v3273
        %v3318 = vadd.f32 %v3248, %v3273
        %v3319 = vadd.f32 %v3249, %v3273
        %v3320 = vadd.f32 %v3250, %v3273
        %v3321 = vadd.f32 %v3251, %v3273
        %v3322 = vadd.f32 %v3252, %v3273
        %v3323 = vadd.f32 %v3253, %v3273
        %v3324 = vadd.f32 %v3254, %v3273
        %v3325 = vadd.f32 %v3255, %v3273
        %v3326 = vadd.f32 %v3256, %v3273
        %v3327 = vadd.f32 %v3257, %v3273
        %v3328 = vadd.f32 %v3258, %v3273
        %v3329 = vadd.f32 %v3259, %v3273
        %v3330 = vadd.f32 %v3260, %v3273
        %v3331 = vadd.f32 %v3261, %v3273
        %v3332 = vadd.f32 %v3262, %v3273
        %v3333 = vadd.f32 %v3263, %v3273
        %v3334 = vadd.f32 %v3264, %v3273
        %v3335 = vadd.f32 %v3265, %v3273
        %v3336 = vadd.f32 %v3266, %v3273
        %v3337 = vadd.f32 %v3267, %v3273
        %v3338 = vadd.f32 %v3268, %v3273
        %v3339 = vpack.c.bf16 %v3276, %v3275
        %v3340 = vpack.c.bf16 %v3278, %v3277
        %v3341 = vpack.c.bf16 %v3280, %v3279
        %v3342 = vpack.c.bf16 %v3282, %v3281
        %v3343 = vpack.c.bf16 %v3284, %v3283
        %v3344 = vpack.c.bf16 %v3286, %v3285
        %v3345 = vpack.c.bf16 %v3288, %v3287
        %v3346 = vpack.c.bf16 %v3290, %v3289
        %v3347 = vpack.c.bf16 %v3292, %v3291
        %v3348 = vpack.c.bf16 %v3294, %v3293
        %v3349 = vpack.c.bf16 %v3296, %v3295
        %v3350 = vpack.c.bf16 %v3298, %v3297
        %v3351 = vpack.c.bf16 %v3300, %v3299
        %v3352 = vpack.c.bf16 %v3302, %v3301
        %v3353 = vpack.c.bf16 %v3304, %v3303
        %v3354 = vpack.c.bf16 %v3306, %v3305
        %v3355 = vpack.c.bf16 %v3308, %v3307
        %v3356 = vpack.c.bf16 %v3310, %v3309
        %v3357 = vpack.c.bf16 %v3312, %v3311
        %v3358 = vpack.c.bf16 %v3314, %v3313
        %v3359 = vpack.c.bf16 %v3316, %v3315
        %v3360 = vpack.c.bf16 %v3318, %v3317
        %v3361 = vpack.c.bf16 %v3320, %v3319
        %v3362 = vpack.c.bf16 %v3322, %v3321
        %v3363 = vpack.c.bf16 %v3324, %v3323
        %v3364 = vpack.c.bf16 %v3326, %v3325
        %v3365 = vpack.c.bf16 %v3328, %v3327
        %v3366 = vpack.c.bf16 %v3330, %v3329
        %v3367 = vpack.c.bf16 %v3332, %v3331
        %v3368 = vpack.c.bf16 %v3334, %v3333
        %v3369 = vpack.c.bf16 %v3336, %v3335
        %v3370 = vpack.c.bf16 %v3338, %v3337
        %v3371 = vld [vmem:[%s9] sm:$0xff]
        %v3372 = vld [vmem:[%s9 + $0x8] sm:$0xff]
        %v3373 = vld [vmem:[%s9 + $0x10] sm:$0xff]
        %v3374 = vld [vmem:[%s9 + $0x18] sm:$0xff]
        %v3375 = vld [vmem:[%s9 + $0x20] sm:$0xff]
        %v3376 = vld [vmem:[%s9 + $0x28] sm:$0xff]
        %v3377 = vld [vmem:[%s9 + $0x30] sm:$0xff]
        %v3378 = vld [vmem:[%s9 + $0x38] sm:$0xff]
        %v3379 = vld [vmem:[%s9 + $0x40] sm:$0xff]
        %v3380 = vld [vmem:[%s9 + $0x48] sm:$0xff]
        %v3381 = vld [vmem:[%s9 + $0x50] sm:$0xff]
        %v3382 = vld [vmem:[%s9 + $0x58] sm:$0xff]
        %v3383 = vld [vmem:[%s9 + $0x60] sm:$0xff]
        %v3384 = vld [vmem:[%s9 + $0x68] sm:$0xff]
        %v3385 = vld [vmem:[%s9 + $0x70] sm:$0xff]
        %v3386 = vld [vmem:[%s9 + $0x78] sm:$0xff]
        %v3387 = vld [vmem:[%s10] sm:$0x3]
        %v3389 = vlaneseq
        %v3390 = vshrl.u32 %v3389, 7
        %v3391 = vsub.s32 0, %v3390
        %v3392 = vrot.slane %v3387, %v3391
        %v3393 = vlaneseq
        %v3394 = vshrl.u32 %v3393, 7
        %v3395 = vsub.s32 1, %v3394
        %v3396 = vrot.slane %v3387, %v3395
        %v3415 = vunpack.c.l.b16 %v3371
        %v3416 = vunpack.c.h.b16 %v3371
        %v3417 = vunpack.c.l.b16 %v3372
        %v3418 = vunpack.c.h.b16 %v3372
        %v3419 = vunpack.c.l.b16 %v3373
        %v3420 = vunpack.c.h.b16 %v3373
        %v3421 = vunpack.c.l.b16 %v3374
        %v3422 = vunpack.c.h.b16 %v3374
        %v3423 = vunpack.c.l.b16 %v3375
        %v3424 = vunpack.c.h.b16 %v3375
        %v3425 = vunpack.c.l.b16 %v3376
        %v3426 = vunpack.c.h.b16 %v3376
        %v3427 = vunpack.c.l.b16 %v3377
        %v3428 = vunpack.c.h.b16 %v3377
        %v3429 = vunpack.c.l.b16 %v3378
        %v3430 = vunpack.c.h.b16 %v3378
        %v3431 = vunpack.c.l.b16 %v3379
        %v3432 = vunpack.c.h.b16 %v3379
        %v3433 = vunpack.c.l.b16 %v3380
        %v3434 = vunpack.c.h.b16 %v3380
        %v3435 = vunpack.c.l.b16 %v3381
        %v3436 = vunpack.c.h.b16 %v3381
        %v3437 = vunpack.c.l.b16 %v3382
        %v3438 = vunpack.c.h.b16 %v3382
        %v3439 = vunpack.c.l.b16 %v3383
        %v3440 = vunpack.c.h.b16 %v3383
        %v3441 = vunpack.c.l.b16 %v3384
        %v3442 = vunpack.c.h.b16 %v3384
        %v3443 = vunpack.c.l.b16 %v3385
        %v3444 = vunpack.c.h.b16 %v3385
        %v3445 = vunpack.c.l.b16 %v3386
        %v3446 = vunpack.c.h.b16 %v3386
        %v3447 = vpack.c.b16 %v3417, %v3415
        %v3448 = vpack.c.b16 %v3418, %v3416
        %v3449 = vpack.c.b16 %v3421, %v3419
        %v3450 = vpack.c.b16 %v3422, %v3420
        %v3451 = vpack.c.b16 %v3425, %v3423
        %v3452 = vpack.c.b16 %v3426, %v3424
        %v3453 = vpack.c.b16 %v3429, %v3427
        %v3454 = vpack.c.b16 %v3430, %v3428
        %v3455 = vpack.c.b16 %v3433, %v3431
        %v3456 = vpack.c.b16 %v3434, %v3432
        %v3457 = vpack.c.b16 %v3437, %v3435
        %v3458 = vpack.c.b16 %v3438, %v3436
        %v3459 = vpack.c.b16 %v3441, %v3439
        %v3460 = vpack.c.b16 %v3442, %v3440
        %v3461 = vpack.c.b16 %v3445, %v3443
        %v3462 = vpack.c.b16 %v3446, %v3444
        %3479 = vmatprep.subr.bf16.mxu0 %v3462
        %3480 = vmatpush1.bf16.msra.mxu0 %v3461
        %3481 = vmatprep.subr.bf16.mxu0 %v3460
        %3482 = vmatpush1.bf16.msra.mxu0 %v3459
        %3483 = vmatprep.subr.bf16.mxu0 %v3458
        %3484 = vmatpush1.bf16.msra.mxu0 %v3457
        %3485 = vmatprep.subr.bf16.mxu0 %v3456
        %3486 = vmatpush1.bf16.msra.mxu0 %v3455
        %3487 = vmatprep.subr.bf16.mxu0 %v3454
        %3488 = vmatpush1.bf16.msra.mxu0 %v3453
        %3489 = vmatprep.subr.bf16.mxu0 %v3452
        %3490 = vmatpush1.bf16.msra.mxu0 %v3451
        %3491 = vmatprep.subr.bf16.mxu0 %v3450
        %3492 = vmatpush1.bf16.msra.mxu0 %v3449
        %3493 = vmatprep.subr.bf16.mxu0 %v3448
        %3494 = vmatpush1.bf16.msra.mxu0 %v3447
        %3495 = vmatprep.subr.bf16.mxu0 0
        %3496 = vmatpush2.bf16.msra.mxu0 0
        %3497 = vmatprep.subr.bf16.mxu0 0
        %3498 = vmatpush2.bf16.msra.mxu0 0
        %3499 = vmatprep.subr.bf16.mxu0 0
        %3500 = vmatpush2.bf16.msra.mxu0 0
        %3501 = vmatprep.subr.bf16.mxu0 0
        %3502 = vmatpush2.bf16.msra.mxu0 0
        %3503 = vmatprep.subr.bf16.mxu0 0
        %3504 = vmatpush2.bf16.msra.mxu0 0
        %3505 = vmatprep.subr.bf16.mxu0 0
        %3506 = vmatpush2.bf16.msra.mxu0 0
        %3507 = vmatprep.subr.bf16.mxu0 0
        %3508 = vmatpush2.bf16.msra.mxu0 0
        %3509 = vmatprep.subr.bf16.mxu0 0
        %3510 = vmatpush2.bf16.msra.mxu0 0
        %3511 = vmatprep.mubr.bf16.mxu0 0
        %3512 = vmatmul.mubr.bf16.gmra.mxu0 %v3339
        %v3513 = vpop.f32.mrf.mxu0
        %v3514 = vadd.f32 %v3392, %v3513
        %v3515 = vpop.f32.mrf.mxu0
        %v3516 = vadd.f32 %v3396, %v3515
        %v3517 = vpop.f32.mrf.mxu0
        %v3518 = vadd.f32 %v3392, %v3517
        %v3519 = vpop.f32.mrf.mxu0
        %v3520 = vadd.f32 %v3396, %v3519
        %3521 = vmatprep.mubr.bf16.mxu0 0
        %3522 = vmatmul.mubr.bf16.gmra.mxu0 %v3340
        %v3523 = vpop.f32.mrf.mxu0
        %v3524 = vadd.f32 %v3392, %v3523
        %v3525 = vpop.f32.mrf.mxu0
        %v3526 = vadd.f32 %v3396, %v3525
        %v3527 = vpop.f32.mrf.mxu0
        %v3528 = vadd.f32 %v3392, %v3527
        %v3529 = vpop.f32.mrf.mxu0
        %v3530 = vadd.f32 %v3396, %v3529
        %3531 = vmatprep.mubr.bf16.mxu0 0
        %3532 = vmatmul.mubr.bf16.gmra.mxu0 %v3341
        %v3533 = vpop.f32.mrf.mxu0
        %v3534 = vadd.f32 %v3392, %v3533
        %v3535 = vpop.f32.mrf.mxu0
        %v3536 = vadd.f32 %v3396, %v3535
        %v3537 = vpop.f32.mrf.mxu0
        %v3538 = vadd.f32 %v3392, %v3537
        %v3539 = vpop.f32.mrf.mxu0
        %v3540 = vadd.f32 %v3396, %v3539
        %3541 = vmatprep.mubr.bf16.mxu0 0
        %3542 = vmatmul.mubr.bf16.gmra.mxu0 %v3342
        %v3543 = vpop.f32.mrf.mxu0
        %v3544 = vadd.f32 %v3392, %v3543
        %v3545 = vpop.f32.mrf.mxu0
        %v3546 = vadd.f32 %v3396, %v3545
        %v3547 = vpop.f32.mrf.mxu0
        %v3548 = vadd.f32 %v3392, %v3547
        %v3549 = vpop.f32.mrf.mxu0
        %v3550 = vadd.f32 %v3396, %v3549
        %3551 = vmatprep.mubr.bf16.mxu0 0
        %3552 = vmatmul.mubr.bf16.gmra.mxu0 %v3343
        %v3553 = vpop.f32.mrf.mxu0
        %v3554 = vadd.f32 %v3392, %v3553
        %v3555 = vpop.f32.mrf.mxu0
        %v3556 = vadd.f32 %v3396, %v3555
        %v3557 = vpop.f32.mrf.mxu0
        %v3558 = vadd.f32 %v3392, %v3557
        %v3559 = vpop.f32.mrf.mxu0
        %v3560 = vadd.f32 %v3396, %v3559
        %3561 = vmatprep.mubr.bf16.mxu0 0
        %3562 = vmatmul.mubr.bf16.gmra.mxu0 %v3344
        %v3563 = vpop.f32.mrf.mxu0
        %v3564 = vadd.f32 %v3392, %v3563
        %v3565 = vpop.f32.mrf.mxu0
        %v3566 = vadd.f32 %v3396, %v3565
        %v3567 = vpop.f32.mrf.mxu0
        %v3568 = vadd.f32 %v3392, %v3567
        %v3569 = vpop.f32.mrf.mxu0
        %v3570 = vadd.f32 %v3396, %v3569
        %3571 = vmatprep.mubr.bf16.mxu0 0
        %3572 = vmatmul.mubr.bf16.gmra.mxu0 %v3345
        %v3573 = vpop.f32.mrf.mxu0
        %v3574 = vadd.f32 %v3392, %v3573
        %v3575 = vpop.f32.mrf.mxu0
        %v3576 = vadd.f32 %v3396, %v3575
        %v3577 = vpop.f32.mrf.mxu0
        %v3578 = vadd.f32 %v3392, %v3577
        %v3579 = vpop.f32.mrf.mxu0
        %v3580 = vadd.f32 %v3396, %v3579
        %3581 = vmatprep.mubr.bf16.mxu0 0
        %3582 = vmatmul.mubr.bf16.gmra.mxu0 %v3346
        %v3583 = vpop.f32.mrf.mxu0
        %v3584 = vadd.f32 %v3392, %v3583
        %v3585 = vpop.f32.mrf.mxu0
        %v3586 = vadd.f32 %v3396, %v3585
        %v3587 = vpop.f32.mrf.mxu0
        %v3588 = vadd.f32 %v3392, %v3587
        %v3589 = vpop.f32.mrf.mxu0
        %v3590 = vadd.f32 %v3396, %v3589
        %3591 = vmatprep.mubr.bf16.mxu0 0
        %3592 = vmatmul.mubr.bf16.gmra.mxu0 %v3347
        %v3593 = vpop.f32.mrf.mxu0
        %v3594 = vadd.f32 %v3392, %v3593
        %v3595 = vpop.f32.mrf.mxu0
        %v3596 = vadd.f32 %v3396, %v3595
        %v3597 = vpop.f32.mrf.mxu0
        %v3598 = vadd.f32 %v3392, %v3597
        %v3599 = vpop.f32.mrf.mxu0
        %v3600 = vadd.f32 %v3396, %v3599
        %3601 = vmatprep.mubr.bf16.mxu0 0
        %3602 = vmatmul.mubr.bf16.gmra.mxu0 %v3348
        %v3603 = vpop.f32.mrf.mxu0
        %v3604 = vadd.f32 %v3392, %v3603
        %v3605 = vpop.f32.mrf.mxu0
        %v3606 = vadd.f32 %v3396, %v3605
        %v3607 = vpop.f32.mrf.mxu0
        %v3608 = vadd.f32 %v3392, %v3607
        %v3609 = vpop.f32.mrf.mxu0
        %v3610 = vadd.f32 %v3396, %v3609
        %3611 = vmatprep.mubr.bf16.mxu0 0
        %3612 = vmatmul.mubr.bf16.gmra.mxu0 %v3349
        %v3613 = vpop.f32.mrf.mxu0
        %v3614 = vadd.f32 %v3392, %v3613
        %v3615 = vpop.f32.mrf.mxu0
        %v3616 = vadd.f32 %v3396, %v3615
        %v3617 = vpop.f32.mrf.mxu0
        %v3618 = vadd.f32 %v3392, %v3617
        %v3619 = vpop.f32.mrf.mxu0
        %v3620 = vadd.f32 %v3396, %v3619
        %3621 = vmatprep.mubr.bf16.mxu0 0
        %3622 = vmatmul.mubr.bf16.gmra.mxu0 %v3350
        %v3623 = vpop.f32.mrf.mxu0
        %v3624 = vadd.f32 %v3392, %v3623
        %v3625 = vpop.f32.mrf.mxu0
        %v3626 = vadd.f32 %v3396, %v3625
        %v3627 = vpop.f32.mrf.mxu0
        %v3628 = vadd.f32 %v3392, %v3627
        %v3629 = vpop.f32.mrf.mxu0
        %v3630 = vadd.f32 %v3396, %v3629
        %3631 = vmatprep.mubr.bf16.mxu0 0
        %3632 = vmatmul.mubr.bf16.gmra.mxu0 %v3351
        %v3633 = vpop.f32.mrf.mxu0
        %v3634 = vadd.f32 %v3392, %v3633
        %v3635 = vpop.f32.mrf.mxu0
        %v3636 = vadd.f32 %v3396, %v3635
        %v3637 = vpop.f32.mrf.mxu0
        %v3638 = vadd.f32 %v3392, %v3637
        %v3639 = vpop.f32.mrf.mxu0
        %v3640 = vadd.f32 %v3396, %v3639
        %3641 = vmatprep.mubr.bf16.mxu0 0
        %3642 = vmatmul.mubr.bf16.gmra.mxu0 %v3352
        %v3643 = vpop.f32.mrf.mxu0
        %v3644 = vadd.f32 %v3392, %v3643
        %v3645 = vpop.f32.mrf.mxu0
        %v3646 = vadd.f32 %v3396, %v3645
        %v3647 = vpop.f32.mrf.mxu0
        %v3648 = vadd.f32 %v3392, %v3647
        %v3649 = vpop.f32.mrf.mxu0
        %v3650 = vadd.f32 %v3396, %v3649
        %3651 = vmatprep.mubr.bf16.mxu0 0
        %3652 = vmatmul.mubr.bf16.gmra.mxu0 %v3353
        %v3653 = vpop.f32.mrf.mxu0
        %v3654 = vadd.f32 %v3392, %v3653
        %v3655 = vpop.f32.mrf.mxu0
        %v3656 = vadd.f32 %v3396, %v3655
        %v3657 = vpop.f32.mrf.mxu0
        %v3658 = vadd.f32 %v3392, %v3657
        %v3659 = vpop.f32.mrf.mxu0
        %v3660 = vadd.f32 %v3396, %v3659
        %3661 = vmatprep.mubr.bf16.mxu0 0
        %3662 = vmatmul.mubr.bf16.gmra.mxu0 %v3354
        %v3663 = vpop.f32.mrf.mxu0
        %v3664 = vadd.f32 %v3392, %v3663
        %v3665 = vpop.f32.mrf.mxu0
        %v3666 = vadd.f32 %v3396, %v3665
        %v3667 = vpop.f32.mrf.mxu0
        %v3668 = vadd.f32 %v3392, %v3667
        %v3669 = vpop.f32.mrf.mxu0
        %v3670 = vadd.f32 %v3396, %v3669
        %3671 = vmatprep.mubr.bf16.mxu0 0
        %3672 = vmatmul.mubr.bf16.gmra.mxu0 %v3355
        %v3673 = vpop.f32.mrf.mxu0
        %v3674 = vadd.f32 %v3392, %v3673
        %v3675 = vpop.f32.mrf.mxu0
        %v3676 = vadd.f32 %v3396, %v3675
        %v3677 = vpop.f32.mrf.mxu0
        %v3678 = vadd.f32 %v3392, %v3677
        %v3679 = vpop.f32.mrf.mxu0
        %v3680 = vadd.f32 %v3396, %v3679
        %3681 = vmatprep.mubr.bf16.mxu0 0
        %3682 = vmatmul.mubr.bf16.gmra.mxu0 %v3356
        %v3683 = vpop.f32.mrf.mxu0
        %v3684 = vadd.f32 %v3392, %v3683
        %v3685 = vpop.f32.mrf.mxu0
        %v3686 = vadd.f32 %v3396, %v3685
        %v3687 = vpop.f32.mrf.mxu0
        %v3688 = vadd.f32 %v3392, %v3687
        %v3689 = vpop.f32.mrf.mxu0
        %v3690 = vadd.f32 %v3396, %v3689
        %3691 = vmatprep.mubr.bf16.mxu0 0
        %3692 = vmatmul.mubr.bf16.gmra.mxu0 %v3357
        %v3693 = vpop.f32.mrf.mxu0
        %v3694 = vadd.f32 %v3392, %v3693
        %v3695 = vpop.f32.mrf.mxu0
        %v3696 = vadd.f32 %v3396, %v3695
        %v3697 = vpop.f32.mrf.mxu0
        %v3698 = vadd.f32 %v3392, %v3697
        %v3699 = vpop.f32.mrf.mxu0
        %v3700 = vadd.f32 %v3396, %v3699
        %3701 = vmatprep.mubr.bf16.mxu0 0
        %3702 = vmatmul.mubr.bf16.gmra.mxu0 %v3358
        %v3703 = vpop.f32.mrf.mxu0
        %v3704 = vadd.f32 %v3392, %v3703
        %v3705 = vpop.f32.mrf.mxu0
        %v3706 = vadd.f32 %v3396, %v3705
        %v3707 = vpop.f32.mrf.mxu0
        %v3708 = vadd.f32 %v3392, %v3707
        %v3709 = vpop.f32.mrf.mxu0
        %v3710 = vadd.f32 %v3396, %v3709
        %3711 = vmatprep.mubr.bf16.mxu0 0
        %3712 = vmatmul.mubr.bf16.gmra.mxu0 %v3359
        %v3713 = vpop.f32.mrf.mxu0
        %v3714 = vadd.f32 %v3392, %v3713
        %v3715 = vpop.f32.mrf.mxu0
        %v3716 = vadd.f32 %v3396, %v3715
        %v3717 = vpop.f32.mrf.mxu0
        %v3718 = vadd.f32 %v3392, %v3717
        %v3719 = vpop.f32.mrf.mxu0
        %v3720 = vadd.f32 %v3396, %v3719
        %3721 = vmatprep.mubr.bf16.mxu0 0
        %3722 = vmatmul.mubr.bf16.gmra.mxu0 %v3360
        %v3723 = vpop.f32.mrf.mxu0
        %v3724 = vadd.f32 %v3392, %v3723
        %v3725 = vpop.f32.mrf.mxu0
        %v3726 = vadd.f32 %v3396, %v3725
        %v3727 = vpop.f32.mrf.mxu0
        %v3728 = vadd.f32 %v3392, %v3727
        %v3729 = vpop.f32.mrf.mxu0
        %v3730 = vadd.f32 %v3396, %v3729
        %3731 = vmatprep.mubr.bf16.mxu0 0
        %3732 = vmatmul.mubr.bf16.gmra.mxu0 %v3361
        %v3733 = vpop.f32.mrf.mxu0
        %v3734 = vadd.f32 %v3392, %v3733
        %v3735 = vpop.f32.mrf.mxu0
        %v3736 = vadd.f32 %v3396, %v3735
        %v3737 = vpop.f32.mrf.mxu0
        %v3738 = vadd.f32 %v3392, %v3737
        %v3739 = vpop.f32.mrf.mxu0
        %v3740 = vadd.f32 %v3396, %v3739
        %3741 = vmatprep.mubr.bf16.mxu0 0
        %3742 = vmatmul.mubr.bf16.gmra.mxu0 %v3362
        %v3743 = vpop.f32.mrf.mxu0
        %v3744 = vadd.f32 %v3392, %v3743
        %v3745 = vpop.f32.mrf.mxu0
        %v3746 = vadd.f32 %v3396, %v3745
        %v3747 = vpop.f32.mrf.mxu0
        %v3748 = vadd.f32 %v3392, %v3747
        %v3749 = vpop.f32.mrf.mxu0
        %v3750 = vadd.f32 %v3396, %v3749
        %3751 = vmatprep.mubr.bf16.mxu0 0
        %3752 = vmatmul.mubr.bf16.gmra.mxu0 %v3363
        %v3753 = vpop.f32.mrf.mxu0
        %v3754 = vadd.f32 %v3392, %v3753
        %v3755 = vpop.f32.mrf.mxu0
        %v3756 = vadd.f32 %v3396, %v3755
        %v3757 = vpop.f32.mrf.mxu0
        %v3758 = vadd.f32 %v3392, %v3757
        %v3759 = vpop.f32.mrf.mxu0
        %v3760 = vadd.f32 %v3396, %v3759
        %3761 = vmatprep.mubr.bf16.mxu0 0
        %3762 = vmatmul.mubr.bf16.gmra.mxu0 %v3364
        %v3763 = vpop.f32.mrf.mxu0
        %v3764 = vadd.f32 %v3392, %v3763
        %v3765 = vpop.f32.mrf.mxu0
        %v3766 = vadd.f32 %v3396, %v3765
        %v3767 = vpop.f32.mrf.mxu0
        %v3768 = vadd.f32 %v3392, %v3767
        %v3769 = vpop.f32.mrf.mxu0
        %v3770 = vadd.f32 %v3396, %v3769
        %3771 = vmatprep.mubr.bf16.mxu0 0
        %3772 = vmatmul.mubr.bf16.gmra.mxu0 %v3365
        %v3773 = vpop.f32.mrf.mxu0
        %v3774 = vadd.f32 %v3392, %v3773
        %v3775 = vpop.f32.mrf.mxu0
        %v3776 = vadd.f32 %v3396, %v3775
        %v3777 = vpop.f32.mrf.mxu0
        %v3778 = vadd.f32 %v3392, %v3777
        %v3779 = vpop.f32.mrf.mxu0
        %v3780 = vadd.f32 %v3396, %v3779
        %3781 = vmatprep.mubr.bf16.mxu0 0
        %3782 = vmatmul.mubr.bf16.gmra.mxu0 %v3366
        %v3783 = vpop.f32.mrf.mxu0
        %v3784 = vadd.f32 %v3392, %v3783
        %v3785 = vpop.f32.mrf.mxu0
        %v3786 = vadd.f32 %v3396, %v3785
        %v3787 = vpop.f32.mrf.mxu0
        %v3788 = vadd.f32 %v3392, %v3787
        %v3789 = vpop.f32.mrf.mxu0
        %v3790 = vadd.f32 %v3396, %v3789
        %3791 = vmatprep.mubr.bf16.mxu0 0
        %3792 = vmatmul.mubr.bf16.gmra.mxu0 %v3367
        %v3793 = vpop.f32.mrf.mxu0
        %v3794 = vadd.f32 %v3392, %v3793
        %v3795 = vpop.f32.mrf.mxu0
        %v3796 = vadd.f32 %v3396, %v3795
        %v3797 = vpop.f32.mrf.mxu0
        %v3798 = vadd.f32 %v3392, %v3797
        %v3799 = vpop.f32.mrf.mxu0
        %v3800 = vadd.f32 %v3396, %v3799
        %3801 = vmatprep.mubr.bf16.mxu0 0
        %3802 = vmatmul.mubr.bf16.gmra.mxu0 %v3368
        %v3803 = vpop.f32.mrf.mxu0
        %v3804 = vadd.f32 %v3392, %v3803
        %v3805 = vpop.f32.mrf.mxu0
        %v3806 = vadd.f32 %v3396, %v3805
        %v3807 = vpop.f32.mrf.mxu0
        %v3808 = vadd.f32 %v3392, %v3807
        %v3809 = vpop.f32.mrf.mxu0
        %v3810 = vadd.f32 %v3396, %v3809
        %3811 = vmatprep.mubr.bf16.mxu0 0
        %3812 = vmatmul.mubr.bf16.gmra.mxu0 %v3369
        %v3813 = vpop.f32.mrf.mxu0
        %v3814 = vadd.f32 %v3392, %v3813
        %v3815 = vpop.f32.mrf.mxu0
        %v3816 = vadd.f32 %v3396, %v3815
        %v3817 = vpop.f32.mrf.mxu0
        %v3818 = vadd.f32 %v3392, %v3817
        %v3819 = vpop.f32.mrf.mxu0
        %v3820 = vadd.f32 %v3396, %v3819
        %3821 = vmatprep.mubr.bf16.mxu0 0
        %3822 = vmatmul.mubr.bf16.gmra.mxu0 %v3370
        %v3823 = vpop.f32.mrf.mxu0
        %v3824 = vadd.f32 %v3392, %v3823
        %v3825 = vpop.f32.mrf.mxu0
        %v3826 = vadd.f32 %v3396, %v3825
        %v3827 = vpop.f32.mrf.mxu0
        %v3828 = vadd.f32 %v3392, %v3827
        %v3829 = vpop.f32.mrf.mxu0
        %v3830 = vadd.f32 %v3396, %v3829
        %3831 = vdwg.mxu0
        %v3832 = vpack.c.bf16 %v3518, %v3514
        %v3833 = vpack.c.bf16 %v3528, %v3524
        %v3834 = vpack.c.bf16 %v3538, %v3534
        %v3835 = vpack.c.bf16 %v3548, %v3544
        %v3836 = vpack.c.bf16 %v3558, %v3554
        %v3837 = vpack.c.bf16 %v3568, %v3564
        %v3838 = vpack.c.bf16 %v3578, %v3574
        %v3839 = vpack.c.bf16 %v3588, %v3584
        %v3840 = vpack.c.bf16 %v3598, %v3594
        %v3841 = vpack.c.bf16 %v3608, %v3604
        %v3842 = vpack.c.bf16 %v3618, %v3614
        %v3843 = vpack.c.bf16 %v3628, %v3624
        %v3844 = vpack.c.bf16 %v3638, %v3634
        %v3845 = vpack.c.bf16 %v3648, %v3644
        %v3846 = vpack.c.bf16 %v3658, %v3654
        %v3847 = vpack.c.bf16 %v3668, %v3664
        %v3848 = vpack.c.bf16 %v3678, %v3674
        %v3849 = vpack.c.bf16 %v3688, %v3684
        %v3850 = vpack.c.bf16 %v3698, %v3694
        %v3851 = vpack.c.bf16 %v3708, %v3704
        %v3852 = vpack.c.bf16 %v3718, %v3714
        %v3853 = vpack.c.bf16 %v3728, %v3724
        %v3854 = vpack.c.bf16 %v3738, %v3734
        %v3855 = vpack.c.bf16 %v3748, %v3744
        %v3856 = vpack.c.bf16 %v3758, %v3754
        %v3857 = vpack.c.bf16 %v3768, %v3764
        %v3858 = vpack.c.bf16 %v3778, %v3774
        %v3859 = vpack.c.bf16 %v3788, %v3784
        %v3860 = vpack.c.bf16 %v3798, %v3794
        %v3861 = vpack.c.bf16 %v3808, %v3804
        %v3862 = vpack.c.bf16 %v3818, %v3814
        %v3863 = vpack.c.bf16 %v3828, %v3824
        %v3864 = vpack.c.bf16 %v3520, %v3516
        %v3865 = vpack.c.bf16 %v3530, %v3526
        %v3866 = vpack.c.bf16 %v3540, %v3536
        %v3867 = vpack.c.bf16 %v3550, %v3546
        %v3868 = vpack.c.bf16 %v3560, %v3556
        %v3869 = vpack.c.bf16 %v3570, %v3566
        %v3870 = vpack.c.bf16 %v3580, %v3576
        %v3871 = vpack.c.bf16 %v3590, %v3586
        %v3872 = vpack.c.bf16 %v3600, %v3596
        %v3873 = vpack.c.bf16 %v3610, %v3606
        %v3874 = vpack.c.bf16 %v3620, %v3616
        %v3875 = vpack.c.bf16 %v3630, %v3626
        %v3876 = vpack.c.bf16 %v3640, %v3636
        %v3877 = vpack.c.bf16 %v3650, %v3646
        %v3878 = vpack.c.bf16 %v3660, %v3656
        %v3879 = vpack.c.bf16 %v3670, %v3666
        %v3880 = vpack.c.bf16 %v3680, %v3676
        %v3881 = vpack.c.bf16 %v3690, %v3686
        %v3882 = vpack.c.bf16 %v3700, %v3696
        %v3883 = vpack.c.bf16 %v3710, %v3706
        %v3884 = vpack.c.bf16 %v3720, %v3716
        %v3885 = vpack.c.bf16 %v3730, %v3726
        %v3886 = vpack.c.bf16 %v3740, %v3736
        %v3887 = vpack.c.bf16 %v3750, %v3746
        %v3888 = vpack.c.bf16 %v3760, %v3756
        %v3889 = vpack.c.bf16 %v3770, %v3766
        %v3890 = vpack.c.bf16 %v3780, %v3776
        %v3891 = vpack.c.bf16 %v3790, %v3786
        %v3892 = vpack.c.bf16 %v3800, %v3796
        %v3893 = vpack.c.bf16 %v3810, %v3806
        %v3894 = vpack.c.bf16 %v3820, %v3816
        %v3895 = vpack.c.bf16 %v3830, %v3826
        %v3896 = vld [vmem:[#allocation2] sm:$0xff]
        %v3897 = vpack.c.bf16 %v3896, %v3896
        %3898 = vmatprep.subr.bf16.mxu0 0
        %3899 = vmatpush1.bf16.xpose.msra.mxu0 %v3839
        %3900 = vmatprep.subr.bf16.mxu0 0
        %3901 = vmatpush1.bf16.xpose.msra.mxu0 %v3838
        %3902 = vmatprep.subr.bf16.mxu0 0
        %3903 = vmatpush1.bf16.xpose.msra.mxu0 %v3837
        %3904 = vmatprep.subr.bf16.mxu0 0
        %3905 = vmatpush1.bf16.xpose.msra.mxu0 %v3836
        %3906 = vmatprep.subr.bf16.mxu0 0
        %3907 = vmatpush1.bf16.xpose.msra.mxu0 %v3835
        %3908 = vmatprep.subr.bf16.mxu0 0
        %3909 = vmatpush1.bf16.xpose.msra.mxu0 %v3834
        %3910 = vmatprep.subr.bf16.mxu0 0
        %3911 = vmatpush1.bf16.xpose.msra.mxu0 %v3833
        %3912 = vmatprep.subr.bf16.mxu0 0
        %3913 = vmatpush1.bf16.xpose.msra.mxu0 %v3832
        %3914 = vmatprep.subr.bf16.mxu0 0
        %3915 = vmatpush2.bf16.xpose.msra.mxu0 %v3847
        %3916 = vmatprep.subr.bf16.mxu0 0
        %3917 = vmatpush2.bf16.xpose.msra.mxu0 %v3846
        %3918 = vmatprep.subr.bf16.mxu0 0
        %3919 = vmatpush2.bf16.xpose.msra.mxu0 %v3845
        %3920 = vmatprep.subr.bf16.mxu0 0
        %3921 = vmatpush2.bf16.xpose.msra.mxu0 %v3844
        %3922 = vmatprep.subr.bf16.mxu0 0
        %3923 = vmatpush2.bf16.xpose.msra.mxu0 %v3843
        %3924 = vmatprep.subr.bf16.mxu0 0
        %3925 = vmatpush2.bf16.xpose.msra.mxu0 %v3842
        %3926 = vmatprep.subr.bf16.mxu0 0
        %3927 = vmatpush2.bf16.xpose.msra.mxu0 %v3841
        %3928 = vmatprep.subr.bf16.mxu0 0
        %3929 = vmatpush2.bf16.xpose.msra.mxu0 %v3840
        %3930 = vmatprep.mubr.bf16.mxu0 0
        %3931 = vmatmul.mubr.bf16.gmra.mxu0 %v3897
        %v3932 = vpop.f32.mrf.mxu0
        %v3933 = vadd.f32 0.0, %v3932
        %v3934 = vpop.f32.mrf.mxu0
        %v3935 = vadd.f32 0.0, %v3934
        %v3936 = vpop.f32.mrf.mxu0
        %v3937 = vpop.f32.mrf.mxu0
        %3938 = vdwg.mxu0
        %3939 = vmatprep.subr.bf16.mxu0 0
        %3940 = vmatpush1.bf16.xpose.msra.mxu0 %v3855
        %3941 = vmatprep.subr.bf16.mxu0 0
        %3942 = vmatpush1.bf16.xpose.msra.mxu0 %v3854
        %3943 = vmatprep.subr.bf16.mxu0 0
        %3944 = vmatpush1.bf16.xpose.msra.mxu0 %v3853
        %3945 = vmatprep.subr.bf16.mxu0 0
        %3946 = vmatpush1.bf16.xpose.msra.mxu0 %v3852
        %3947 = vmatprep.subr.bf16.mxu0 0
        %3948 = vmatpush1.bf16.xpose.msra.mxu0 %v3851
        %3949 = vmatprep.subr.bf16.mxu0 0
        %3950 = vmatpush1.bf16.xpose.msra.mxu0 %v3850
        %3951 = vmatprep.subr.bf16.mxu0 0
        %3952 = vmatpush1.bf16.xpose.msra.mxu0 %v3849
        %3953 = vmatprep.subr.bf16.mxu0 0
        %3954 = vmatpush1.bf16.xpose.msra.mxu0 %v3848
        %3955 = vmatprep.subr.bf16.mxu0 0
        %3956 = vmatpush2.bf16.xpose.msra.mxu0 %v3863
        %3957 = vmatprep.subr.bf16.mxu0 0
        %3958 = vmatpush2.bf16.xpose.msra.mxu0 %v3862
        %3959 = vmatprep.subr.bf16.mxu0 0
        %3960 = vmatpush2.bf16.xpose.msra.mxu0 %v3861
        %3961 = vmatprep.subr.bf16.mxu0 0
        %3962 = vmatpush2.bf16.xpose.msra.mxu0 %v3860
        %3963 = vmatprep.subr.bf16.mxu0 0
        %3964 = vmatpush2.bf16.xpose.msra.mxu0 %v3859
        %3965 = vmatprep.subr.bf16.mxu0 0
        %3966 = vmatpush2.bf16.xpose.msra.mxu0 %v3858
        %3967 = vmatprep.subr.bf16.mxu0 0
        %3968 = vmatpush2.bf16.xpose.msra.mxu0 %v3857
        %3969 = vmatprep.subr.bf16.mxu0 0
        %3970 = vmatpush2.bf16.xpose.msra.mxu0 %v3856
        %3971 = vmatprep.mubr.bf16.mxu0 0
        %3972 = vmatmul.mubr.bf16.gmra.mxu0 %v3897
        %v3973 = vpop.f32.mrf.mxu0
        %v3974 = vadd.f32 0.0, %v3973
        %v3975 = vpop.f32.mrf.mxu0
        %v3976 = vadd.f32 0.0, %v3975
        %v3977 = vpop.f32.mrf.mxu0
        %v3978 = vpop.f32.mrf.mxu0
        %3979 = vdwg.mxu0
        %v3980 = vmul.f32 %v3933, 0.088388346
        %v3981 = vmul.f32 %v3935, 0.088388346
        %v3982 = vmul.f32 %v3974, 0.088388346
        %v3983 = vmul.f32 %v3976, 0.088388346
        %v3984 = vld [vmem:[%s811] sm:$0xff]
        %v3985 = vld [vmem:[%s811 + $0x8] sm:$0xff]
        %v3986 = vld [vmem:[%s811 + $0x10] sm:$0xff]
        %v3987 = vld [vmem:[%s811 + $0x18] sm:$0xff]
        %v3988 = vadd.f32 %v3980, %v3984
        %v3989 = vadd.f32 %v3981, %v3985
        %v3990 = vadd.f32 %v3982, %v3986
        %v3991 = vadd.f32 %v3983, %v3987
        %v3992 = vld [vmem:[#allocation3] sm:$0xff]
        %v3993 = vmax.f32 %v3988, %v3989
        %v3994 = vmax.f32 %v3990, %v3991
        %v3995 = vmax.f32 %v3993, %v3994
        %3996 = vmax.xlane.f32.xlu0 %v3995
        %v3997 = vpop.xlane.xlu0 %3996
        %v3998 = vmax.f32 %v3992, %v3997
        %v3999 = vsub.f32 %v3992, %v3998
        %v4000 = vmul.f32 %v3999, 1.442695
        %v4001 = vpow.pop %v4000
        %4003 = vset.pattern.permute.xlu0 0
        %4004 = vperm.xlu0 %4003, %v3998
        %v4005 = vpop.permute.xlu0 %4004
        %v4007 = vsub.f32 %v3988, %v4005
        %v4008 = vsub.f32 %v3989, %v4005
        %v4009 = vsub.f32 %v3990, %v4005
        %v4010 = vsub.f32 %v3991, %v4005
        %v4011 = vmul.f32 %v4007, 1.442695
        %v4012 = vpow.pop %v4011
        %v4013 = vmul.f32 %v4008, 1.442695
        %v4014 = vpow.pop %v4013
        %v4015 = vmul.f32 %v4009, 1.442695
        %v4016 = vpow.pop %v4015
        %v4017 = vmul.f32 %v4010, 1.442695
        %v4018 = vpow.pop %v4017
        %v4019 = vld [vmem:[#allocation4] sm:$0xff]
        %v4020 = vmul.f32 %v4001, %v4019
        %v4021 = vadd.f32 %v4012, %v4014
        %v4022 = vadd.f32 %v4021, %v4016
        %v4023 = vadd.f32 %v4022, %v4018
        %4024 = vadd.xlane.f32.xlu0 %v4023
        %v4025 = vpop.xlane.xlu0 %4024
        %v4026 = vadd.f32 %v4020, %v4025
        %vm4027 = vcmask 7168
        %4028 = vst.msk [vmem:[#allocation4] sm:$0xff] %vm4027, %v4026
        %v4029 = vld [vmem:[#allocation5] sm:$0xff]
        %4031 = vset.pattern.permute.xlu0 0
        %4032 = vperm.xlu0 %4031, %v4001
        %v4033 = vpop.permute.xlu0 %4032
        %v4035 = vmul.f32 %v4033, %v4029
        %v4036 = vpack.c.bf16 %v4012, %v4012
        %v4037 = vpack.c.bf16 %v4014, %v4014
        %v4038 = vpack.c.bf16 %v4016, %v4016
        %v4039 = vpack.c.bf16 %v4018, %v4018
        %4040 = vmatprep.subr.bf16.mxu0 0
        %4041 = vmatpush1.bf16.msra.mxu0 %v3871
        %4042 = vmatprep.subr.bf16.mxu0 0
        %4043 = vmatpush1.bf16.msra.mxu0 %v3870
        %4044 = vmatprep.subr.bf16.mxu0 0
        %4045 = vmatpush1.bf16.msra.mxu0 %v3869
        %4046 = vmatprep.subr.bf16.mxu0 0
        %4047 = vmatpush1.bf16.msra.mxu0 %v3868
        %4048 = vmatprep.subr.bf16.mxu0 0
        %4049 = vmatpush1.bf16.msra.mxu0 %v3867
        %4050 = vmatprep.subr.bf16.mxu0 0
        %4051 = vmatpush1.bf16.msra.mxu0 %v3866
        %4052 = vmatprep.subr.bf16.mxu0 0
        %4053 = vmatpush1.bf16.msra.mxu0 %v3865
        %4054 = vmatprep.subr.bf16.mxu0 0
        %4055 = vmatpush1.bf16.msra.mxu0 %v3864
        %4056 = vmatprep.subr.bf16.mxu0 0
        %4057 = vmatpush2.bf16.msra.mxu0 %v3879
        %4058 = vmatprep.subr.bf16.mxu0 0
        %4059 = vmatpush2.bf16.msra.mxu0 %v3878
        %4060 = vmatprep.subr.bf16.mxu0 0
        %4061 = vmatpush2.bf16.msra.mxu0 %v3877
        %4062 = vmatprep.subr.bf16.mxu0 0
        %4063 = vmatpush2.bf16.msra.mxu0 %v3876
        %4064 = vmatprep.subr.bf16.mxu0 0
        %4065 = vmatpush2.bf16.msra.mxu0 %v3875
        %4066 = vmatprep.subr.bf16.mxu0 0
        %4067 = vmatpush2.bf16.msra.mxu0 %v3874
        %4068 = vmatprep.subr.bf16.mxu0 0
        %4069 = vmatpush2.bf16.msra.mxu0 %v3873
        %4070 = vmatprep.subr.bf16.mxu0 0
        %4071 = vmatpush2.bf16.msra.mxu0 %v3872
        %4072 = vmatprep.mubr.bf16.mxu0 %v4037
        %4073 = vmatmul.mubr.bf16.gmra.mxu0 %v4036
        %v4074 = vpop.f32.mrf.mxu0
        %v4075 = vadd.f32 0.0, %v4074
        %v4076 = vpop.f32.mrf.mxu0
        %v4077 = vpop.f32.mrf.mxu0
        %v4078 = vpop.f32.mrf.mxu0
        %4079 = vdwg.mxu0
        %4080 = vmatprep.subr.bf16.mxu0 0
        %4081 = vmatpush1.bf16.msra.mxu0 %v3887
        %4082 = vmatprep.subr.bf16.mxu0 0
        %4083 = vmatpush1.bf16.msra.mxu0 %v3886
        %4084 = vmatprep.subr.bf16.mxu0 0
        %4085 = vmatpush1.bf16.msra.mxu0 %v3885
        %4086 = vmatprep.subr.bf16.mxu0 0
        %4087 = vmatpush1.bf16.msra.mxu0 %v3884
        %4088 = vmatprep.subr.bf16.mxu0 0
        %4089 = vmatpush1.bf16.msra.mxu0 %v3883
        %4090 = vmatprep.subr.bf16.mxu0 0
        %4091 = vmatpush1.bf16.msra.mxu0 %v3882
        %4092 = vmatprep.subr.bf16.mxu0 0
        %4093 = vmatpush1.bf16.msra.mxu0 %v3881
        %4094 = vmatprep.subr.bf16.mxu0 0
        %4095 = vmatpush1.bf16.msra.mxu0 %v3880
        %4096 = vmatprep.subr.bf16.mxu0 0
        %4097 = vmatpush2.bf16.msra.mxu0 %v3895
        %4098 = vmatprep.subr.bf16.mxu0 0
        %4099 = vmatpush2.bf16.msra.mxu0 %v3894
        %4100 = vmatprep.subr.bf16.mxu0 0
        %4101 = vmatpush2.bf16.msra.mxu0 %v3893
        %4102 = vmatprep.subr.bf16.mxu0 0
        %4103 = vmatpush2.bf16.msra.mxu0 %v3892
        %4104 = vmatprep.subr.bf16.mxu0 0
        %4105 = vmatpush2.bf16.msra.mxu0 %v3891
        %4106 = vmatprep.subr.bf16.mxu0 0
        %4107 = vmatpush2.bf16.msra.mxu0 %v3890
        %4108 = vmatprep.subr.bf16.mxu0 0
        %4109 = vmatpush2.bf16.msra.mxu0 %v3889
        %4110 = vmatprep.subr.bf16.mxu0 0
        %4111 = vmatpush2.bf16.msra.mxu0 %v3888
        %4112 = vmatprep.mubr.bf16.mxu0 %v4039
        %4113 = vmatmul.mubr.bf16.gmra.mxu0 %v4038
        %v4114 = vpop.f32.mrf.mxu0
        %v4115 = vadd.f32 %v4075, %v4114
        %v4116 = vpop.f32.mrf.mxu0
        %v4117 = vpop.f32.mrf.mxu0
        %v4118 = vpop.f32.mrf.mxu0
        %4119 = vdwg.mxu0
        %v4120 = vadd.f32 %v4035, %v4115
        %4121 = vst [vmem:[#allocation5] sm:$0xff] %v4120
        %4122 = vst.msk [vmem:[#allocation3] sm:$0xff] %vm4027, %v3998
        %p4123 = scmp.eq.s32.totalorder %s35, 1
        // Predicated region
        $region124: #{mask_embedder_forward.2} parent=114 // pred_check
          %p4124 = pneg %p4123
        $region125: #{mask_embedder_forward.2} parent=114 // pred_check_branch
          %4126 = sbr.rel (%p4124) target = $region127
        $region126: #{mask_embedder_forward.2} parent=114 // pred_region
          %v4127 = vld [vmem:[#allocation5] sm:$0xff]
          %v4128 = vld [vmem:[#allocation4] sm:$0xff]
          %v4129 = vrcp.pop %v4128
          %4131 = vset.pattern.permute.xlu0 0
          %4132 = vperm.xlu0 %4131, %v4129
          %v4133 = vpop.permute.xlu0 %4132
          %v4135 = vmul.f32 %v4127, %v4133
          %v4136 = vpack.c.bf16 %v4135, %v4135
          %v4137 = vld [vmem:[%s13] sm:$0xf]
          %v4138 = vld [vmem:[%s13 + $0x4] sm:$0xf]
          %v4139 = vld [vmem:[%s13 + $0x8] sm:$0xf]
          %v4140 = vld [vmem:[%s13 + $0xc] sm:$0xf]
          %v4141 = vld [vmem:[%s13 + $0x10] sm:$0xf]
          %v4142 = vld [vmem:[%s13 + $0x14] sm:$0xf]
          %v4143 = vld [vmem:[%s13 + $0x18] sm:$0xf]
          %v4144 = vld [vmem:[%s13 + $0x1c] sm:$0xf]
          %v4145 = vld [vmem:[%s13 + $0x20] sm:$0xf]
          %v4146 = vld [vmem:[%s13 + $0x24] sm:$0xf]
          %v4147 = vld [vmem:[%s13 + $0x28] sm:$0xf]
          %v4148 = vld [vmem:[%s13 + $0x2c] sm:$0xf]
          %v4149 = vld [vmem:[%s13 + $0x30] sm:$0xf]
          %v4150 = vld [vmem:[%s13 + $0x34] sm:$0xf]
          %v4151 = vld [vmem:[%s13 + $0x38] sm:$0xf]
          %v4152 = vld [vmem:[%s13 + $0x3c] sm:$0xf]
          %v4153 = vld [vmem:[%s14] sm:$0x1]
          %v4155 = vlaneseq
          %v4156 = vshrl.u32 %v4155, 7
          %v4157 = vsub.s32 0, %v4156
          %v4158 = vrot.slane %v4153, %v4157
          %v4176 = vunpack.c.l.b16 %v4137
          %v4177 = vunpack.c.l.b16 %v4138
          %v4178 = vunpack.c.l.b16 %v4139
          %v4179 = vunpack.c.l.b16 %v4140
          %v4180 = vunpack.c.l.b16 %v4141
          %v4181 = vunpack.c.l.b16 %v4142
          %v4182 = vunpack.c.l.b16 %v4143
          %v4183 = vunpack.c.l.b16 %v4144
          %v4184 = vunpack.c.l.b16 %v4145
          %v4185 = vunpack.c.l.b16 %v4146
          %v4186 = vunpack.c.l.b16 %v4147
          %v4187 = vunpack.c.l.b16 %v4148
          %v4188 = vunpack.c.l.b16 %v4149
          %v4189 = vunpack.c.l.b16 %v4150
          %v4190 = vunpack.c.l.b16 %v4151
          %v4191 = vunpack.c.l.b16 %v4152
          %v4192 = vpack.c.b16 %v4177, %v4176
          %v4193 = vpack.c.b16 %v4179, %v4178
          %v4194 = vpack.c.b16 %v4181, %v4180
          %v4195 = vpack.c.b16 %v4183, %v4182
          %v4196 = vpack.c.b16 %v4185, %v4184
          %v4197 = vpack.c.b16 %v4187, %v4186
          %v4198 = vpack.c.b16 %v4189, %v4188
          %v4199 = vpack.c.b16 %v4191, %v4190
          %4208 = vmatprep.subr.bf16.mxu0 0
          %4209 = vmatpush1.bf16.msra.mxu0 %v4199
          %4210 = vmatprep.subr.bf16.mxu0 0
          %4211 = vmatpush1.bf16.msra.mxu0 %v4198
          %4212 = vmatprep.subr.bf16.mxu0 0
          %4213 = vmatpush1.bf16.msra.mxu0 %v4197
          %4214 = vmatprep.subr.bf16.mxu0 0
          %4215 = vmatpush1.bf16.msra.mxu0 %v4196
          %4216 = vmatprep.subr.bf16.mxu0 0
          %4217 = vmatpush1.bf16.msra.mxu0 %v4195
          %4218 = vmatprep.subr.bf16.mxu0 0
          %4219 = vmatpush1.bf16.msra.mxu0 %v4194
          %4220 = vmatprep.subr.bf16.mxu0 0
          %4221 = vmatpush1.bf16.msra.mxu0 %v4193
          %4222 = vmatprep.subr.bf16.mxu0 0
          %4223 = vmatpush1.bf16.msra.mxu0 %v4192
          %4224 = vmatprep.subr.bf16.mxu0 0
          %4225 = vmatpush2.bf16.msra.mxu0 0
          %4226 = vmatprep.subr.bf16.mxu0 0
          %4227 = vmatpush2.bf16.msra.mxu0 0
          %4228 = vmatprep.subr.bf16.mxu0 0
          %4229 = vmatpush2.bf16.msra.mxu0 0
          %4230 = vmatprep.subr.bf16.mxu0 0
          %4231 = vmatpush2.bf16.msra.mxu0 0
          %4232 = vmatprep.subr.bf16.mxu0 0
          %4233 = vmatpush2.bf16.msra.mxu0 0
          %4234 = vmatprep.subr.bf16.mxu0 0
          %4235 = vmatpush2.bf16.msra.mxu0 0
          %4236 = vmatprep.subr.bf16.mxu0 0
          %4237 = vmatpush2.bf16.msra.mxu0 0
          %4238 = vmatprep.subr.bf16.mxu0 0
          %4239 = vmatpush2.bf16.msra.mxu0 0
          %4240 = vmatprep.mubr.bf16.mxu0 0
          %4241 = vmatmul.mubr.bf16.gmra.mxu0 %v4136
          %v4242 = vpop.f32.mrf.mxu0
          %v4243 = vadd.f32 %v4158, %v4242
          %v4244 = vpop.f32.mrf.mxu0
          %v4245 = vpop.f32.mrf.mxu0
          %v4246 = vpop.f32.mrf.mxu0
          %4247 = vdwg.mxu0
          %v4248 = vld [vmem:[%s802] sm:$0xff]
          %v4249 = vadd.f32 %v4243, %v4248
          %v4250 = vld [vmem:[%s15] sm:$0x1]
          %v4251 = vld [vmem:[%s16] sm:$0x1]
          %4252 = vadd.xlane.f32.xlu0 %v4249
          %v4253 = vpop.xlane.xlu0 %4252
          %v4254 = vmul.f32 %v4253, %v2622
          %v4255 = vsub.f32 %v4249, %v4254
          %v4256 = vmul.f32 %v4255, %v4255
          %4257 = vadd.xlane.f32.xlu0 %v4256
          %v4258 = vpop.xlane.xlu0 %4257
          %v4259 = vmul.f32 %v4258, %v2622
          %v4260 = vadd.f32 %v4259, 1e-05
          %v4261 = vrsqrt.pop %v4260
          %v4262 = vmul.f32 %v4255, %v4261
          %v4264 = vlaneseq
          %v4265 = vshrl.u32 %v4264, 7
          %v4266 = vsub.s32 0, %v4265
          %v4267 = vrot.slane %v4250, %v4266
          %v4269 = vmul.f32 %v4262, %v4267
          %v4271 = vlaneseq
          %v4272 = vshrl.u32 %v4271, 7
          %v4273 = vsub.s32 0, %v4272
          %v4274 = vrot.slane %v4251, %v4273
          %v4276 = vadd.f32 %v4269, %v4274
          %v4277 = vpack.c.bf16 %v4276, %v4276
          %v4278 = vld [vmem:[%s17] sm:$0xf]
          %v4279 = vld [vmem:[%s17 + $0x4] sm:$0xf]
          %v4280 = vld [vmem:[%s17 + $0x8] sm:$0xf]
          %v4281 = vld [vmem:[%s17 + $0xc] sm:$0xf]
          %v4282 = vld [vmem:[%s17 + $0x10] sm:$0xf]
          %v4283 = vld [vmem:[%s17 + $0x14] sm:$0xf]
          %v4284 = vld [vmem:[%s17 + $0x18] sm:$0xf]
          %v4285 = vld [vmem:[%s17 + $0x1c] sm:$0xf]
          %v4286 = vld [vmem:[%s17 + $0x20] sm:$0xf]
          %v4287 = vld [vmem:[%s17 + $0x24] sm:$0xf]
          %v4288 = vld [vmem:[%s17 + $0x28] sm:$0xf]
          %v4289 = vld [vmem:[%s17 + $0x2c] sm:$0xf]
          %v4290 = vld [vmem:[%s17 + $0x30] sm:$0xf]
          %v4291 = vld [vmem:[%s17 + $0x34] sm:$0xf]
          %v4292 = vld [vmem:[%s17 + $0x38] sm:$0xf]
          %v4293 = vld [vmem:[%s17 + $0x3c] sm:$0xf]
          %v4294 = vld [vmem:[%s18] sm:$0x1]
          %v4296 = vlaneseq
          %v4297 = vshrl.u32 %v4296, 7
          %v4298 = vsub.s32 0, %v4297
          %v4299 = vrot.slane %v4294, %v4298
          %v4317 = vunpack.c.l.b16 %v4278
          %v4318 = vunpack.c.l.b16 %v4279
          %v4319 = vunpack.c.l.b16 %v4280
          %v4320 = vunpack.c.l.b16 %v4281
          %v4321 = vunpack.c.l.b16 %v4282
          %v4322 = vunpack.c.l.b16 %v4283
          %v4323 = vunpack.c.l.b16 %v4284
          %v4324 = vunpack.c.l.b16 %v4285
          %v4325 = vunpack.c.l.b16 %v4286
          %v4326 = vunpack.c.l.b16 %v4287
          %v4327 = vunpack.c.l.b16 %v4288
          %v4328 = vunpack.c.l.b16 %v4289
          %v4329 = vunpack.c.l.b16 %v4290
          %v4330 = vunpack.c.l.b16 %v4291
          %v4331 = vunpack.c.l.b16 %v4292
          %v4332 = vunpack.c.l.b16 %v4293
          %v4333 = vpack.c.b16 %v4318, %v4317
          %v4334 = vpack.c.b16 %v4320, %v4319
          %v4335 = vpack.c.b16 %v4322, %v4321
          %v4336 = vpack.c.b16 %v4324, %v4323
          %v4337 = vpack.c.b16 %v4326, %v4325
          %v4338 = vpack.c.b16 %v4328, %v4327
          %v4339 = vpack.c.b16 %v4330, %v4329
          %v4340 = vpack.c.b16 %v4332, %v4331
          %4349 = vmatprep.subr.bf16.mxu0 0
          %4350 = vmatpush1.bf16.msra.mxu0 %v4340
          %4351 = vmatprep.subr.bf16.mxu0 0
          %4352 = vmatpush1.bf16.msra.mxu0 %v4339
          %4353 = vmatprep.subr.bf16.mxu0 0
          %4354 = vmatpush1.bf16.msra.mxu0 %v4338
          %4355 = vmatprep.subr.bf16.mxu0 0
          %4356 = vmatpush1.bf16.msra.mxu0 %v4337
          %4357 = vmatprep.subr.bf16.mxu0 0
          %4358 = vmatpush1.bf16.msra.mxu0 %v4336
          %4359 = vmatprep.subr.bf16.mxu0 0
          %4360 = vmatpush1.bf16.msra.mxu0 %v4335
          %4361 = vmatprep.subr.bf16.mxu0 0
          %4362 = vmatpush1.bf16.msra.mxu0 %v4334
          %4363 = vmatprep.subr.bf16.mxu0 0
          %4364 = vmatpush1.bf16.msra.mxu0 %v4333
          %4365 = vmatprep.subr.bf16.mxu0 0
          %4366 = vmatpush2.bf16.msra.mxu0 0
          %4367 = vmatprep.subr.bf16.mxu0 0
          %4368 = vmatpush2.bf16.msra.mxu0 0
          %4369 = vmatprep.subr.bf16.mxu0 0
          %4370 = vmatpush2.bf16.msra.mxu0 0
          %4371 = vmatprep.subr.bf16.mxu0 0
          %4372 = vmatpush2.bf16.msra.mxu0 0
          %4373 = vmatprep.subr.bf16.mxu0 0
          %4374 = vmatpush2.bf16.msra.mxu0 0
          %4375 = vmatprep.subr.bf16.mxu0 0
          %4376 = vmatpush2.bf16.msra.mxu0 0
          %4377 = vmatprep.subr.bf16.mxu0 0
          %4378 = vmatpush2.bf16.msra.mxu0 0
          %4379 = vmatprep.subr.bf16.mxu0 0
          %4380 = vmatpush2.bf16.msra.mxu0 0
          %4381 = vmatprep.mubr.bf16.mxu0 0
          %4382 = vmatmul.mubr.bf16.gmra.mxu0 %v4277
          %v4383 = vpop.f32.mrf.mxu0
          %v4384 = vadd.f32 %v4299, %v4383
          %v4385 = vpop.f32.mrf.mxu0
          %v4386 = vpop.f32.mrf.mxu0
          %v4387 = vpop.f32.mrf.mxu0
          %4388 = vdwg.mxu0
          %4389 = vst [vmem:[%s816] sm:$0xff] %v4384
        $region127: #{mask_embedder_forward.2} parent=114 // pred_fallthru
          _
        %p4390 = scmp.lt.s32.totalorder %s34, 1
        %s4391 = scalar_select %p4390, %s34, 1
        %s4392 = smul.addr %s4391, 8
        %s4393 = scalar_lea.vmem %s19, %s4392
        // Predicated region
        $region128: #{mask_embedder_forward.2} parent=114 // pred_check
          %p4394 = pneg %p478
        $region129: #{mask_embedder_forward.2} parent=114 // pred_check_branch
          %4396 = sbr.rel (%p4394) target = $region131
        $region130: #{mask_embedder_forward.2} parent=114 // pred_region
          _
        $region131: #{mask_embedder_forward.2} parent=114 // pred_fallthru
          _
      $region115: #{mask_embedder_forward.2} parent=5 // pred_fallthru
        _
      %p4397 = scmp.le.s32.totalorder 2, %s25
      // Predicated region
      $region132: #{mask_embedder_forward.2} parent=5 // pred_check
        %p4398 = pneg %p4397
      $region133: #{mask_embedder_forward.2} parent=5 // pred_check_branch
        %4400 = sbr.rel (%p4398) target = $region135
      $region134: #{mask_embedder_forward.2} parent=5 // pred_region
        %s4401 = ssub.s32 %s25, 2
        // Predicated region
        $region136: #{mask_embedder_forward.2} parent=134 // pred_check
          %p4402 = pneg %p484
        $region137: #{mask_embedder_forward.2} parent=134 // pred_check_branch
          %4404 = sbr.rel (%p4402) target = $region139
        $region138: #{mask_embedder_forward.2} parent=134 // pred_region
          %p4405 = scmp.lt.s32.totalorder %s36, 1
          %s4406 = scalar_select %p4405, %s36, 1
          %s4407 = smul.addr %s4406, 8
          %s4408 = scalar_lea.vmem %s19, %s4407
        $region139: #{mask_embedder_forward.2} parent=134 // pred_fallthru
          _
      $region135: #{mask_embedder_forward.2} parent=5 // pred_fallthru
        _
    $region6: #{mask_embedder_forward.2} parent=1 // loop_footer
      %s29 = sadd.s32 1, %s25
    $region7: #{mask_embedder_forward.2} parent=1 // loop_footer_branch
      %24 = sbr.rel target = $region3
    $region8: #{mask_embedder_forward.2} parent=1 // loop_exit
      _

</llo_original>
